<compile_context>
chip_gen: v7x
topology: tpu7x:2x2x1
jax: 0.10.0
libtpu: 0.0.40
codegen_flags: <defaults>
</compile_context>

<pallas_src>
import functools

import jax
import jax.numpy as jnp
from jax.experimental import pallas as pl
from jax.experimental.pallas import tpu as pltpu  # noqa: F401  (TPU backend)

EPS = 1e-5
PW = 8   # width halo amount: 8 keeps every concat sublane-tile aligned


# ------------------------------ fused kernel ------------------------------- #

def _residual_block_kernel(x_ref, w1_ref, b1_ref, g1_ref, bt1_ref,
                           w2_ref, b2_ref, g2_ref, bt2_ref, o_ref,
                           *, H, W):
    """conv1 -> bn1 -> relu -> conv2 -> bn2 -> +residual -> relu, all in VMEM.

      x_ref  : (N, C, H*W)    flat NCHW view of the input (residual source)
      w*_ref : (Cout, 9*Cin)  transposed im2col conv weights
      b*_ref : (Cout, 1)      conv bias
      g*/bt* : (C, 1)         BN gamma / beta
      o_ref  : (N, C, H*W)    flat NCHW view of the output
    """
    N, C, HW = x_ref.shape
    NHW = N * HW

    def conv3x3(x_cm, w_ref_, b_ref_):
        """3x3 conv, stride 1, pad 1, on channel-major (Cin, N*HW) input."""
        cin = x_cm.shape[0]
        # channel-major -> spatial (N, H, W, Cin)
        xs = x_cm.T.reshape(N, H, W, cin)
        # zero halo: W padded by 8 on each side (aligned sublane concat),
        # H padded by 1 on each side (untiled dim -> trivial concat).
        zw = jnp.zeros((N, H, PW, cin), jnp.float32)
        xs = jnp.concatenate([zw, xs, zw], axis=2)            # (N, H, W+16, Cin)
        zh = jnp.zeros((N, 1, W + 2 * PW, cin), jnp.float32)
        xp = jnp.concatenate([zh, xs, zh], axis=1)            # (N, H+2, W+16, Cin)
        # transposed im2col: row order (dy, dx, cin) matches
        # w_hwio.reshape(9*Cin, Cout).T prepared by the wrapper.
        rows = []
        for dy in range(3):
            for dx in range(3):
                win = xp[:, dy:dy + H, PW - 1 + dx:PW - 1 + dx + W, :]
                rows.append(win.reshape(NHW, cin).T)          # (Cin, NHW)
        pmT = jnp.concatenate(rows, axis=0)                   # (9*Cin, NHW)
        # one MXU matmul per conv: (Cout, 9*Cin) @ (9*Cin, NHW)
        y = jnp.dot(w_ref_[...], pmT, preferred_element_type=jnp.float32)
        return y + b_ref_[...]                                # (Cout, NHW)

    def batchnorm(y, g_ref_, bt_ref_):
        # training-mode BatchNorm2d: biased batch stats over N,H,W per channel.
        mean = jnp.sum(y, axis=1, keepdims=True) / NHW
        d = y - mean
        var = jnp.sum(d * d, axis=1, keepdims=True) / NHW
        return d * jax.lax.rsqrt(var + EPS) * g_ref_[...] + bt_ref_[...]

    # input / residual in channel-major (C, N*HW); pieces are 128-lane aligned.
    x_cm = jnp.concatenate([x_ref[n] for n in range(N)], axis=1)   # (C, NHW)

    y = conv3x3(x_cm, w1_ref, b1_ref)
    y = jnp.maximum(batchnorm(y, g1_ref, bt1_ref), 0.0)

    y = conv3x3(y, w2_ref, b2_ref)
    y = batchnorm(y, g2_ref, bt2_ref)
    y = jnp.maximum(y + x_cm, 0.0)                                  # (C, NHW)

    # lane-dense stores: (C, HW) = (8, 256) per image, 128-aligned lane slices.
    for n in range(N):
        o_ref[n] = y[:, n * HW:(n + 1) * HW]


# -------------------------------- wrapper ----------------------------------- #

@jax.jit
def residual_block(x_nchw, params):
    """Forward pass of ResidualBlock (stride=1, downsample=None), NCHW I/O."""
    N, C, H, W = x_nchw.shape
    HW = H * W
    x_flat = x_nchw.reshape(N, C, HW)                 # free contiguous view
    col = lambda v: v.reshape(-1, 1)
    w1 = params["w1"].reshape(9 * C, -1).T            # (Cout, 9*Cin)
    w2 = params["w2"].reshape(9 * C, -1).T
    out_flat = pl.pallas_call(
        functools.partial(_residual_block_kernel, H=H, W=W),
        out_shape=jax.ShapeDtypeStruct((N, C, HW), jnp.float32),
    )(x_flat,
      w1, col(params["b1"]), col(params["g1"]), col(params["beta1"]),
      w2, col(params["b2"]), col(params["g2"]), col(params["beta2"]))
    return out_flat.reshape(N, C, H, W)               # free contiguous view


# ---------------------------- pure-JAX reference ----------------------------- #

def _conv_ref(x, w, b):
    y = jax.lax.conv_general_dilated(
        x, w, window_strides=(1, 1), padding="SAME",
        dimension_numbers=("NHWC", "HWIO", "NHWC"))
    return y + b.reshape(1, 1, 1, -1)


def _bn_ref(x, g, b):
    mean = jnp.mean(x, axis=(0, 1, 2), keepdims=True)
    var = jnp.mean((x - mean) ** 2, axis=(0, 1, 2), keepdims=True)
    return (x - mean) * jax.lax.rsqrt(var + EPS) * g.reshape(1, 1, 1, -1) \
        + b.reshape(1, 1, 1, -1)


def residual_block_ref(x_nchw, p):
    x = jnp.transpose(x_nchw, (0, 2, 3, 1))
    res = x
    out = jnp.maximum(_bn_ref(_conv_ref(x, p["w1"], p["b1"]), p["g1"], p["beta1"]), 0.0)
    out = _bn_ref(_conv_ref(out, p["w2"], p["b2"]), p["g2"], p["beta2"])
    out = jnp.maximum(out + res, 0.0)
    return jnp.transpose(out, (0, 3, 1, 2))


# ----------------------------------- main ------------------------------------ #

if __name__ == "__main__":
    N, C, H, W = 2, 8, 16, 16        # in_channels == out_channels, stride=1
    key = jax.random.PRNGKey(0)
    ks = jax.random.split(key, 10)

    params = {
        "w1": 0.1 * jax.random.normal(ks[0], (3, 3, C, C), jnp.float32),
        "b1": 0.1 * jax.random.normal(ks[1], (C,), jnp.float32),
        "g1": 1.0 + 0.1 * jax.random.normal(ks[2], (C,), jnp.float32),
        "beta1": 0.1 * jax.random.normal(ks[3], (C,), jnp.float32),
        "w2": 0.1 * jax.random.normal(ks[4], (3, 3, C, C), jnp.float32),
        "b2": 0.1 * jax.random.normal(ks[5], (C,), jnp.float32),
        "g2": 1.0 + 0.1 * jax.random.normal(ks[6], (C,), jnp.float32),
        "beta2": 0.1 * jax.random.normal(ks[7], (C,), jnp.float32),
    }
    x = jax.random.normal(ks[8], (N, C, H, W), jnp.float32)   # NCHW like PyTorch

    out = residual_block(x, params)
    out = jax.block_until_ready(out)

    ref = residual_block_ref(x, params)
    assert out.shape == (N, C, H, W), out.shape
    assert jnp.allclose(out, ref, rtol=1e-4, atol=1e-4), \
        float(jnp.max(jnp.abs(out - ref)))

    print("KERNEL_OK")
</pallas_src>

<mosaic_0001>
module attributes {stable_mosaic.version = 11 : i64} {
  func.func @_residual_block_kernel(%arg0: memref<2x8x256xf32, #tpu.memory_space<vmem>>, %arg1: memref<8x72xf32, #tpu.memory_space<vmem>>, %arg2: memref<8x1xf32, #tpu.memory_space<vmem>>, %arg3: memref<8x1xf32, #tpu.memory_space<vmem>>, %arg4: memref<8x1xf32, #tpu.memory_space<vmem>>, %arg5: memref<8x72xf32, #tpu.memory_space<vmem>>, %arg6: memref<8x1xf32, #tpu.memory_space<vmem>>, %arg7: memref<8x1xf32, #tpu.memory_space<vmem>>, %arg8: memref<8x1xf32, #tpu.memory_space<vmem>>, %arg9: memref<2x8x256xf32, #tpu.memory_space<vmem>>) attributes {dimension_semantics = [], scalar_prefetch = 0 : i64, scratch_operands = 0 : i64, tpu.core_type = #tpu.core_type<tc>} {
    %c0 = arith.constant 0 : index
    %c0_0 = arith.constant 0 : index
    %c0_1 = arith.constant 0 : index
    %0 = vector.load %arg0[%c0, %c0_0, %c0_1] : memref<2x8x256xf32, #tpu.memory_space<vmem>>, vector<1x8x256xf32>
    %1 = vector.shape_cast %0 : vector<1x8x256xf32> to vector<8x256xf32>
    %c1 = arith.constant 1 : index
    %c0_2 = arith.constant 0 : index
    %c0_3 = arith.constant 0 : index
    %2 = vector.load %arg0[%c1, %c0_2, %c0_3] : memref<2x8x256xf32, #tpu.memory_space<vmem>>, vector<1x8x256xf32>
    %3 = vector.shape_cast %2 : vector<1x8x256xf32> to vector<8x256xf32>
    %4 = tpu.concatenate %1, %3 in 1 : vector<8x256xf32>, vector<8x256xf32> -> vector<8x512xf32>
    %5 = tpu.transpose %4, [1, 0] : vector<8x512xf32> -> vector<512x8xf32>
    %6 = vector.shape_cast %5 : vector<512x8xf32> to vector<2x16x16x8xf32>
    %cst = arith.constant 0.000000e+00 : f32
    %7 = vector.broadcast %cst : f32 to vector<2x16x8x8xf32>
    %8 = tpu.concatenate %7, %6, %7 in 2 : vector<2x16x8x8xf32>, vector<2x16x16x8xf32>, vector<2x16x8x8xf32> -> vector<2x16x32x8xf32>
    %cst_4 = arith.constant 0.000000e+00 : f32
    %9 = vector.broadcast %cst_4 : f32 to vector<2x1x32x8xf32>
    %10 = tpu.concatenate %9, %8, %9 in 1 : vector<2x1x32x8xf32>, vector<2x16x32x8xf32>, vector<2x1x32x8xf32> -> vector<2x18x32x8xf32>
    %11 = vector.extract_strided_slice %10 {offsets = [0, 0, 7, 0], sizes = [2, 16, 16, 8], strides = [1, 1, 1, 1]} : vector<2x18x32x8xf32> to vector<2x16x16x8xf32>
    %12 = vector.shape_cast %11 : vector<2x16x16x8xf32> to vector<512x8xf32>
    %13 = tpu.transpose %12, [1, 0] : vector<512x8xf32> -> vector<8x512xf32>
    %14 = vector.extract_strided_slice %10 {offsets = [0, 0, 8, 0], sizes = [2, 16, 16, 8], strides = [1, 1, 1, 1]} : vector<2x18x32x8xf32> to vector<2x16x16x8xf32>
    %15 = vector.shape_cast %14 : vector<2x16x16x8xf32> to vector<512x8xf32>
    %16 = tpu.transpose %15, [1, 0] : vector<512x8xf32> -> vector<8x512xf32>
    %17 = vector.extract_strided_slice %10 {offsets = [0, 0, 9, 0], sizes = [2, 16, 16, 8], strides = [1, 1, 1, 1]} : vector<2x18x32x8xf32> to vector<2x16x16x8xf32>
    %18 = vector.shape_cast %17 : vector<2x16x16x8xf32> to vector<512x8xf32>
    %19 = tpu.transpose %18, [1, 0] : vector<512x8xf32> -> vector<8x512xf32>
    %20 = vector.extract_strided_slice %10 {offsets = [0, 1, 7, 0], sizes = [2, 16, 16, 8], strides = [1, 1, 1, 1]} : vector<2x18x32x8xf32> to vector<2x16x16x8xf32>
    %21 = vector.shape_cast %20 : vector<2x16x16x8xf32> to vector<512x8xf32>
    %22 = tpu.transpose %21, [1, 0] : vector<512x8xf32> -> vector<8x512xf32>
    %23 = vector.extract_strided_slice %10 {offsets = [0, 1, 8, 0], sizes = [2, 16, 16, 8], strides = [1, 1, 1, 1]} : vector<2x18x32x8xf32> to vector<2x16x16x8xf32>
    %24 = vector.shape_cast %23 : vector<2x16x16x8xf32> to vector<512x8xf32>
    %25 = tpu.transpose %24, [1, 0] : vector<512x8xf32> -> vector<8x512xf32>
    %26 = vector.extract_strided_slice %10 {offsets = [0, 1, 9, 0], sizes = [2, 16, 16, 8], strides = [1, 1, 1, 1]} : vector<2x18x32x8xf32> to vector<2x16x16x8xf32>
    %27 = vector.shape_cast %26 : vector<2x16x16x8xf32> to vector<512x8xf32>
    %28 = tpu.transpose %27, [1, 0] : vector<512x8xf32> -> vector<8x512xf32>
    %29 = vector.extract_strided_slice %10 {offsets = [0, 2, 7, 0], sizes = [2, 16, 16, 8], strides = [1, 1, 1, 1]} : vector<2x18x32x8xf32> to vector<2x16x16x8xf32>
    %30 = vector.shape_cast %29 : vector<2x16x16x8xf32> to vector<512x8xf32>
    %31 = tpu.transpose %30, [1, 0] : vector<512x8xf32> -> vector<8x512xf32>
    %32 = vector.extract_strided_slice %10 {offsets = [0, 2, 8, 0], sizes = [2, 16, 16, 8], strides = [1, 1, 1, 1]} : vector<2x18x32x8xf32> to vector<2x16x16x8xf32>
    %33 = vector.shape_cast %32 : vector<2x16x16x8xf32> to vector<512x8xf32>
    %34 = tpu.transpose %33, [1, 0] : vector<512x8xf32> -> vector<8x512xf32>
    %35 = vector.extract_strided_slice %10 {offsets = [0, 2, 9, 0], sizes = [2, 16, 16, 8], strides = [1, 1, 1, 1]} : vector<2x18x32x8xf32> to vector<2x16x16x8xf32>
    %36 = vector.shape_cast %35 : vector<2x16x16x8xf32> to vector<512x8xf32>
    %37 = tpu.transpose %36, [1, 0] : vector<512x8xf32> -> vector<8x512xf32>
    %38 = tpu.concatenate %13, %16, %19, %22, %25, %28, %31, %34, %37 in 0 : vector<8x512xf32>, vector<8x512xf32>, vector<8x512xf32>, vector<8x512xf32>, vector<8x512xf32>, vector<8x512xf32>, vector<8x512xf32>, vector<8x512xf32>, vector<8x512xf32> -> vector<72x512xf32>
    %c0_5 = arith.constant 0 : index
    %c0_6 = arith.constant 0 : index
    %39 = vector.load %arg1[%c0_5, %c0_6] : memref<8x72xf32, #tpu.memory_space<vmem>>, vector<8x72xf32>
    %cst_7 = arith.constant dense<0.000000e+00> : vector<8x512xf32>
    %40 = tpu.matmul %39, %38, %cst_7 {dimension_numbers = #tpu.dot_dimension_numbers<[1], [0], [0], [1], [0, 0, 1, 1], [], []>} : vector<8x72xf32>, vector<72x512xf32>, vector<8x512xf32> -> vector<8x512xf32>
    %c0_8 = arith.constant 0 : index
    %c0_9 = arith.constant 0 : index
    %41 = vector.load %arg2[%c0_8, %c0_9] : memref<8x1xf32, #tpu.memory_space<vmem>>, vector<8x1xf32>
    %42 = vector.broadcast %41 : vector<8x1xf32> to vector<8x512xf32>
    %43 = arith.addf %40, %42 : vector<8x512xf32>
    %cst_10 = arith.constant dense<0.000000e+00> : vector<8xf32>
    %44 = vector.multi_reduction <add>, %43, %cst_10 [1] : vector<8x512xf32> to vector<8xf32>
    %45 = vector.shape_cast %44 : vector<8xf32> to vector<8x1xf32>
    %cst_11 = arith.constant 5.120000e+02 : f32
    %46 = vector.broadcast %cst_11 : f32 to vector<8x1xf32>
    %47 = arith.divf %45, %46 : vector<8x1xf32>
    %48 = vector.broadcast %47 : vector<8x1xf32> to vector<8x512xf32>
    %49 = arith.subf %43, %48 : vector<8x512xf32>
    %50 = arith.mulf %49, %49 : vector<8x512xf32>
    %cst_12 = arith.constant dense<0.000000e+00> : vector<8xf32>
    %51 = vector.multi_reduction <add>, %50, %cst_12 [1] : vector<8x512xf32> to vector<8xf32>
    %52 = vector.shape_cast %51 : vector<8xf32> to vector<8x1xf32>
    %cst_13 = arith.constant 5.120000e+02 : f32
    %53 = vector.broadcast %cst_13 : f32 to vector<8x1xf32>
    %54 = arith.divf %52, %53 : vector<8x1xf32>
    %cst_14 = arith.constant 9.99999974E-6 : f32
    %55 = vector.broadcast %cst_14 : f32 to vector<8x1xf32>
    %56 = arith.addf %54, %55 : vector<8x1xf32>
    %57 = math.rsqrt %56 : vector<8x1xf32>
    %58 = vector.broadcast %57 : vector<8x1xf32> to vector<8x512xf32>
    %59 = arith.mulf %49, %58 : vector<8x512xf32>
    %c0_15 = arith.constant 0 : index
    %c0_16 = arith.constant 0 : index
    %60 = vector.load %arg3[%c0_15, %c0_16] : memref<8x1xf32, #tpu.memory_space<vmem>>, vector<8x1xf32>
    %61 = vector.broadcast %60 : vector<8x1xf32> to vector<8x512xf32>
    %62 = arith.mulf %59, %61 : vector<8x512xf32>
    %c0_17 = arith.constant 0 : index
    %c0_18 = arith.constant 0 : index
    %63 = vector.load %arg4[%c0_17, %c0_18] : memref<8x1xf32, #tpu.memory_space<vmem>>, vector<8x1xf32>
    %64 = vector.broadcast %63 : vector<8x1xf32> to vector<8x512xf32>
    %65 = arith.addf %62, %64 : vector<8x512xf32>
    %cst_19 = arith.constant 0.000000e+00 : f32
    %66 = vector.broadcast %cst_19 : f32 to vector<8x512xf32>
    %67 = arith.maximumf %65, %66 : vector<8x512xf32>
    %68 = tpu.transpose %67, [1, 0] : vector<8x512xf32> -> vector<512x8xf32>
    %69 = vector.shape_cast %68 : vector<512x8xf32> to vector<2x16x16x8xf32>
    %cst_20 = arith.constant 0.000000e+00 : f32
    %70 = vector.broadcast %cst_20 : f32 to vector<2x16x8x8xf32>
    %71 = tpu.concatenate %70, %69, %70 in 2 : vector<2x16x8x8xf32>, vector<2x16x16x8xf32>, vector<2x16x8x8xf32> -> vector<2x16x32x8xf32>
    %cst_21 = arith.constant 0.000000e+00 : f32
    %72 = vector.broadcast %cst_21 : f32 to vector<2x1x32x8xf32>
    %73 = tpu.concatenate %72, %71, %72 in 1 : vector<2x1x32x8xf32>, vector<2x16x32x8xf32>, vector<2x1x32x8xf32> -> vector<2x18x32x8xf32>
    %74 = vector.extract_strided_slice %73 {offsets = [0, 0, 7, 0], sizes = [2, 16, 16, 8], strides = [1, 1, 1, 1]} : vector<2x18x32x8xf32> to vector<2x16x16x8xf32>
    %75 = vector.shape_cast %74 : vector<2x16x16x8xf32> to vector<512x8xf32>
    %76 = tpu.transpose %75, [1, 0] : vector<512x8xf32> -> vector<8x512xf32>
    %77 = vector.extract_strided_slice %73 {offsets = [0, 0, 8, 0], sizes = [2, 16, 16, 8], strides = [1, 1, 1, 1]} : vector<2x18x32x8xf32> to vector<2x16x16x8xf32>
    %78 = vector.shape_cast %77 : vector<2x16x16x8xf32> to vector<512x8xf32>
    %79 = tpu.transpose %78, [1, 0] : vector<512x8xf32> -> vector<8x512xf32>
    %80 = vector.extract_strided_slice %73 {offsets = [0, 0, 9, 0], sizes = [2, 16, 16, 8], strides = [1, 1, 1, 1]} : vector<2x18x32x8xf32> to vector<2x16x16x8xf32>
    %81 = vector.shape_cast %80 : vector<2x16x16x8xf32> to vector<512x8xf32>
    %82 = tpu.transpose %81, [1, 0] : vector<512x8xf32> -> vector<8x512xf32>
    %83 = vector.extract_strided_slice %73 {offsets = [0, 1, 7, 0], sizes = [2, 16, 16, 8], strides = [1, 1, 1, 1]} : vector<2x18x32x8xf32> to vector<2x16x16x8xf32>
    %84 = vector.shape_cast %83 : vector<2x16x16x8xf32> to vector<512x8xf32>
    %85 = tpu.transpose %84, [1, 0] : vector<512x8xf32> -> vector<8x512xf32>
    %86 = vector.extract_strided_slice %73 {offsets = [0, 1, 8, 0], sizes = [2, 16, 16, 8], strides = [1, 1, 1, 1]} : vector<2x18x32x8xf32> to vector<2x16x16x8xf32>
    %87 = vector.shape_cast %86 : vector<2x16x16x8xf32> to vector<512x8xf32>
    %88 = tpu.transpose %87, [1, 0] : vector<512x8xf32> -> vector<8x512xf32>
    %89 = vector.extract_strided_slice %73 {offsets = [0, 1, 9, 0], sizes = [2, 16, 16, 8], strides = [1, 1, 1, 1]} : vector<2x18x32x8xf32> to vector<2x16x16x8xf32>
    %90 = vector.shape_cast %89 : vector<2x16x16x8xf32> to vector<512x8xf32>
    %91 = tpu.transpose %90, [1, 0] : vector<512x8xf32> -> vector<8x512xf32>
    %92 = vector.extract_strided_slice %73 {offsets = [0, 2, 7, 0], sizes = [2, 16, 16, 8], strides = [1, 1, 1, 1]} : vector<2x18x32x8xf32> to vector<2x16x16x8xf32>
    %93 = vector.shape_cast %92 : vector<2x16x16x8xf32> to vector<512x8xf32>
    %94 = tpu.transpose %93, [1, 0] : vector<512x8xf32> -> vector<8x512xf32>
    %95 = vector.extract_strided_slice %73 {offsets = [0, 2, 8, 0], sizes = [2, 16, 16, 8], strides = [1, 1, 1, 1]} : vector<2x18x32x8xf32> to vector<2x16x16x8xf32>
    %96 = vector.shape_cast %95 : vector<2x16x16x8xf32> to vector<512x8xf32>
    %97 = tpu.transpose %96, [1, 0] : vector<512x8xf32> -> vector<8x512xf32>
    %98 = vector.extract_strided_slice %73 {offsets = [0, 2, 9, 0], sizes = [2, 16, 16, 8], strides = [1, 1, 1, 1]} : vector<2x18x32x8xf32> to vector<2x16x16x8xf32>
    %99 = vector.shape_cast %98 : vector<2x16x16x8xf32> to vector<512x8xf32>
    %100 = tpu.transpose %99, [1, 0] : vector<512x8xf32> -> vector<8x512xf32>
    %101 = tpu.concatenate %76, %79, %82, %85, %88, %91, %94, %97, %100 in 0 : vector<8x512xf32>, vector<8x512xf32>, vector<8x512xf32>, vector<8x512xf32>, vector<8x512xf32>, vector<8x512xf32>, vector<8x512xf32>, vector<8x512xf32>, vector<8x512xf32> -> vector<72x512xf32>
    %c0_22 = arith.constant 0 : index
    %c0_23 = arith.constant 0 : index
    %102 = vector.load %arg5[%c0_22, %c0_23] : memref<8x72xf32, #tpu.memory_space<vmem>>, vector<8x72xf32>
    %cst_24 = arith.constant dense<0.000000e+00> : vector<8x512xf32>
    %103 = tpu.matmul %102, %101, %cst_24 {dimension_numbers = #tpu.dot_dimension_numbers<[1], [0], [0], [1], [0, 0, 1, 1], [], []>} : vector<8x72xf32>, vector<72x512xf32>, vector<8x512xf32> -> vector<8x512xf32>
    %c0_25 = arith.constant 0 : index
    %c0_26 = arith.constant 0 : index
    %104 = vector.load %arg6[%c0_25, %c0_26] : memref<8x1xf32, #tpu.memory_space<vmem>>, vector<8x1xf32>
    %105 = vector.broadcast %104 : vector<8x1xf32> to vector<8x512xf32>
    %106 = arith.addf %103, %105 : vector<8x512xf32>
    %cst_27 = arith.constant dense<0.000000e+00> : vector<8xf32>
    %107 = vector.multi_reduction <add>, %106, %cst_27 [1] : vector<8x512xf32> to vector<8xf32>
    %108 = vector.shape_cast %107 : vector<8xf32> to vector<8x1xf32>
    %cst_28 = arith.constant 5.120000e+02 : f32
    %109 = vector.broadcast %cst_28 : f32 to vector<8x1xf32>
    %110 = arith.divf %108, %109 : vector<8x1xf32>
    %111 = vector.broadcast %110 : vector<8x1xf32> to vector<8x512xf32>
    %112 = arith.subf %106, %111 : vector<8x512xf32>
    %113 = arith.mulf %112, %112 : vector<8x512xf32>
    %cst_29 = arith.constant dense<0.000000e+00> : vector<8xf32>
    %114 = vector.multi_reduction <add>, %113, %cst_29 [1] : vector<8x512xf32> to vector<8xf32>
    %115 = vector.shape_cast %114 : vector<8xf32> to vector<8x1xf32>
    %cst_30 = arith.constant 5.120000e+02 : f32
    %116 = vector.broadcast %cst_30 : f32 to vector<8x1xf32>
    %117 = arith.divf %115, %116 : vector<8x1xf32>
    %cst_31 = arith.constant 9.99999974E-6 : f32
    %118 = vector.broadcast %cst_31 : f32 to vector<8x1xf32>
    %119 = arith.addf %117, %118 : vector<8x1xf32>
    %120 = math.rsqrt %119 : vector<8x1xf32>
    %121 = vector.broadcast %120 : vector<8x1xf32> to vector<8x512xf32>
    %122 = arith.mulf %112, %121 : vector<8x512xf32>
    %c0_32 = arith.constant 0 : index
    %c0_33 = arith.constant 0 : index
    %123 = vector.load %arg7[%c0_32, %c0_33] : memref<8x1xf32, #tpu.memory_space<vmem>>, vector<8x1xf32>
    %124 = vector.broadcast %123 : vector<8x1xf32> to vector<8x512xf32>
    %125 = arith.mulf %122, %124 : vector<8x512xf32>
    %c0_34 = arith.constant 0 : index
    %c0_35 = arith.constant 0 : index
    %126 = vector.load %arg8[%c0_34, %c0_35] : memref<8x1xf32, #tpu.memory_space<vmem>>, vector<8x1xf32>
    %127 = vector.broadcast %126 : vector<8x1xf32> to vector<8x512xf32>
    %128 = arith.addf %125, %127 : vector<8x512xf32>
    %129 = arith.addf %128, %4 : vector<8x512xf32>
    %cst_36 = arith.constant 0.000000e+00 : f32
    %130 = vector.broadcast %cst_36 : f32 to vector<8x512xf32>
    %131 = arith.maximumf %129, %130 : vector<8x512xf32>
    %132 = vector.extract_strided_slice %131 {offsets = [0, 0], sizes = [8, 256], strides = [1, 1]} : vector<8x512xf32> to vector<8x256xf32>
    %c0_37 = arith.constant 0 : index
    %c0_38 = arith.constant 0 : index
    %c0_39 = arith.constant 0 : index
    %133 = vector.load %arg9[%c0_37, %c0_38, %c0_39] : memref<2x8x256xf32, #tpu.memory_space<vmem>>, vector<1x8x256xf32>
    %134 = vector.shape_cast %133 : vector<1x8x256xf32> to vector<8x256xf32>
    %135 = vector.shape_cast %132 : vector<8x256xf32> to vector<1x8x256xf32>
    tpu.vector_store %arg9[%c0_37, %c0_38, %c0_39], %135 {strides = array<i32>} : memref<2x8x256xf32, #tpu.memory_space<vmem>>, vector<1x8x256xf32>,
    %136 = vector.extract_strided_slice %131 {offsets = [0, 256], sizes = [8, 256], strides = [1, 1]} : vector<8x512xf32> to vector<8x256xf32>
    %c1_40 = arith.constant 1 : index
    %c0_41 = arith.constant 0 : index
    %c0_42 = arith.constant 0 : index
    %137 = vector.load %arg9[%c1_40, %c0_41, %c0_42] : memref<2x8x256xf32, #tpu.memory_space<vmem>>, vector<1x8x256xf32>
    %138 = vector.shape_cast %137 : vector<1x8x256xf32> to vector<8x256xf32>
    %139 = vector.shape_cast %136 : vector<8x256xf32> to vector<1x8x256xf32>
    tpu.vector_store %arg9[%c1_40, %c0_41, %c0_42], %139 {strides = array<i32>} : memref<2x8x256xf32, #tpu.memory_space<vmem>>, vector<1x8x256xf32>,
    return
  }
}

</mosaic_0001>

<llo_original>
// kernel: residual_block.1
$region0: #{residual_block.1}
  #allocation0 [shape = 'u32[]', space=smem, size = 0x4, offset = 0x4, fixed_abs, tag = 'smem constant byte address 0x4 - core index']
  #allocation1 [shape = 'u32[144,128]{1,0:T(1,128)}', space=vmem, size = 0x12000, scoped, tag = 'internal scratch']
  %s0 = inlined_call_operand.vmem [shape: f32[2,8,256], index: 0, kind: input, shape index: {}]
  %s1 = inlined_call_operand.vmem [shape: f32[8,72], index: 1, kind: input, shape index: {}]
  %s2 = inlined_call_operand.vmem [shape: f32[8,1], index: 2, kind: input, shape index: {}]
  %s3 = inlined_call_operand.vmem [shape: f32[8,1], index: 3, kind: input, shape index: {}]
  %s4 = inlined_call_operand.vmem [shape: f32[8,1], index: 4, kind: input, shape index: {}]
  %s5 = inlined_call_operand.vmem [shape: f32[8,72], index: 5, kind: input, shape index: {}]
  %s6 = inlined_call_operand.vmem [shape: f32[8,1], index: 6, kind: input, shape index: {}]
  %s7 = inlined_call_operand.vmem [shape: f32[8,1], index: 7, kind: input, shape index: {}]
  %s8 = inlined_call_operand.vmem [shape: f32[8,1], index: 8, kind: input, shape index: {}]
  %s9 = inlined_call_operand.vmem [shape: f32[2,8,256], index: 9, kind: output, shape index: {}]
  %s10 = sld [smem:[#allocation0]]
  $region46: #{residual_block.1} parent=0
    _
  %s12 = ssub.s32 1, %s10
  %s13 = scalar_select 0, %s12, %s10
  // Predicated region
  $region2: #{residual_block.1} parent=0 // pred_check
    _
  $region3: #{residual_block.1} parent=0 // pred_check_branch
    %15 = sbr.rel (0) target = $region5
  $region4: #{residual_block.1} parent=0 // pred_region
    _
  $region5: #{residual_block.1} parent=0 // pred_fallthru
    _
  // Predicated region
  $region6: #{residual_block.1} parent=0 // pred_check
    _
  $region7: #{residual_block.1} parent=0 // pred_check_branch
    %17 = sbr.rel (0) target = $region9
  $region8: #{residual_block.1} parent=0 // pred_region
    _
  $region9: #{residual_block.1} parent=0 // pred_fallthru
    _
  // Predicated region
  $region10: #{residual_block.1} parent=0 // pred_check
    _
  $region11: #{residual_block.1} parent=0 // pred_check_branch
    %19 = sbr.rel (0) target = $region13
  $region12: #{residual_block.1} parent=0 // pred_region
    _
  $region13: #{residual_block.1} parent=0 // pred_fallthru
    _
  // Predicated region
  $region14: #{residual_block.1} parent=0 // pred_check
    _
  $region15: #{residual_block.1} parent=0 // pred_check_branch
    %21 = sbr.rel (0) target = $region17
  $region16: #{residual_block.1} parent=0 // pred_region
    _
  $region17: #{residual_block.1} parent=0 // pred_fallthru
    _
  // Predicated region
  $region18: #{residual_block.1} parent=0 // pred_check
    _
  $region19: #{residual_block.1} parent=0 // pred_check_branch
    %23 = sbr.rel (0) target = $region21
  $region20: #{residual_block.1} parent=0 // pred_region
    _
  $region21: #{residual_block.1} parent=0 // pred_fallthru
    _
  // Predicated region
  $region22: #{residual_block.1} parent=0 // pred_check
    _
  $region23: #{residual_block.1} parent=0 // pred_check_branch
    %25 = sbr.rel (0) target = $region25
  $region24: #{residual_block.1} parent=0 // pred_region
    _
  $region25: #{residual_block.1} parent=0 // pred_fallthru
    _
  // Predicated region
  $region26: #{residual_block.1} parent=0 // pred_check
    _
  $region27: #{residual_block.1} parent=0 // pred_check_branch
    %27 = sbr.rel (0) target = $region29
  $region28: #{residual_block.1} parent=0 // pred_region
    _
  $region29: #{residual_block.1} parent=0 // pred_fallthru
    _
  // Predicated region
  $region30: #{residual_block.1} parent=0 // pred_check
    _
  $region31: #{residual_block.1} parent=0 // pred_check_branch
    %29 = sbr.rel (0) target = $region33
  $region32: #{residual_block.1} parent=0 // pred_region
    _
  $region33: #{residual_block.1} parent=0 // pred_fallthru
    _
  // Predicated region
  $region34: #{residual_block.1} parent=0 // pred_check
    _
  $region35: #{residual_block.1} parent=0 // pred_check_branch
    %31 = sbr.rel (0) target = $region37
  $region36: #{residual_block.1} parent=0 // pred_region
    _
  $region37: #{residual_block.1} parent=0 // pred_fallthru
    _
  %v32 = vld [vmem:[%s0] sm:$0xff]
  %v33 = vld [vmem:[%s0 + $0x8] sm:$0xff]
  %s34 = scalar_lea.vmem %s0, 16
  %v35 = vld [vmem:[%s34] sm:$0xff]
  %v36 = vld [vmem:[%s34 + $0x8] sm:$0xff]
  %37 = vxpose.xlu0.b32.start [1/16] %v32, 128
  %38 = vxpose.xlu0.b32.cont [2/16] 0.0, 128
  %39 = vxpose.xlu0.b32.cont [3/16] 0.0, 128
  %40 = vxpose.xlu0.b32.cont [4/16] 0.0, 128
  %41 = vxpose.xlu0.b32.cont [5/16] 0.0, 128
  %42 = vxpose.xlu0.b32.cont [6/16] 0.0, 128
  %43 = vxpose.xlu0.b32.cont [7/16] 0.0, 128
  %44 = vxpose.xlu0.b32.cont [8/16] 0.0, 128
  %45 = vxpose.xlu0.b32.cont [9/16] 0.0, 128
  %46 = vxpose.xlu0.b32.cont [10/16] 0.0, 128
  %47 = vxpose.xlu0.b32.cont [11/16] 0.0, 128
  %48 = vxpose.xlu0.b32.cont [12/16] 0.0, 128
  %49 = vxpose.xlu0.b32.cont [13/16] 0.0, 128
  %50 = vxpose.xlu0.b32.cont [14/16] 0.0, 128
  %51 = vxpose.xlu0.b32.cont [15/16] 0.0, 128
  %52 = vxpose.xlu0.b32.end [16/16] 0.0, 128
  %v53 = vpop.trf.xlu0
  %v54 = vpop.trf.xlu0
  %v55 = vpop.trf.xlu0
  %v56 = vpop.trf.xlu0
  %v57 = vpop.trf.xlu0
  %v58 = vpop.trf.xlu0
  %v59 = vpop.trf.xlu0
  %v60 = vpop.trf.xlu0
  %v61 = vpop.trf.xlu0
  %v62 = vpop.trf.xlu0
  %v63 = vpop.trf.xlu0
  %v64 = vpop.trf.xlu0
  %v65 = vpop.trf.xlu0
  %v66 = vpop.trf.xlu0
  %v67 = vpop.trf.xlu0
  %v68 = vpop.trf.xlu0
  %69 = vxpose.xlu0.b32.start [1/16] %v33, 128
  %70 = vxpose.xlu0.b32.cont [2/16] 0.0, 128
  %71 = vxpose.xlu0.b32.cont [3/16] 0.0, 128
  %72 = vxpose.xlu0.b32.cont [4/16] 0.0, 128
  %73 = vxpose.xlu0.b32.cont [5/16] 0.0, 128
  %74 = vxpose.xlu0.b32.cont [6/16] 0.0, 128
  %75 = vxpose.xlu0.b32.cont [7/16] 0.0, 128
  %76 = vxpose.xlu0.b32.cont [8/16] 0.0, 128
  %77 = vxpose.xlu0.b32.cont [9/16] 0.0, 128
  %78 = vxpose.xlu0.b32.cont [10/16] 0.0, 128
  %79 = vxpose.xlu0.b32.cont [11/16] 0.0, 128
  %80 = vxpose.xlu0.b32.cont [12/16] 0.0, 128
  %81 = vxpose.xlu0.b32.cont [13/16] 0.0, 128
  %82 = vxpose.xlu0.b32.cont [14/16] 0.0, 128
  %83 = vxpose.xlu0.b32.cont [15/16] 0.0, 128
  %84 = vxpose.xlu0.b32.end [16/16] 0.0, 128
  %v85 = vpop.trf.xlu0
  %v86 = vpop.trf.xlu0
  %v87 = vpop.trf.xlu0
  %v88 = vpop.trf.xlu0
  %v89 = vpop.trf.xlu0
  %v90 = vpop.trf.xlu0
  %v91 = vpop.trf.xlu0
  %v92 = vpop.trf.xlu0
  %v93 = vpop.trf.xlu0
  %v94 = vpop.trf.xlu0
  %v95 = vpop.trf.xlu0
  %v96 = vpop.trf.xlu0
  %v97 = vpop.trf.xlu0
  %v98 = vpop.trf.xlu0
  %v99 = vpop.trf.xlu0
  %v100 = vpop.trf.xlu0
  %101 = vxpose.xlu0.b32.start [1/16] %v35, 128
  %102 = vxpose.xlu0.b32.cont [2/16] 0.0, 128
  %103 = vxpose.xlu0.b32.cont [3/16] 0.0, 128
  %104 = vxpose.xlu0.b32.cont [4/16] 0.0, 128
  %105 = vxpose.xlu0.b32.cont [5/16] 0.0, 128
  %106 = vxpose.xlu0.b32.cont [6/16] 0.0, 128
  %107 = vxpose.xlu0.b32.cont [7/16] 0.0, 128
  %108 = vxpose.xlu0.b32.cont [8/16] 0.0, 128
  %109 = vxpose.xlu0.b32.cont [9/16] 0.0, 128
  %110 = vxpose.xlu0.b32.cont [10/16] 0.0, 128
  %111 = vxpose.xlu0.b32.cont [11/16] 0.0, 128
  %112 = vxpose.xlu0.b32.cont [12/16] 0.0, 128
  %113 = vxpose.xlu0.b32.cont [13/16] 0.0, 128
  %114 = vxpose.xlu0.b32.cont [14/16] 0.0, 128
  %115 = vxpose.xlu0.b32.cont [15/16] 0.0, 128
  %116 = vxpose.xlu0.b32.end [16/16] 0.0, 128
  %v117 = vpop.trf.xlu0
  %v118 = vpop.trf.xlu0
  %v119 = vpop.trf.xlu0
  %v120 = vpop.trf.xlu0
  %v121 = vpop.trf.xlu0
  %v122 = vpop.trf.xlu0
  %v123 = vpop.trf.xlu0
  %v124 = vpop.trf.xlu0
  %v125 = vpop.trf.xlu0
  %v126 = vpop.trf.xlu0
  %v127 = vpop.trf.xlu0
  %v128 = vpop.trf.xlu0
  %v129 = vpop.trf.xlu0
  %v130 = vpop.trf.xlu0
  %v131 = vpop.trf.xlu0
  %v132 = vpop.trf.xlu0
  %133 = vxpose.xlu0.b32.start [1/16] %v36, 128
  %134 = vxpose.xlu0.b32.cont [2/16] 0.0, 128
  %135 = vxpose.xlu0.b32.cont [3/16] 0.0, 128
  %136 = vxpose.xlu0.b32.cont [4/16] 0.0, 128
  %137 = vxpose.xlu0.b32.cont [5/16] 0.0, 128
  %138 = vxpose.xlu0.b32.cont [6/16] 0.0, 128
  %139 = vxpose.xlu0.b32.cont [7/16] 0.0, 128
  %140 = vxpose.xlu0.b32.cont [8/16] 0.0, 128
  %141 = vxpose.xlu0.b32.cont [9/16] 0.0, 128
  %142 = vxpose.xlu0.b32.cont [10/16] 0.0, 128
  %143 = vxpose.xlu0.b32.cont [11/16] 0.0, 128
  %144 = vxpose.xlu0.b32.cont [12/16] 0.0, 128
  %145 = vxpose.xlu0.b32.cont [13/16] 0.0, 128
  %146 = vxpose.xlu0.b32.cont [14/16] 0.0, 128
  %147 = vxpose.xlu0.b32.cont [15/16] 0.0, 128
  %148 = vxpose.xlu0.b32.end [16/16] 0.0, 128
  %v149 = vpop.trf.xlu0
  %v150 = vpop.trf.xlu0
  %v151 = vpop.trf.xlu0
  %v152 = vpop.trf.xlu0
  %v153 = vpop.trf.xlu0
  %v154 = vpop.trf.xlu0
  %v155 = vpop.trf.xlu0
  %v156 = vpop.trf.xlu0
  %v157 = vpop.trf.xlu0
  %v158 = vpop.trf.xlu0
  %v159 = vpop.trf.xlu0
  %v160 = vpop.trf.xlu0
  %v161 = vpop.trf.xlu0
  %v162 = vpop.trf.xlu0
  %v163 = vpop.trf.xlu0
  %v164 = vpop.trf.xlu0
  %vm226 = vcmask 1040384
  %v227 = vrot.slane 0.0, 7
  %v228 = vsel %vm226, %v227, %v227
  %v229 = vrot.slane %v53, 7
  %v230 = vsel %vm226, %v227, %v229
  %v231 = vrot.slane %v54, 7
  %v232 = vsel %vm226, %v229, %v231
  %v233 = vrot.slane %v55, 7
  %v234 = vsel %vm226, %v227, %v233
  %v235 = vrot.slane %v56, 7
  %v236 = vsel %vm226, %v233, %v235
  %v237 = vrot.slane %v57, 7
  %v238 = vsel %vm226, %v227, %v237
  %v239 = vrot.slane %v58, 7
  %v240 = vsel %vm226, %v237, %v239
  %v241 = vrot.slane %v59, 7
  %v242 = vsel %vm226, %v227, %v241
  %v243 = vrot.slane %v60, 7
  %v244 = vsel %vm226, %v241, %v243
  %v245 = vrot.slane %v61, 7
  %v246 = vsel %vm226, %v227, %v245
  %v247 = vrot.slane %v62, 7
  %v248 = vsel %vm226, %v245, %v247
  %v249 = vrot.slane %v63, 7
  %v250 = vsel %vm226, %v227, %v249
  %v251 = vrot.slane %v64, 7
  %v252 = vsel %vm226, %v249, %v251
  %v253 = vrot.slane %v65, 7
  %v254 = vsel %vm226, %v227, %v253
  %v255 = vrot.slane %v66, 7
  %v256 = vsel %vm226, %v253, %v255
  %v257 = vrot.slane %v67, 7
  %v258 = vsel %vm226, %v227, %v257
  %v259 = vrot.slane %v68, 7
  %v260 = vsel %vm226, %v257, %v259
  %v261 = vrot.slane %v85, 7
  %v262 = vsel %vm226, %v227, %v261
  %v263 = vrot.slane %v86, 7
  %v264 = vsel %vm226, %v261, %v263
  %v265 = vrot.slane %v87, 7
  %v266 = vsel %vm226, %v227, %v265
  %v267 = vrot.slane %v88, 7
  %v268 = vsel %vm226, %v265, %v267
  %v269 = vrot.slane %v89, 7
  %v270 = vsel %vm226, %v227, %v269
  %v271 = vrot.slane %v90, 7
  %v272 = vsel %vm226, %v269, %v271
  %v273 = vrot.slane %v91, 7
  %v274 = vsel %vm226, %v227, %v273
  %v275 = vrot.slane %v92, 7
  %v276 = vsel %vm226, %v273, %v275
  %v277 = vrot.slane %v93, 7
  %v278 = vsel %vm226, %v227, %v277
  %v279 = vrot.slane %v94, 7
  %v280 = vsel %vm226, %v277, %v279
  %v281 = vrot.slane %v95, 7
  %v282 = vsel %vm226, %v227, %v281
  %v283 = vrot.slane %v96, 7
  %v284 = vsel %vm226, %v281, %v283
  %v285 = vrot.slane %v97, 7
  %v286 = vsel %vm226, %v227, %v285
  %v287 = vrot.slane %v98, 7
  %v288 = vsel %vm226, %v285, %v287
  %v289 = vrot.slane %v117, 7
  %v290 = vsel %vm226, %v227, %v289
  %v291 = vrot.slane %v118, 7
  %v292 = vsel %vm226, %v289, %v291
  %v293 = vrot.slane %v119, 7
  %v294 = vsel %vm226, %v227, %v293
  %v295 = vrot.slane %v120, 7
  %v296 = vsel %vm226, %v293, %v295
  %v297 = vrot.slane %v121, 7
  %v298 = vsel %vm226, %v227, %v297
  %v299 = vrot.slane %v122, 7
  %v300 = vsel %vm226, %v297, %v299
  %v301 = vrot.slane %v123, 7
  %v302 = vsel %vm226, %v227, %v301
  %v303 = vrot.slane %v124, 7
  %v304 = vsel %vm226, %v301, %v303
  %v305 = vrot.slane %v125, 7
  %v306 = vsel %vm226, %v227, %v305
  %v307 = vrot.slane %v126, 7
  %v308 = vsel %vm226, %v305, %v307
  %v309 = vrot.slane %v127, 7
  %v310 = vsel %vm226, %v227, %v309
  %v311 = vrot.slane %v128, 7
  %v312 = vsel %vm226, %v309, %v311
  %v313 = vrot.slane %v129, 7
  %v314 = vsel %vm226, %v227, %v313
  %v315 = vrot.slane %v130, 7
  %v316 = vsel %vm226, %v313, %v315
  %v317 = vrot.slane %v131, 7
  %v318 = vsel %vm226, %v227, %v317
  %v319 = vrot.slane %v132, 7
  %v320 = vsel %vm226, %v317, %v319
  %v321 = vrot.slane %v149, 7
  %v322 = vsel %vm226, %v227, %v321
  %v323 = vrot.slane %v150, 7
  %v324 = vsel %vm226, %v321, %v323
  %v325 = vrot.slane %v151, 7
  %v326 = vsel %vm226, %v227, %v325
  %v327 = vrot.slane %v152, 7
  %v328 = vsel %vm226, %v325, %v327
  %v329 = vrot.slane %v153, 7
  %v330 = vsel %vm226, %v227, %v329
  %v331 = vrot.slane %v154, 7
  %v332 = vsel %vm226, %v329, %v331
  %v333 = vrot.slane %v155, 7
  %v334 = vsel %vm226, %v227, %v333
  %v335 = vrot.slane %v156, 7
  %v336 = vsel %vm226, %v333, %v335
  %v337 = vrot.slane %v157, 7
  %v338 = vsel %vm226, %v227, %v337
  %v339 = vrot.slane %v158, 7
  %v340 = vsel %vm226, %v337, %v339
  %v341 = vrot.slane %v159, 7
  %v342 = vsel %vm226, %v227, %v341
  %v343 = vrot.slane %v160, 7
  %v344 = vsel %vm226, %v341, %v343
  %v345 = vrot.slane %v161, 7
  %v346 = vsel %vm226, %v227, %v345
  %v347 = vrot.slane %v162, 7
  %v348 = vsel %vm226, %v345, %v347
  %410 = vxpose.xlu0.b32.start [1/16] %v228, 128
  %411 = vxpose.xlu0.b32.cont [2/16] %v228, 128
  %412 = vxpose.xlu0.b32.cont [3/16] %v230, 128
  %413 = vxpose.xlu0.b32.cont [4/16] %v232, 128
  %414 = vxpose.xlu0.b32.cont [5/16] %v234, 128
  %415 = vxpose.xlu0.b32.cont [6/16] %v236, 128
  %416 = vxpose.xlu0.b32.cont [7/16] %v238, 128
  %417 = vxpose.xlu0.b32.cont [8/16] %v240, 128
  %418 = vxpose.xlu0.b32.cont [9/16] %v242, 128
  %419 = vxpose.xlu0.b32.cont [10/16] %v244, 128
  %420 = vxpose.xlu0.b32.cont [11/16] %v246, 128
  %421 = vxpose.xlu0.b32.cont [12/16] %v248, 128
  %422 = vxpose.xlu0.b32.cont [13/16] %v250, 128
  %423 = vxpose.xlu0.b32.cont [14/16] %v252, 128
  %424 = vxpose.xlu0.b32.cont [15/16] %v254, 128
  %425 = vxpose.xlu0.b32.end [16/16] %v256, 128
  %v426 = vpop.trf.xlu0
  %v427 = vpop.trf.xlu0
  %v428 = vpop.trf.xlu0
  %v429 = vpop.trf.xlu0
  %v430 = vpop.trf.xlu0
  %v431 = vpop.trf.xlu0
  %v432 = vpop.trf.xlu0
  %v433 = vpop.trf.xlu0
  %v434 = vpop.trf.xlu0
  %v435 = vpop.trf.xlu0
  %v436 = vpop.trf.xlu0
  %v437 = vpop.trf.xlu0
  %v438 = vpop.trf.xlu0
  %v439 = vpop.trf.xlu0
  %v440 = vpop.trf.xlu0
  %v441 = vpop.trf.xlu0
  %442 = vxpose.xlu0.b32.start [1/16] %v258, 128
  %443 = vxpose.xlu0.b32.cont [2/16] %v260, 128
  %444 = vxpose.xlu0.b32.cont [3/16] %v262, 128
  %445 = vxpose.xlu0.b32.cont [4/16] %v264, 128
  %446 = vxpose.xlu0.b32.cont [5/16] %v266, 128
  %447 = vxpose.xlu0.b32.cont [6/16] %v268, 128
  %448 = vxpose.xlu0.b32.cont [7/16] %v270, 128
  %449 = vxpose.xlu0.b32.cont [8/16] %v272, 128
  %450 = vxpose.xlu0.b32.cont [9/16] %v274, 128
  %451 = vxpose.xlu0.b32.cont [10/16] %v276, 128
  %452 = vxpose.xlu0.b32.cont [11/16] %v278, 128
  %453 = vxpose.xlu0.b32.cont [12/16] %v280, 128
  %454 = vxpose.xlu0.b32.cont [13/16] %v282, 128
  %455 = vxpose.xlu0.b32.cont [14/16] %v284, 128
  %456 = vxpose.xlu0.b32.cont [15/16] %v286, 128
  %457 = vxpose.xlu0.b32.end [16/16] %v288, 128
  %v458 = vpop.trf.xlu0
  %v459 = vpop.trf.xlu0
  %v460 = vpop.trf.xlu0
  %v461 = vpop.trf.xlu0
  %v462 = vpop.trf.xlu0
  %v463 = vpop.trf.xlu0
  %v464 = vpop.trf.xlu0
  %v465 = vpop.trf.xlu0
  %v466 = vpop.trf.xlu0
  %v467 = vpop.trf.xlu0
  %v468 = vpop.trf.xlu0
  %v469 = vpop.trf.xlu0
  %v470 = vpop.trf.xlu0
  %v471 = vpop.trf.xlu0
  %v472 = vpop.trf.xlu0
  %v473 = vpop.trf.xlu0
  %474 = vxpose.xlu0.b32.start [1/16] %v228, 128
  %475 = vxpose.xlu0.b32.cont [2/16] %v228, 128
  %476 = vxpose.xlu0.b32.cont [3/16] %v290, 128
  %477 = vxpose.xlu0.b32.cont [4/16] %v292, 128
  %478 = vxpose.xlu0.b32.cont [5/16] %v294, 128
  %479 = vxpose.xlu0.b32.cont [6/16] %v296, 128
  %480 = vxpose.xlu0.b32.cont [7/16] %v298, 128
  %481 = vxpose.xlu0.b32.cont [8/16] %v300, 128
  %482 = vxpose.xlu0.b32.cont [9/16] %v302, 128
  %483 = vxpose.xlu0.b32.cont [10/16] %v304, 128
  %484 = vxpose.xlu0.b32.cont [11/16] %v306, 128
  %485 = vxpose.xlu0.b32.cont [12/16] %v308, 128
  %486 = vxpose.xlu0.b32.cont [13/16] %v310, 128
  %487 = vxpose.xlu0.b32.cont [14/16] %v312, 128
  %488 = vxpose.xlu0.b32.cont [15/16] %v314, 128
  %489 = vxpose.xlu0.b32.end [16/16] %v316, 128
  %v490 = vpop.trf.xlu0
  %v491 = vpop.trf.xlu0
  %v492 = vpop.trf.xlu0
  %v493 = vpop.trf.xlu0
  %v494 = vpop.trf.xlu0
  %v495 = vpop.trf.xlu0
  %v496 = vpop.trf.xlu0
  %v497 = vpop.trf.xlu0
  %v498 = vpop.trf.xlu0
  %v499 = vpop.trf.xlu0
  %v500 = vpop.trf.xlu0
  %v501 = vpop.trf.xlu0
  %v502 = vpop.trf.xlu0
  %v503 = vpop.trf.xlu0
  %v504 = vpop.trf.xlu0
  %v505 = vpop.trf.xlu0
  %506 = vxpose.xlu0.b32.start [1/16] %v318, 128
  %507 = vxpose.xlu0.b32.cont [2/16] %v320, 128
  %508 = vxpose.xlu0.b32.cont [3/16] %v322, 128
  %509 = vxpose.xlu0.b32.cont [4/16] %v324, 128
  %510 = vxpose.xlu0.b32.cont [5/16] %v326, 128
  %511 = vxpose.xlu0.b32.cont [6/16] %v328, 128
  %512 = vxpose.xlu0.b32.cont [7/16] %v330, 128
  %513 = vxpose.xlu0.b32.cont [8/16] %v332, 128
  %514 = vxpose.xlu0.b32.cont [9/16] %v334, 128
  %515 = vxpose.xlu0.b32.cont [10/16] %v336, 128
  %516 = vxpose.xlu0.b32.cont [11/16] %v338, 128
  %517 = vxpose.xlu0.b32.cont [12/16] %v340, 128
  %518 = vxpose.xlu0.b32.cont [13/16] %v342, 128
  %519 = vxpose.xlu0.b32.cont [14/16] %v344, 128
  %520 = vxpose.xlu0.b32.cont [15/16] %v346, 128
  %521 = vxpose.xlu0.b32.end [16/16] %v348, 128
  %v522 = vpop.trf.xlu0
  %v523 = vpop.trf.xlu0
  %v524 = vpop.trf.xlu0
  %v525 = vpop.trf.xlu0
  %v526 = vpop.trf.xlu0
  %v527 = vpop.trf.xlu0
  %v528 = vpop.trf.xlu0
  %v529 = vpop.trf.xlu0
  %v530 = vpop.trf.xlu0
  %v531 = vpop.trf.xlu0
  %v532 = vpop.trf.xlu0
  %v533 = vpop.trf.xlu0
  %v534 = vpop.trf.xlu0
  %v535 = vpop.trf.xlu0
  %v536 = vpop.trf.xlu0
  %v537 = vpop.trf.xlu0
  %538 = vxpose.xlu0.b32.start [1/16] 0.0, 128
  %539 = vxpose.xlu0.b32.cont [2/16] 0.0, 128
  %540 = vxpose.xlu0.b32.cont [3/16] %v53, 128
  %541 = vxpose.xlu0.b32.cont [4/16] %v54, 128
  %542 = vxpose.xlu0.b32.cont [5/16] %v55, 128
  %543 = vxpose.xlu0.b32.cont [6/16] %v56, 128
  %544 = vxpose.xlu0.b32.cont [7/16] %v57, 128
  %545 = vxpose.xlu0.b32.cont [8/16] %v58, 128
  %546 = vxpose.xlu0.b32.cont [9/16] %v59, 128
  %547 = vxpose.xlu0.b32.cont [10/16] %v60, 128
  %548 = vxpose.xlu0.b32.cont [11/16] %v61, 128
  %549 = vxpose.xlu0.b32.cont [12/16] %v62, 128
  %550 = vxpose.xlu0.b32.cont [13/16] %v63, 128
  %551 = vxpose.xlu0.b32.cont [14/16] %v64, 128
  %552 = vxpose.xlu0.b32.cont [15/16] %v65, 128
  %553 = vxpose.xlu0.b32.end [16/16] %v66, 128
  %v554 = vpop.trf.xlu0
  %v555 = vpop.trf.xlu0
  %v556 = vpop.trf.xlu0
  %v557 = vpop.trf.xlu0
  %v558 = vpop.trf.xlu0
  %v559 = vpop.trf.xlu0
  %v560 = vpop.trf.xlu0
  %v561 = vpop.trf.xlu0
  %v562 = vpop.trf.xlu0
  %v563 = vpop.trf.xlu0
  %v564 = vpop.trf.xlu0
  %v565 = vpop.trf.xlu0
  %v566 = vpop.trf.xlu0
  %v567 = vpop.trf.xlu0
  %v568 = vpop.trf.xlu0
  %v569 = vpop.trf.xlu0
  %570 = vxpose.xlu0.b32.start [1/16] %v67, 128
  %571 = vxpose.xlu0.b32.cont [2/16] %v68, 128
  %572 = vxpose.xlu0.b32.cont [3/16] %v85, 128
  %573 = vxpose.xlu0.b32.cont [4/16] %v86, 128
  %574 = vxpose.xlu0.b32.cont [5/16] %v87, 128
  %575 = vxpose.xlu0.b32.cont [6/16] %v88, 128
  %576 = vxpose.xlu0.b32.cont [7/16] %v89, 128
  %577 = vxpose.xlu0.b32.cont [8/16] %v90, 128
  %578 = vxpose.xlu0.b32.cont [9/16] %v91, 128
  %579 = vxpose.xlu0.b32.cont [10/16] %v92, 128
  %580 = vxpose.xlu0.b32.cont [11/16] %v93, 128
  %581 = vxpose.xlu0.b32.cont [12/16] %v94, 128
  %582 = vxpose.xlu0.b32.cont [13/16] %v95, 128
  %583 = vxpose.xlu0.b32.cont [14/16] %v96, 128
  %584 = vxpose.xlu0.b32.cont [15/16] %v97, 128
  %585 = vxpose.xlu0.b32.end [16/16] %v98, 128
  %v586 = vpop.trf.xlu0
  %v587 = vpop.trf.xlu0
  %v588 = vpop.trf.xlu0
  %v589 = vpop.trf.xlu0
  %v590 = vpop.trf.xlu0
  %v591 = vpop.trf.xlu0
  %v592 = vpop.trf.xlu0
  %v593 = vpop.trf.xlu0
  %v594 = vpop.trf.xlu0
  %v595 = vpop.trf.xlu0
  %v596 = vpop.trf.xlu0
  %v597 = vpop.trf.xlu0
  %v598 = vpop.trf.xlu0
  %v599 = vpop.trf.xlu0
  %v600 = vpop.trf.xlu0
  %v601 = vpop.trf.xlu0
  %602 = vxpose.xlu0.b32.start [1/16] 0.0, 128
  %603 = vxpose.xlu0.b32.cont [2/16] 0.0, 128
  %604 = vxpose.xlu0.b32.cont [3/16] %v117, 128
  %605 = vxpose.xlu0.b32.cont [4/16] %v118, 128
  %606 = vxpose.xlu0.b32.cont [5/16] %v119, 128
  %607 = vxpose.xlu0.b32.cont [6/16] %v120, 128
  %608 = vxpose.xlu0.b32.cont [7/16] %v121, 128
  %609 = vxpose.xlu0.b32.cont [8/16] %v122, 128
  %610 = vxpose.xlu0.b32.cont [9/16] %v123, 128
  %611 = vxpose.xlu0.b32.cont [10/16] %v124, 128
  %612 = vxpose.xlu0.b32.cont [11/16] %v125, 128
  %613 = vxpose.xlu0.b32.cont [12/16] %v126, 128
  %614 = vxpose.xlu0.b32.cont [13/16] %v127, 128
  %615 = vxpose.xlu0.b32.cont [14/16] %v128, 128
  %616 = vxpose.xlu0.b32.cont [15/16] %v129, 128
  %617 = vxpose.xlu0.b32.end [16/16] %v130, 128
  %v618 = vpop.trf.xlu0
  %v619 = vpop.trf.xlu0
  %v620 = vpop.trf.xlu0
  %v621 = vpop.trf.xlu0
  %v622 = vpop.trf.xlu0
  %v623 = vpop.trf.xlu0
  %v624 = vpop.trf.xlu0
  %v625 = vpop.trf.xlu0
  %v626 = vpop.trf.xlu0
  %v627 = vpop.trf.xlu0
  %v628 = vpop.trf.xlu0
  %v629 = vpop.trf.xlu0
  %v630 = vpop.trf.xlu0
  %v631 = vpop.trf.xlu0
  %v632 = vpop.trf.xlu0
  %v633 = vpop.trf.xlu0
  %634 = vxpose.xlu0.b32.start [1/16] %v131, 128
  %635 = vxpose.xlu0.b32.cont [2/16] %v132, 128
  %636 = vxpose.xlu0.b32.cont [3/16] %v149, 128
  %637 = vxpose.xlu0.b32.cont [4/16] %v150, 128
  %638 = vxpose.xlu0.b32.cont [5/16] %v151, 128
  %639 = vxpose.xlu0.b32.cont [6/16] %v152, 128
  %640 = vxpose.xlu0.b32.cont [7/16] %v153, 128
  %641 = vxpose.xlu0.b32.cont [8/16] %v154, 128
  %642 = vxpose.xlu0.b32.cont [9/16] %v155, 128
  %643 = vxpose.xlu0.b32.cont [10/16] %v156, 128
  %644 = vxpose.xlu0.b32.cont [11/16] %v157, 128
  %645 = vxpose.xlu0.b32.cont [12/16] %v158, 128
  %646 = vxpose.xlu0.b32.cont [13/16] %v159, 128
  %647 = vxpose.xlu0.b32.cont [14/16] %v160, 128
  %648 = vxpose.xlu0.b32.cont [15/16] %v161, 128
  %649 = vxpose.xlu0.b32.end [16/16] %v162, 128
  %v650 = vpop.trf.xlu0
  %v651 = vpop.trf.xlu0
  %v652 = vpop.trf.xlu0
  %v653 = vpop.trf.xlu0
  %v654 = vpop.trf.xlu0
  %v655 = vpop.trf.xlu0
  %v656 = vpop.trf.xlu0
  %v657 = vpop.trf.xlu0
  %v658 = vpop.trf.xlu0
  %v659 = vpop.trf.xlu0
  %v660 = vpop.trf.xlu0
  %v661 = vpop.trf.xlu0
  %v662 = vpop.trf.xlu0
  %v663 = vpop.trf.xlu0
  %v664 = vpop.trf.xlu0
  %v665 = vpop.trf.xlu0
  %vm666 = vcmask 1046528
  %v667 = vrot.slane 0.0, 1
  %v668 = vsel %vm666, %v667, %v667
  %v669 = vrot.slane %v53, 1
  %v670 = vrot.slane %v54, 1
  %v671 = vsel %vm666, %v669, %v670
  %v672 = vsel %vm666, %v670, %v667
  %v673 = vrot.slane %v55, 1
  %v674 = vrot.slane %v56, 1
  %v675 = vsel %vm666, %v673, %v674
  %v676 = vsel %vm666, %v674, %v667
  %v677 = vrot.slane %v57, 1
  %v678 = vrot.slane %v58, 1
  %v679 = vsel %vm666, %v677, %v678
  %v680 = vsel %vm666, %v678, %v667
  %v681 = vrot.slane %v59, 1
  %v682 = vrot.slane %v60, 1
  %v683 = vsel %vm666, %v681, %v682
  %v684 = vsel %vm666, %v682, %v667
  %v685 = vrot.slane %v61, 1
  %v686 = vrot.slane %v62, 1
  %v687 = vsel %vm666, %v685, %v686
  %v688 = vsel %vm666, %v686, %v667
  %v689 = vrot.slane %v63, 1
  %v690 = vrot.slane %v64, 1
  %v691 = vsel %vm666, %v689, %v690
  %v692 = vsel %vm666, %v690, %v667
  %v693 = vrot.slane %v65, 1
  %v694 = vrot.slane %v66, 1
  %v695 = vsel %vm666, %v693, %v694
  %v696 = vsel %vm666, %v694, %v667
  %v697 = vrot.slane %v67, 1
  %v698 = vrot.slane %v68, 1
  %v699 = vsel %vm666, %v697, %v698
  %v700 = vsel %vm666, %v698, %v667
  %v701 = vrot.slane %v85, 1
  %v702 = vrot.slane %v86, 1
  %v703 = vsel %vm666, %v701, %v702
  %v704 = vsel %vm666, %v702, %v667
  %v705 = vrot.slane %v87, 1
  %v706 = vrot.slane %v88, 1
  %v707 = vsel %vm666, %v705, %v706
  %v708 = vsel %vm666, %v706, %v667
  %v709 = vrot.slane %v89, 1
  %v710 = vrot.slane %v90, 1
  %v711 = vsel %vm666, %v709, %v710
  %v712 = vsel %vm666, %v710, %v667
  %v713 = vrot.slane %v91, 1
  %v714 = vrot.slane %v92, 1
  %v715 = vsel %vm666, %v713, %v714
  %v716 = vsel %vm666, %v714, %v667
  %v717 = vrot.slane %v93, 1
  %v718 = vrot.slane %v94, 1
  %v719 = vsel %vm666, %v717, %v718
  %v720 = vsel %vm666, %v718, %v667
  %v721 = vrot.slane %v95, 1
  %v722 = vrot.slane %v96, 1
  %v723 = vsel %vm666, %v721, %v722
  %v724 = vsel %vm666, %v722, %v667
  %v725 = vrot.slane %v97, 1
  %v726 = vrot.slane %v98, 1
  %v727 = vsel %vm666, %v725, %v726
  %v728 = vsel %vm666, %v726, %v667
  %v729 = vrot.slane %v117, 1
  %v730 = vrot.slane %v118, 1
  %v731 = vsel %vm666, %v729, %v730
  %v732 = vsel %vm666, %v730, %v667
  %v733 = vrot.slane %v119, 1
  %v734 = vrot.slane %v120, 1
  %v735 = vsel %vm666, %v733, %v734
  %v736 = vsel %vm666, %v734, %v667
  %v737 = vrot.slane %v121, 1
  %v738 = vrot.slane %v122, 1
  %v739 = vsel %vm666, %v737, %v738
  %v740 = vsel %vm666, %v738, %v667
  %v741 = vrot.slane %v123, 1
  %v742 = vrot.slane %v124, 1
  %v743 = vsel %vm666, %v741, %v742
  %v744 = vsel %vm666, %v742, %v667
  %v745 = vrot.slane %v125, 1
  %v746 = vrot.slane %v126, 1
  %v747 = vsel %vm666, %v745, %v746
  %v748 = vsel %vm666, %v746, %v667
  %v749 = vrot.slane %v127, 1
  %v750 = vrot.slane %v128, 1
  %v751 = vsel %vm666, %v749, %v750
  %v752 = vsel %vm666, %v750, %v667
  %v753 = vrot.slane %v129, 1
  %v754 = vrot.slane %v130, 1
  %v755 = vsel %vm666, %v753, %v754
  %v756 = vsel %vm666, %v754, %v667
  %v757 = vrot.slane %v131, 1
  %v758 = vrot.slane %v132, 1
  %v759 = vsel %vm666, %v757, %v758
  %v760 = vsel %vm666, %v758, %v667
  %v761 = vrot.slane %v149, 1
  %v762 = vrot.slane %v150, 1
  %v763 = vsel %vm666, %v761, %v762
  %v764 = vsel %vm666, %v762, %v667
  %v765 = vrot.slane %v151, 1
  %v766 = vrot.slane %v152, 1
  %v767 = vsel %vm666, %v765, %v766
  %v768 = vsel %vm666, %v766, %v667
  %v769 = vrot.slane %v153, 1
  %v770 = vrot.slane %v154, 1
  %v771 = vsel %vm666, %v769, %v770
  %v772 = vsel %vm666, %v770, %v667
  %v773 = vrot.slane %v155, 1
  %v774 = vrot.slane %v156, 1
  %v775 = vsel %vm666, %v773, %v774
  %v776 = vsel %vm666, %v774, %v667
  %v777 = vrot.slane %v157, 1
  %v778 = vrot.slane %v158, 1
  %v779 = vsel %vm666, %v777, %v778
  %v780 = vsel %vm666, %v778, %v667
  %v781 = vrot.slane %v159, 1
  %v782 = vrot.slane %v160, 1
  %v783 = vsel %vm666, %v781, %v782
  %v784 = vsel %vm666, %v782, %v667
  %v785 = vrot.slane %v161, 1
  %v786 = vrot.slane %v162, 1
  %v787 = vsel %vm666, %v785, %v786
  %v788 = vsel %vm666, %v786, %v667
  %850 = vxpose.xlu0.b32.start [1/16] %v668, 128
  %851 = vxpose.xlu0.b32.cont [2/16] %v668, 128
  %852 = vxpose.xlu0.b32.cont [3/16] %v671, 128
  %853 = vxpose.xlu0.b32.cont [4/16] %v672, 128
  %854 = vxpose.xlu0.b32.cont [5/16] %v675, 128
  %855 = vxpose.xlu0.b32.cont [6/16] %v676, 128
  %856 = vxpose.xlu0.b32.cont [7/16] %v679, 128
  %857 = vxpose.xlu0.b32.cont [8/16] %v680, 128
  %858 = vxpose.xlu0.b32.cont [9/16] %v683, 128
  %859 = vxpose.xlu0.b32.cont [10/16] %v684, 128
  %860 = vxpose.xlu0.b32.cont [11/16] %v687, 128
  %861 = vxpose.xlu0.b32.cont [12/16] %v688, 128
  %862 = vxpose.xlu0.b32.cont [13/16] %v691, 128
  %863 = vxpose.xlu0.b32.cont [14/16] %v692, 128
  %864 = vxpose.xlu0.b32.cont [15/16] %v695, 128
  %865 = vxpose.xlu0.b32.end [16/16] %v696, 128
  %v866 = vpop.trf.xlu0
  %v867 = vpop.trf.xlu0
  %v868 = vpop.trf.xlu0
  %v869 = vpop.trf.xlu0
  %v870 = vpop.trf.xlu0
  %v871 = vpop.trf.xlu0
  %v872 = vpop.trf.xlu0
  %v873 = vpop.trf.xlu0
  %v874 = vpop.trf.xlu0
  %v875 = vpop.trf.xlu0
  %v876 = vpop.trf.xlu0
  %v877 = vpop.trf.xlu0
  %v878 = vpop.trf.xlu0
  %v879 = vpop.trf.xlu0
  %v880 = vpop.trf.xlu0
  %v881 = vpop.trf.xlu0
  %882 = vxpose.xlu0.b32.start [1/16] %v699, 128
  %883 = vxpose.xlu0.b32.cont [2/16] %v700, 128
  %884 = vxpose.xlu0.b32.cont [3/16] %v703, 128
  %885 = vxpose.xlu0.b32.cont [4/16] %v704, 128
  %886 = vxpose.xlu0.b32.cont [5/16] %v707, 128
  %887 = vxpose.xlu0.b32.cont [6/16] %v708, 128
  %888 = vxpose.xlu0.b32.cont [7/16] %v711, 128
  %889 = vxpose.xlu0.b32.cont [8/16] %v712, 128
  %890 = vxpose.xlu0.b32.cont [9/16] %v715, 128
  %891 = vxpose.xlu0.b32.cont [10/16] %v716, 128
  %892 = vxpose.xlu0.b32.cont [11/16] %v719, 128
  %893 = vxpose.xlu0.b32.cont [12/16] %v720, 128
  %894 = vxpose.xlu0.b32.cont [13/16] %v723, 128
  %895 = vxpose.xlu0.b32.cont [14/16] %v724, 128
  %896 = vxpose.xlu0.b32.cont [15/16] %v727, 128
  %897 = vxpose.xlu0.b32.end [16/16] %v728, 128
  %v898 = vpop.trf.xlu0
  %v899 = vpop.trf.xlu0
  %v900 = vpop.trf.xlu0
  %v901 = vpop.trf.xlu0
  %v902 = vpop.trf.xlu0
  %v903 = vpop.trf.xlu0
  %v904 = vpop.trf.xlu0
  %v905 = vpop.trf.xlu0
  %v906 = vpop.trf.xlu0
  %v907 = vpop.trf.xlu0
  %v908 = vpop.trf.xlu0
  %v909 = vpop.trf.xlu0
  %v910 = vpop.trf.xlu0
  %v911 = vpop.trf.xlu0
  %v912 = vpop.trf.xlu0
  %v913 = vpop.trf.xlu0
  %914 = vxpose.xlu0.b32.start [1/16] %v668, 128
  %915 = vxpose.xlu0.b32.cont [2/16] %v668, 128
  %916 = vxpose.xlu0.b32.cont [3/16] %v731, 128
  %917 = vxpose.xlu0.b32.cont [4/16] %v732, 128
  %918 = vxpose.xlu0.b32.cont [5/16] %v735, 128
  %919 = vxpose.xlu0.b32.cont [6/16] %v736, 128
  %920 = vxpose.xlu0.b32.cont [7/16] %v739, 128
  %921 = vxpose.xlu0.b32.cont [8/16] %v740, 128
  %922 = vxpose.xlu0.b32.cont [9/16] %v743, 128
  %923 = vxpose.xlu0.b32.cont [10/16] %v744, 128
  %924 = vxpose.xlu0.b32.cont [11/16] %v747, 128
  %925 = vxpose.xlu0.b32.cont [12/16] %v748, 128
  %926 = vxpose.xlu0.b32.cont [13/16] %v751, 128
  %927 = vxpose.xlu0.b32.cont [14/16] %v752, 128
  %928 = vxpose.xlu0.b32.cont [15/16] %v755, 128
  %929 = vxpose.xlu0.b32.end [16/16] %v756, 128
  %v930 = vpop.trf.xlu0
  %v931 = vpop.trf.xlu0
  %v932 = vpop.trf.xlu0
  %v933 = vpop.trf.xlu0
  %v934 = vpop.trf.xlu0
  %v935 = vpop.trf.xlu0
  %v936 = vpop.trf.xlu0
  %v937 = vpop.trf.xlu0
  %v938 = vpop.trf.xlu0
  %v939 = vpop.trf.xlu0
  %v940 = vpop.trf.xlu0
  %v941 = vpop.trf.xlu0
  %v942 = vpop.trf.xlu0
  %v943 = vpop.trf.xlu0
  %v944 = vpop.trf.xlu0
  %v945 = vpop.trf.xlu0
  %946 = vxpose.xlu0.b32.start [1/16] %v759, 128
  %947 = vxpose.xlu0.b32.cont [2/16] %v760, 128
  %948 = vxpose.xlu0.b32.cont [3/16] %v763, 128
  %949 = vxpose.xlu0.b32.cont [4/16] %v764, 128
  %950 = vxpose.xlu0.b32.cont [5/16] %v767, 128
  %951 = vxpose.xlu0.b32.cont [6/16] %v768, 128
  %952 = vxpose.xlu0.b32.cont [7/16] %v771, 128
  %953 = vxpose.xlu0.b32.cont [8/16] %v772, 128
  %954 = vxpose.xlu0.b32.cont [9/16] %v775, 128
  %955 = vxpose.xlu0.b32.cont [10/16] %v776, 128
  %956 = vxpose.xlu0.b32.cont [11/16] %v779, 128
  %957 = vxpose.xlu0.b32.cont [12/16] %v780, 128
  %958 = vxpose.xlu0.b32.cont [13/16] %v783, 128
  %959 = vxpose.xlu0.b32.cont [14/16] %v784, 128
  %960 = vxpose.xlu0.b32.cont [15/16] %v787, 128
  %961 = vxpose.xlu0.b32.end [16/16] %v788, 128
  %v962 = vpop.trf.xlu0
  %v963 = vpop.trf.xlu0
  %v964 = vpop.trf.xlu0
  %v965 = vpop.trf.xlu0
  %v966 = vpop.trf.xlu0
  %v967 = vpop.trf.xlu0
  %v968 = vpop.trf.xlu0
  %v969 = vpop.trf.xlu0
  %v970 = vpop.trf.xlu0
  %v971 = vpop.trf.xlu0
  %v972 = vpop.trf.xlu0
  %v973 = vpop.trf.xlu0
  %v974 = vpop.trf.xlu0
  %v975 = vpop.trf.xlu0
  %v976 = vpop.trf.xlu0
  %v977 = vpop.trf.xlu0
  %v982 = vrot.slane %v99, 7
  %v983 = vsel %vm226, %v227, %v982
  %v984 = vrot.slane %v100, 7
  %v985 = vsel %vm226, %v982, %v984
  %v986 = vrot.slane %v163, 7
  %v987 = vsel %vm226, %v227, %v986
  %v988 = vrot.slane %v164, 7
  %v989 = vsel %vm226, %v986, %v988
  %994 = vxpose.xlu0.b32.start [1/16] %v230, 128
  %995 = vxpose.xlu0.b32.cont [2/16] %v232, 128
  %996 = vxpose.xlu0.b32.cont [3/16] %v234, 128
  %997 = vxpose.xlu0.b32.cont [4/16] %v236, 128
  %998 = vxpose.xlu0.b32.cont [5/16] %v238, 128
  %999 = vxpose.xlu0.b32.cont [6/16] %v240, 128
  %1000 = vxpose.xlu0.b32.cont [7/16] %v242, 128
  %1001 = vxpose.xlu0.b32.cont [8/16] %v244, 128
  %1002 = vxpose.xlu0.b32.cont [9/16] %v246, 128
  %1003 = vxpose.xlu0.b32.cont [10/16] %v248, 128
  %1004 = vxpose.xlu0.b32.cont [11/16] %v250, 128
  %1005 = vxpose.xlu0.b32.cont [12/16] %v252, 128
  %1006 = vxpose.xlu0.b32.cont [13/16] %v254, 128
  %1007 = vxpose.xlu0.b32.cont [14/16] %v256, 128
  %1008 = vxpose.xlu0.b32.cont [15/16] %v258, 128
  %1009 = vxpose.xlu0.b32.end [16/16] %v260, 128
  %v1010 = vpop.trf.xlu0
  %v1011 = vpop.trf.xlu0
  %v1012 = vpop.trf.xlu0
  %v1013 = vpop.trf.xlu0
  %v1014 = vpop.trf.xlu0
  %v1015 = vpop.trf.xlu0
  %v1016 = vpop.trf.xlu0
  %v1017 = vpop.trf.xlu0
  %v1018 = vpop.trf.xlu0
  %v1019 = vpop.trf.xlu0
  %v1020 = vpop.trf.xlu0
  %v1021 = vpop.trf.xlu0
  %v1022 = vpop.trf.xlu0
  %v1023 = vpop.trf.xlu0
  %v1024 = vpop.trf.xlu0
  %v1025 = vpop.trf.xlu0
  %1026 = vxpose.xlu0.b32.start [1/16] %v262, 128
  %1027 = vxpose.xlu0.b32.cont [2/16] %v264, 128
  %1028 = vxpose.xlu0.b32.cont [3/16] %v266, 128
  %1029 = vxpose.xlu0.b32.cont [4/16] %v268, 128
  %1030 = vxpose.xlu0.b32.cont [5/16] %v270, 128
  %1031 = vxpose.xlu0.b32.cont [6/16] %v272, 128
  %1032 = vxpose.xlu0.b32.cont [7/16] %v274, 128
  %1033 = vxpose.xlu0.b32.cont [8/16] %v276, 128
  %1034 = vxpose.xlu0.b32.cont [9/16] %v278, 128
  %1035 = vxpose.xlu0.b32.cont [10/16] %v280, 128
  %1036 = vxpose.xlu0.b32.cont [11/16] %v282, 128
  %1037 = vxpose.xlu0.b32.cont [12/16] %v284, 128
  %1038 = vxpose.xlu0.b32.cont [13/16] %v286, 128
  %1039 = vxpose.xlu0.b32.cont [14/16] %v288, 128
  %1040 = vxpose.xlu0.b32.cont [15/16] %v983, 128
  %1041 = vxpose.xlu0.b32.end [16/16] %v985, 128
  %v1042 = vpop.trf.xlu0
  %v1043 = vpop.trf.xlu0
  %v1044 = vpop.trf.xlu0
  %v1045 = vpop.trf.xlu0
  %v1046 = vpop.trf.xlu0
  %v1047 = vpop.trf.xlu0
  %v1048 = vpop.trf.xlu0
  %v1049 = vpop.trf.xlu0
  %v1050 = vpop.trf.xlu0
  %v1051 = vpop.trf.xlu0
  %v1052 = vpop.trf.xlu0
  %v1053 = vpop.trf.xlu0
  %v1054 = vpop.trf.xlu0
  %v1055 = vpop.trf.xlu0
  %v1056 = vpop.trf.xlu0
  %v1057 = vpop.trf.xlu0
  %1058 = vxpose.xlu0.b32.start [1/16] %v290, 128
  %1059 = vxpose.xlu0.b32.cont [2/16] %v292, 128
  %1060 = vxpose.xlu0.b32.cont [3/16] %v294, 128
  %1061 = vxpose.xlu0.b32.cont [4/16] %v296, 128
  %1062 = vxpose.xlu0.b32.cont [5/16] %v298, 128
  %1063 = vxpose.xlu0.b32.cont [6/16] %v300, 128
  %1064 = vxpose.xlu0.b32.cont [7/16] %v302, 128
  %1065 = vxpose.xlu0.b32.cont [8/16] %v304, 128
  %1066 = vxpose.xlu0.b32.cont [9/16] %v306, 128
  %1067 = vxpose.xlu0.b32.cont [10/16] %v308, 128
  %1068 = vxpose.xlu0.b32.cont [11/16] %v310, 128
  %1069 = vxpose.xlu0.b32.cont [12/16] %v312, 128
  %1070 = vxpose.xlu0.b32.cont [13/16] %v314, 128
  %1071 = vxpose.xlu0.b32.cont [14/16] %v316, 128
  %1072 = vxpose.xlu0.b32.cont [15/16] %v318, 128
  %1073 = vxpose.xlu0.b32.end [16/16] %v320, 128
  %v1074 = vpop.trf.xlu0
  %v1075 = vpop.trf.xlu0
  %v1076 = vpop.trf.xlu0
  %v1077 = vpop.trf.xlu0
  %v1078 = vpop.trf.xlu0
  %v1079 = vpop.trf.xlu0
  %v1080 = vpop.trf.xlu0
  %v1081 = vpop.trf.xlu0
  %v1082 = vpop.trf.xlu0
  %v1083 = vpop.trf.xlu0
  %v1084 = vpop.trf.xlu0
  %v1085 = vpop.trf.xlu0
  %v1086 = vpop.trf.xlu0
  %v1087 = vpop.trf.xlu0
  %v1088 = vpop.trf.xlu0
  %v1089 = vpop.trf.xlu0
  %1090 = vxpose.xlu0.b32.start [1/16] %v322, 128
  %1091 = vxpose.xlu0.b32.cont [2/16] %v324, 128
  %1092 = vxpose.xlu0.b32.cont [3/16] %v326, 128
  %1093 = vxpose.xlu0.b32.cont [4/16] %v328, 128
  %1094 = vxpose.xlu0.b32.cont [5/16] %v330, 128
  %1095 = vxpose.xlu0.b32.cont [6/16] %v332, 128
  %1096 = vxpose.xlu0.b32.cont [7/16] %v334, 128
  %1097 = vxpose.xlu0.b32.cont [8/16] %v336, 128
  %1098 = vxpose.xlu0.b32.cont [9/16] %v338, 128
  %1099 = vxpose.xlu0.b32.cont [10/16] %v340, 128
  %1100 = vxpose.xlu0.b32.cont [11/16] %v342, 128
  %1101 = vxpose.xlu0.b32.cont [12/16] %v344, 128
  %1102 = vxpose.xlu0.b32.cont [13/16] %v346, 128
  %1103 = vxpose.xlu0.b32.cont [14/16] %v348, 128
  %1104 = vxpose.xlu0.b32.cont [15/16] %v987, 128
  %1105 = vxpose.xlu0.b32.end [16/16] %v989, 128
  %v1106 = vpop.trf.xlu0
  %v1107 = vpop.trf.xlu0
  %v1108 = vpop.trf.xlu0
  %v1109 = vpop.trf.xlu0
  %v1110 = vpop.trf.xlu0
  %v1111 = vpop.trf.xlu0
  %v1112 = vpop.trf.xlu0
  %v1113 = vpop.trf.xlu0
  %v1114 = vpop.trf.xlu0
  %v1115 = vpop.trf.xlu0
  %v1116 = vpop.trf.xlu0
  %v1117 = vpop.trf.xlu0
  %v1118 = vpop.trf.xlu0
  %v1119 = vpop.trf.xlu0
  %v1120 = vpop.trf.xlu0
  %v1121 = vpop.trf.xlu0
  %1122 = vxpose.xlu0.b32.start [1/16] %v53, 128
  %1123 = vxpose.xlu0.b32.cont [2/16] %v54, 128
  %1124 = vxpose.xlu0.b32.cont [3/16] %v55, 128
  %1125 = vxpose.xlu0.b32.cont [4/16] %v56, 128
  %1126 = vxpose.xlu0.b32.cont [5/16] %v57, 128
  %1127 = vxpose.xlu0.b32.cont [6/16] %v58, 128
  %1128 = vxpose.xlu0.b32.cont [7/16] %v59, 128
  %1129 = vxpose.xlu0.b32.cont [8/16] %v60, 128
  %1130 = vxpose.xlu0.b32.cont [9/16] %v61, 128
  %1131 = vxpose.xlu0.b32.cont [10/16] %v62, 128
  %1132 = vxpose.xlu0.b32.cont [11/16] %v63, 128
  %1133 = vxpose.xlu0.b32.cont [12/16] %v64, 128
  %1134 = vxpose.xlu0.b32.cont [13/16] %v65, 128
  %1135 = vxpose.xlu0.b32.cont [14/16] %v66, 128
  %1136 = vxpose.xlu0.b32.cont [15/16] %v67, 128
  %1137 = vxpose.xlu0.b32.end [16/16] %v68, 128
  %v1138 = vpop.trf.xlu0
  %v1139 = vpop.trf.xlu0
  %v1140 = vpop.trf.xlu0
  %v1141 = vpop.trf.xlu0
  %v1142 = vpop.trf.xlu0
  %v1143 = vpop.trf.xlu0
  %v1144 = vpop.trf.xlu0
  %v1145 = vpop.trf.xlu0
  %v1146 = vpop.trf.xlu0
  %v1147 = vpop.trf.xlu0
  %v1148 = vpop.trf.xlu0
  %v1149 = vpop.trf.xlu0
  %v1150 = vpop.trf.xlu0
  %v1151 = vpop.trf.xlu0
  %v1152 = vpop.trf.xlu0
  %v1153 = vpop.trf.xlu0
  %1154 = vxpose.xlu0.b32.start [1/16] %v85, 128
  %1155 = vxpose.xlu0.b32.cont [2/16] %v86, 128
  %1156 = vxpose.xlu0.b32.cont [3/16] %v87, 128
  %1157 = vxpose.xlu0.b32.cont [4/16] %v88, 128
  %1158 = vxpose.xlu0.b32.cont [5/16] %v89, 128
  %1159 = vxpose.xlu0.b32.cont [6/16] %v90, 128
  %1160 = vxpose.xlu0.b32.cont [7/16] %v91, 128
  %1161 = vxpose.xlu0.b32.cont [8/16] %v92, 128
  %1162 = vxpose.xlu0.b32.cont [9/16] %v93, 128
  %1163 = vxpose.xlu0.b32.cont [10/16] %v94, 128
  %1164 = vxpose.xlu0.b32.cont [11/16] %v95, 128
  %1165 = vxpose.xlu0.b32.cont [12/16] %v96, 128
  %1166 = vxpose.xlu0.b32.cont [13/16] %v97, 128
  %1167 = vxpose.xlu0.b32.cont [14/16] %v98, 128
  %1168 = vxpose.xlu0.b32.cont [15/16] %v99, 128
  %1169 = vxpose.xlu0.b32.end [16/16] %v100, 128
  %v1170 = vpop.trf.xlu0
  %v1171 = vpop.trf.xlu0
  %v1172 = vpop.trf.xlu0
  %v1173 = vpop.trf.xlu0
  %v1174 = vpop.trf.xlu0
  %v1175 = vpop.trf.xlu0
  %v1176 = vpop.trf.xlu0
  %v1177 = vpop.trf.xlu0
  %v1178 = vpop.trf.xlu0
  %v1179 = vpop.trf.xlu0
  %v1180 = vpop.trf.xlu0
  %v1181 = vpop.trf.xlu0
  %v1182 = vpop.trf.xlu0
  %v1183 = vpop.trf.xlu0
  %v1184 = vpop.trf.xlu0
  %v1185 = vpop.trf.xlu0
  %1186 = vxpose.xlu0.b32.start [1/16] %v117, 128
  %1187 = vxpose.xlu0.b32.cont [2/16] %v118, 128
  %1188 = vxpose.xlu0.b32.cont [3/16] %v119, 128
  %1189 = vxpose.xlu0.b32.cont [4/16] %v120, 128
  %1190 = vxpose.xlu0.b32.cont [5/16] %v121, 128
  %1191 = vxpose.xlu0.b32.cont [6/16] %v122, 128
  %1192 = vxpose.xlu0.b32.cont [7/16] %v123, 128
  %1193 = vxpose.xlu0.b32.cont [8/16] %v124, 128
  %1194 = vxpose.xlu0.b32.cont [9/16] %v125, 128
  %1195 = vxpose.xlu0.b32.cont [10/16] %v126, 128
  %1196 = vxpose.xlu0.b32.cont [11/16] %v127, 128
  %1197 = vxpose.xlu0.b32.cont [12/16] %v128, 128
  %1198 = vxpose.xlu0.b32.cont [13/16] %v129, 128
  %1199 = vxpose.xlu0.b32.cont [14/16] %v130, 128
  %1200 = vxpose.xlu0.b32.cont [15/16] %v131, 128
  %1201 = vxpose.xlu0.b32.end [16/16] %v132, 128
  %v1202 = vpop.trf.xlu0
  %v1203 = vpop.trf.xlu0
  %v1204 = vpop.trf.xlu0
  %v1205 = vpop.trf.xlu0
  %v1206 = vpop.trf.xlu0
  %v1207 = vpop.trf.xlu0
  %v1208 = vpop.trf.xlu0
  %v1209 = vpop.trf.xlu0
  %v1210 = vpop.trf.xlu0
  %v1211 = vpop.trf.xlu0
  %v1212 = vpop.trf.xlu0
  %v1213 = vpop.trf.xlu0
  %v1214 = vpop.trf.xlu0
  %v1215 = vpop.trf.xlu0
  %v1216 = vpop.trf.xlu0
  %v1217 = vpop.trf.xlu0
  %1218 = vxpose.xlu0.b32.start [1/16] %v149, 128
  %1219 = vxpose.xlu0.b32.cont [2/16] %v150, 128
  %1220 = vxpose.xlu0.b32.cont [3/16] %v151, 128
  %1221 = vxpose.xlu0.b32.cont [4/16] %v152, 128
  %1222 = vxpose.xlu0.b32.cont [5/16] %v153, 128
  %1223 = vxpose.xlu0.b32.cont [6/16] %v154, 128
  %1224 = vxpose.xlu0.b32.cont [7/16] %v155, 128
  %1225 = vxpose.xlu0.b32.cont [8/16] %v156, 128
  %1226 = vxpose.xlu0.b32.cont [9/16] %v157, 128
  %1227 = vxpose.xlu0.b32.cont [10/16] %v158, 128
  %1228 = vxpose.xlu0.b32.cont [11/16] %v159, 128
  %1229 = vxpose.xlu0.b32.cont [12/16] %v160, 128
  %1230 = vxpose.xlu0.b32.cont [13/16] %v161, 128
  %1231 = vxpose.xlu0.b32.cont [14/16] %v162, 128
  %1232 = vxpose.xlu0.b32.cont [15/16] %v163, 128
  %1233 = vxpose.xlu0.b32.end [16/16] %v164, 128
  %v1234 = vpop.trf.xlu0
  %v1235 = vpop.trf.xlu0
  %v1236 = vpop.trf.xlu0
  %v1237 = vpop.trf.xlu0
  %v1238 = vpop.trf.xlu0
  %v1239 = vpop.trf.xlu0
  %v1240 = vpop.trf.xlu0
  %v1241 = vpop.trf.xlu0
  %v1242 = vpop.trf.xlu0
  %v1243 = vpop.trf.xlu0
  %v1244 = vpop.trf.xlu0
  %v1245 = vpop.trf.xlu0
  %v1246 = vpop.trf.xlu0
  %v1247 = vpop.trf.xlu0
  %v1248 = vpop.trf.xlu0
  %v1249 = vpop.trf.xlu0
  %v1250 = vrot.slane %v99, 1
  %v1251 = vrot.slane %v100, 1
  %v1252 = vsel %vm666, %v1250, %v1251
  %v1253 = vsel %vm666, %v1251, %v667
  %v1254 = vrot.slane %v163, 1
  %v1255 = vrot.slane %v164, 1
  %v1256 = vsel %vm666, %v1254, %v1255
  %v1257 = vsel %vm666, %v1255, %v667
  %1262 = vxpose.xlu0.b32.start [1/16] %v671, 128
  %1263 = vxpose.xlu0.b32.cont [2/16] %v672, 128
  %1264 = vxpose.xlu0.b32.cont [3/16] %v675, 128
  %1265 = vxpose.xlu0.b32.cont [4/16] %v676, 128
  %1266 = vxpose.xlu0.b32.cont [5/16] %v679, 128
  %1267 = vxpose.xlu0.b32.cont [6/16] %v680, 128
  %1268 = vxpose.xlu0.b32.cont [7/16] %v683, 128
  %1269 = vxpose.xlu0.b32.cont [8/16] %v684, 128
  %1270 = vxpose.xlu0.b32.cont [9/16] %v687, 128
  %1271 = vxpose.xlu0.b32.cont [10/16] %v688, 128
  %1272 = vxpose.xlu0.b32.cont [11/16] %v691, 128
  %1273 = vxpose.xlu0.b32.cont [12/16] %v692, 128
  %1274 = vxpose.xlu0.b32.cont [13/16] %v695, 128
  %1275 = vxpose.xlu0.b32.cont [14/16] %v696, 128
  %1276 = vxpose.xlu0.b32.cont [15/16] %v699, 128
  %1277 = vxpose.xlu0.b32.end [16/16] %v700, 128
  %v1278 = vpop.trf.xlu0
  %v1279 = vpop.trf.xlu0
  %v1280 = vpop.trf.xlu0
  %v1281 = vpop.trf.xlu0
  %v1282 = vpop.trf.xlu0
  %v1283 = vpop.trf.xlu0
  %v1284 = vpop.trf.xlu0
  %v1285 = vpop.trf.xlu0
  %v1286 = vpop.trf.xlu0
  %v1287 = vpop.trf.xlu0
  %v1288 = vpop.trf.xlu0
  %v1289 = vpop.trf.xlu0
  %v1290 = vpop.trf.xlu0
  %v1291 = vpop.trf.xlu0
  %v1292 = vpop.trf.xlu0
  %v1293 = vpop.trf.xlu0
  %1294 = vxpose.xlu0.b32.start [1/16] %v703, 128
  %1295 = vxpose.xlu0.b32.cont [2/16] %v704, 128
  %1296 = vxpose.xlu0.b32.cont [3/16] %v707, 128
  %1297 = vxpose.xlu0.b32.cont [4/16] %v708, 128
  %1298 = vxpose.xlu0.b32.cont [5/16] %v711, 128
  %1299 = vxpose.xlu0.b32.cont [6/16] %v712, 128
  %1300 = vxpose.xlu0.b32.cont [7/16] %v715, 128
  %1301 = vxpose.xlu0.b32.cont [8/16] %v716, 128
  %1302 = vxpose.xlu0.b32.cont [9/16] %v719, 128
  %1303 = vxpose.xlu0.b32.cont [10/16] %v720, 128
  %1304 = vxpose.xlu0.b32.cont [11/16] %v723, 128
  %1305 = vxpose.xlu0.b32.cont [12/16] %v724, 128
  %1306 = vxpose.xlu0.b32.cont [13/16] %v727, 128
  %1307 = vxpose.xlu0.b32.cont [14/16] %v728, 128
  %1308 = vxpose.xlu0.b32.cont [15/16] %v1252, 128
  %1309 = vxpose.xlu0.b32.end [16/16] %v1253, 128
  %v1310 = vpop.trf.xlu0
  %v1311 = vpop.trf.xlu0
  %v1312 = vpop.trf.xlu0
  %v1313 = vpop.trf.xlu0
  %v1314 = vpop.trf.xlu0
  %v1315 = vpop.trf.xlu0
  %v1316 = vpop.trf.xlu0
  %v1317 = vpop.trf.xlu0
  %v1318 = vpop.trf.xlu0
  %v1319 = vpop.trf.xlu0
  %v1320 = vpop.trf.xlu0
  %v1321 = vpop.trf.xlu0
  %v1322 = vpop.trf.xlu0
  %v1323 = vpop.trf.xlu0
  %v1324 = vpop.trf.xlu0
  %v1325 = vpop.trf.xlu0
  %1326 = vxpose.xlu0.b32.start [1/16] %v731, 128
  %1327 = vxpose.xlu0.b32.cont [2/16] %v732, 128
  %1328 = vxpose.xlu0.b32.cont [3/16] %v735, 128
  %1329 = vxpose.xlu0.b32.cont [4/16] %v736, 128
  %1330 = vxpose.xlu0.b32.cont [5/16] %v739, 128
  %1331 = vxpose.xlu0.b32.cont [6/16] %v740, 128
  %1332 = vxpose.xlu0.b32.cont [7/16] %v743, 128
  %1333 = vxpose.xlu0.b32.cont [8/16] %v744, 128
  %1334 = vxpose.xlu0.b32.cont [9/16] %v747, 128
  %1335 = vxpose.xlu0.b32.cont [10/16] %v748, 128
  %1336 = vxpose.xlu0.b32.cont [11/16] %v751, 128
  %1337 = vxpose.xlu0.b32.cont [12/16] %v752, 128
  %1338 = vxpose.xlu0.b32.cont [13/16] %v755, 128
  %1339 = vxpose.xlu0.b32.cont [14/16] %v756, 128
  %1340 = vxpose.xlu0.b32.cont [15/16] %v759, 128
  %1341 = vxpose.xlu0.b32.end [16/16] %v760, 128
  %v1342 = vpop.trf.xlu0
  %v1343 = vpop.trf.xlu0
  %v1344 = vpop.trf.xlu0
  %v1345 = vpop.trf.xlu0
  %v1346 = vpop.trf.xlu0
  %v1347 = vpop.trf.xlu0
  %v1348 = vpop.trf.xlu0
  %v1349 = vpop.trf.xlu0
  %v1350 = vpop.trf.xlu0
  %v1351 = vpop.trf.xlu0
  %v1352 = vpop.trf.xlu0
  %v1353 = vpop.trf.xlu0
  %v1354 = vpop.trf.xlu0
  %v1355 = vpop.trf.xlu0
  %v1356 = vpop.trf.xlu0
  %v1357 = vpop.trf.xlu0
  %1358 = vxpose.xlu0.b32.start [1/16] %v763, 128
  %1359 = vxpose.xlu0.b32.cont [2/16] %v764, 128
  %1360 = vxpose.xlu0.b32.cont [3/16] %v767, 128
  %1361 = vxpose.xlu0.b32.cont [4/16] %v768, 128
  %1362 = vxpose.xlu0.b32.cont [5/16] %v771, 128
  %1363 = vxpose.xlu0.b32.cont [6/16] %v772, 128
  %1364 = vxpose.xlu0.b32.cont [7/16] %v775, 128
  %1365 = vxpose.xlu0.b32.cont [8/16] %v776, 128
  %1366 = vxpose.xlu0.b32.cont [9/16] %v779, 128
  %1367 = vxpose.xlu0.b32.cont [10/16] %v780, 128
  %1368 = vxpose.xlu0.b32.cont [11/16] %v783, 128
  %1369 = vxpose.xlu0.b32.cont [12/16] %v784, 128
  %1370 = vxpose.xlu0.b32.cont [13/16] %v787, 128
  %1371 = vxpose.xlu0.b32.cont [14/16] %v788, 128
  %1372 = vxpose.xlu0.b32.cont [15/16] %v1256, 128
  %1373 = vxpose.xlu0.b32.end [16/16] %v1257, 128
  %v1374 = vpop.trf.xlu0
  %v1375 = vpop.trf.xlu0
  %v1376 = vpop.trf.xlu0
  %v1377 = vpop.trf.xlu0
  %v1378 = vpop.trf.xlu0
  %v1379 = vpop.trf.xlu0
  %v1380 = vpop.trf.xlu0
  %v1381 = vpop.trf.xlu0
  %v1382 = vpop.trf.xlu0
  %v1383 = vpop.trf.xlu0
  %v1384 = vpop.trf.xlu0
  %v1385 = vpop.trf.xlu0
  %v1386 = vpop.trf.xlu0
  %v1387 = vpop.trf.xlu0
  %v1388 = vpop.trf.xlu0
  %v1389 = vpop.trf.xlu0
  %1390 = vxpose.xlu0.b32.start [1/16] %v234, 128
  %1391 = vxpose.xlu0.b32.cont [2/16] %v236, 128
  %1392 = vxpose.xlu0.b32.cont [3/16] %v238, 128
  %1393 = vxpose.xlu0.b32.cont [4/16] %v240, 128
  %1394 = vxpose.xlu0.b32.cont [5/16] %v242, 128
  %1395 = vxpose.xlu0.b32.cont [6/16] %v244, 128
  %1396 = vxpose.xlu0.b32.cont [7/16] %v246, 128
  %1397 = vxpose.xlu0.b32.cont [8/16] %v248, 128
  %1398 = vxpose.xlu0.b32.cont [9/16] %v250, 128
  %1399 = vxpose.xlu0.b32.cont [10/16] %v252, 128
  %1400 = vxpose.xlu0.b32.cont [11/16] %v254, 128
  %1401 = vxpose.xlu0.b32.cont [12/16] %v256, 128
  %1402 = vxpose.xlu0.b32.cont [13/16] %v258, 128
  %1403 = vxpose.xlu0.b32.cont [14/16] %v260, 128
  %1404 = vxpose.xlu0.b32.cont [15/16] %v262, 128
  %1405 = vxpose.xlu0.b32.end [16/16] %v264, 128
  %v1406 = vpop.trf.xlu0
  %v1407 = vpop.trf.xlu0
  %v1408 = vpop.trf.xlu0
  %v1409 = vpop.trf.xlu0
  %v1410 = vpop.trf.xlu0
  %v1411 = vpop.trf.xlu0
  %v1412 = vpop.trf.xlu0
  %v1413 = vpop.trf.xlu0
  %v1414 = vpop.trf.xlu0
  %v1415 = vpop.trf.xlu0
  %v1416 = vpop.trf.xlu0
  %v1417 = vpop.trf.xlu0
  %v1418 = vpop.trf.xlu0
  %v1419 = vpop.trf.xlu0
  %v1420 = vpop.trf.xlu0
  %v1421 = vpop.trf.xlu0
  %1422 = vxpose.xlu0.b32.start [1/16] %v266, 128
  %1423 = vxpose.xlu0.b32.cont [2/16] %v268, 128
  %1424 = vxpose.xlu0.b32.cont [3/16] %v270, 128
  %1425 = vxpose.xlu0.b32.cont [4/16] %v272, 128
  %1426 = vxpose.xlu0.b32.cont [5/16] %v274, 128
  %1427 = vxpose.xlu0.b32.cont [6/16] %v276, 128
  %1428 = vxpose.xlu0.b32.cont [7/16] %v278, 128
  %1429 = vxpose.xlu0.b32.cont [8/16] %v280, 128
  %1430 = vxpose.xlu0.b32.cont [9/16] %v282, 128
  %1431 = vxpose.xlu0.b32.cont [10/16] %v284, 128
  %1432 = vxpose.xlu0.b32.cont [11/16] %v286, 128
  %1433 = vxpose.xlu0.b32.cont [12/16] %v288, 128
  %1434 = vxpose.xlu0.b32.cont [13/16] %v983, 128
  %1435 = vxpose.xlu0.b32.cont [14/16] %v985, 128
  %1436 = vxpose.xlu0.b32.cont [15/16] %v228, 128
  %1437 = vxpose.xlu0.b32.end [16/16] %v228, 128
  %v1438 = vpop.trf.xlu0
  %v1439 = vpop.trf.xlu0
  %v1440 = vpop.trf.xlu0
  %v1441 = vpop.trf.xlu0
  %v1442 = vpop.trf.xlu0
  %v1443 = vpop.trf.xlu0
  %v1444 = vpop.trf.xlu0
  %v1445 = vpop.trf.xlu0
  %v1446 = vpop.trf.xlu0
  %v1447 = vpop.trf.xlu0
  %v1448 = vpop.trf.xlu0
  %v1449 = vpop.trf.xlu0
  %v1450 = vpop.trf.xlu0
  %v1451 = vpop.trf.xlu0
  %v1452 = vpop.trf.xlu0
  %v1453 = vpop.trf.xlu0
  %1454 = vxpose.xlu0.b32.start [1/16] %v294, 128
  %1455 = vxpose.xlu0.b32.cont [2/16] %v296, 128
  %1456 = vxpose.xlu0.b32.cont [3/16] %v298, 128
  %1457 = vxpose.xlu0.b32.cont [4/16] %v300, 128
  %1458 = vxpose.xlu0.b32.cont [5/16] %v302, 128
  %1459 = vxpose.xlu0.b32.cont [6/16] %v304, 128
  %1460 = vxpose.xlu0.b32.cont [7/16] %v306, 128
  %1461 = vxpose.xlu0.b32.cont [8/16] %v308, 128
  %1462 = vxpose.xlu0.b32.cont [9/16] %v310, 128
  %1463 = vxpose.xlu0.b32.cont [10/16] %v312, 128
  %1464 = vxpose.xlu0.b32.cont [11/16] %v314, 128
  %1465 = vxpose.xlu0.b32.cont [12/16] %v316, 128
  %1466 = vxpose.xlu0.b32.cont [13/16] %v318, 128
  %1467 = vxpose.xlu0.b32.cont [14/16] %v320, 128
  %1468 = vxpose.xlu0.b32.cont [15/16] %v322, 128
  %1469 = vxpose.xlu0.b32.end [16/16] %v324, 128
  %v1470 = vpop.trf.xlu0
  %v1471 = vpop.trf.xlu0
  %v1472 = vpop.trf.xlu0
  %v1473 = vpop.trf.xlu0
  %v1474 = vpop.trf.xlu0
  %v1475 = vpop.trf.xlu0
  %v1476 = vpop.trf.xlu0
  %v1477 = vpop.trf.xlu0
  %v1478 = vpop.trf.xlu0
  %v1479 = vpop.trf.xlu0
  %v1480 = vpop.trf.xlu0
  %v1481 = vpop.trf.xlu0
  %v1482 = vpop.trf.xlu0
  %v1483 = vpop.trf.xlu0
  %v1484 = vpop.trf.xlu0
  %v1485 = vpop.trf.xlu0
  %1486 = vxpose.xlu0.b32.start [1/16] %v326, 128
  %1487 = vxpose.xlu0.b32.cont [2/16] %v328, 128
  %1488 = vxpose.xlu0.b32.cont [3/16] %v330, 128
  %1489 = vxpose.xlu0.b32.cont [4/16] %v332, 128
  %1490 = vxpose.xlu0.b32.cont [5/16] %v334, 128
  %1491 = vxpose.xlu0.b32.cont [6/16] %v336, 128
  %1492 = vxpose.xlu0.b32.cont [7/16] %v338, 128
  %1493 = vxpose.xlu0.b32.cont [8/16] %v340, 128
  %1494 = vxpose.xlu0.b32.cont [9/16] %v342, 128
  %1495 = vxpose.xlu0.b32.cont [10/16] %v344, 128
  %1496 = vxpose.xlu0.b32.cont [11/16] %v346, 128
  %1497 = vxpose.xlu0.b32.cont [12/16] %v348, 128
  %1498 = vxpose.xlu0.b32.cont [13/16] %v987, 128
  %1499 = vxpose.xlu0.b32.cont [14/16] %v989, 128
  %1500 = vxpose.xlu0.b32.cont [15/16] %v228, 128
  %1501 = vxpose.xlu0.b32.end [16/16] %v228, 128
  %v1502 = vpop.trf.xlu0
  %v1503 = vpop.trf.xlu0
  %v1504 = vpop.trf.xlu0
  %v1505 = vpop.trf.xlu0
  %v1506 = vpop.trf.xlu0
  %v1507 = vpop.trf.xlu0
  %v1508 = vpop.trf.xlu0
  %v1509 = vpop.trf.xlu0
  %v1510 = vpop.trf.xlu0
  %v1511 = vpop.trf.xlu0
  %v1512 = vpop.trf.xlu0
  %v1513 = vpop.trf.xlu0
  %v1514 = vpop.trf.xlu0
  %v1515 = vpop.trf.xlu0
  %v1516 = vpop.trf.xlu0
  %v1517 = vpop.trf.xlu0
  %1518 = vxpose.xlu0.b32.start [1/16] %v55, 128
  %1519 = vxpose.xlu0.b32.cont [2/16] %v56, 128
  %1520 = vxpose.xlu0.b32.cont [3/16] %v57, 128
  %1521 = vxpose.xlu0.b32.cont [4/16] %v58, 128
  %1522 = vxpose.xlu0.b32.cont [5/16] %v59, 128
  %1523 = vxpose.xlu0.b32.cont [6/16] %v60, 128
  %1524 = vxpose.xlu0.b32.cont [7/16] %v61, 128
  %1525 = vxpose.xlu0.b32.cont [8/16] %v62, 128
  %1526 = vxpose.xlu0.b32.cont [9/16] %v63, 128
  %1527 = vxpose.xlu0.b32.cont [10/16] %v64, 128
  %1528 = vxpose.xlu0.b32.cont [11/16] %v65, 128
  %1529 = vxpose.xlu0.b32.cont [12/16] %v66, 128
  %1530 = vxpose.xlu0.b32.cont [13/16] %v67, 128
  %1531 = vxpose.xlu0.b32.cont [14/16] %v68, 128
  %1532 = vxpose.xlu0.b32.cont [15/16] %v85, 128
  %1533 = vxpose.xlu0.b32.end [16/16] %v86, 128
  %v1534 = vpop.trf.xlu0
  %v1535 = vpop.trf.xlu0
  %v1536 = vpop.trf.xlu0
  %v1537 = vpop.trf.xlu0
  %v1538 = vpop.trf.xlu0
  %v1539 = vpop.trf.xlu0
  %v1540 = vpop.trf.xlu0
  %v1541 = vpop.trf.xlu0
  %v1542 = vpop.trf.xlu0
  %v1543 = vpop.trf.xlu0
  %v1544 = vpop.trf.xlu0
  %v1545 = vpop.trf.xlu0
  %v1546 = vpop.trf.xlu0
  %v1547 = vpop.trf.xlu0
  %v1548 = vpop.trf.xlu0
  %v1549 = vpop.trf.xlu0
  %1550 = vxpose.xlu0.b32.start [1/16] %v87, 128
  %1551 = vxpose.xlu0.b32.cont [2/16] %v88, 128
  %1552 = vxpose.xlu0.b32.cont [3/16] %v89, 128
  %1553 = vxpose.xlu0.b32.cont [4/16] %v90, 128
  %1554 = vxpose.xlu0.b32.cont [5/16] %v91, 128
  %1555 = vxpose.xlu0.b32.cont [6/16] %v92, 128
  %1556 = vxpose.xlu0.b32.cont [7/16] %v93, 128
  %1557 = vxpose.xlu0.b32.cont [8/16] %v94, 128
  %1558 = vxpose.xlu0.b32.cont [9/16] %v95, 128
  %1559 = vxpose.xlu0.b32.cont [10/16] %v96, 128
  %1560 = vxpose.xlu0.b32.cont [11/16] %v97, 128
  %1561 = vxpose.xlu0.b32.cont [12/16] %v98, 128
  %1562 = vxpose.xlu0.b32.cont [13/16] %v99, 128
  %1563 = vxpose.xlu0.b32.cont [14/16] %v100, 128
  %1564 = vxpose.xlu0.b32.cont [15/16] 0.0, 128
  %1565 = vxpose.xlu0.b32.end [16/16] 0.0, 128
  %v1566 = vpop.trf.xlu0
  %v1567 = vpop.trf.xlu0
  %v1568 = vpop.trf.xlu0
  %v1569 = vpop.trf.xlu0
  %v1570 = vpop.trf.xlu0
  %v1571 = vpop.trf.xlu0
  %v1572 = vpop.trf.xlu0
  %v1573 = vpop.trf.xlu0
  %v1574 = vpop.trf.xlu0
  %v1575 = vpop.trf.xlu0
  %v1576 = vpop.trf.xlu0
  %v1577 = vpop.trf.xlu0
  %v1578 = vpop.trf.xlu0
  %v1579 = vpop.trf.xlu0
  %v1580 = vpop.trf.xlu0
  %v1581 = vpop.trf.xlu0
  %1582 = vxpose.xlu0.b32.start [1/16] %v119, 128
  %1583 = vxpose.xlu0.b32.cont [2/16] %v120, 128
  %1584 = vxpose.xlu0.b32.cont [3/16] %v121, 128
  %1585 = vxpose.xlu0.b32.cont [4/16] %v122, 128
  %1586 = vxpose.xlu0.b32.cont [5/16] %v123, 128
  %1587 = vxpose.xlu0.b32.cont [6/16] %v124, 128
  %1588 = vxpose.xlu0.b32.cont [7/16] %v125, 128
  %1589 = vxpose.xlu0.b32.cont [8/16] %v126, 128
  %1590 = vxpose.xlu0.b32.cont [9/16] %v127, 128
  %1591 = vxpose.xlu0.b32.cont [10/16] %v128, 128
  %1592 = vxpose.xlu0.b32.cont [11/16] %v129, 128
  %1593 = vxpose.xlu0.b32.cont [12/16] %v130, 128
  %1594 = vxpose.xlu0.b32.cont [13/16] %v131, 128
  %1595 = vxpose.xlu0.b32.cont [14/16] %v132, 128
  %1596 = vxpose.xlu0.b32.cont [15/16] %v149, 128
  %1597 = vxpose.xlu0.b32.end [16/16] %v150, 128
  %v1598 = vpop.trf.xlu0
  %v1599 = vpop.trf.xlu0
  %v1600 = vpop.trf.xlu0
  %v1601 = vpop.trf.xlu0
  %v1602 = vpop.trf.xlu0
  %v1603 = vpop.trf.xlu0
  %v1604 = vpop.trf.xlu0
  %v1605 = vpop.trf.xlu0
  %v1606 = vpop.trf.xlu0
  %v1607 = vpop.trf.xlu0
  %v1608 = vpop.trf.xlu0
  %v1609 = vpop.trf.xlu0
  %v1610 = vpop.trf.xlu0
  %v1611 = vpop.trf.xlu0
  %v1612 = vpop.trf.xlu0
  %v1613 = vpop.trf.xlu0
  %1614 = vxpose.xlu0.b32.start [1/16] %v151, 128
  %1615 = vxpose.xlu0.b32.cont [2/16] %v152, 128
  %1616 = vxpose.xlu0.b32.cont [3/16] %v153, 128
  %1617 = vxpose.xlu0.b32.cont [4/16] %v154, 128
  %1618 = vxpose.xlu0.b32.cont [5/16] %v155, 128
  %1619 = vxpose.xlu0.b32.cont [6/16] %v156, 128
  %1620 = vxpose.xlu0.b32.cont [7/16] %v157, 128
  %1621 = vxpose.xlu0.b32.cont [8/16] %v158, 128
  %1622 = vxpose.xlu0.b32.cont [9/16] %v159, 128
  %1623 = vxpose.xlu0.b32.cont [10/16] %v160, 128
  %1624 = vxpose.xlu0.b32.cont [11/16] %v161, 128
  %1625 = vxpose.xlu0.b32.cont [12/16] %v162, 128
  %1626 = vxpose.xlu0.b32.cont [13/16] %v163, 128
  %1627 = vxpose.xlu0.b32.cont [14/16] %v164, 128
  %1628 = vxpose.xlu0.b32.cont [15/16] 0.0, 128
  %1629 = vxpose.xlu0.b32.end [16/16] 0.0, 128
  %v1630 = vpop.trf.xlu0
  %v1631 = vpop.trf.xlu0
  %v1632 = vpop.trf.xlu0
  %v1633 = vpop.trf.xlu0
  %v1634 = vpop.trf.xlu0
  %v1635 = vpop.trf.xlu0
  %v1636 = vpop.trf.xlu0
  %v1637 = vpop.trf.xlu0
  %v1638 = vpop.trf.xlu0
  %v1639 = vpop.trf.xlu0
  %v1640 = vpop.trf.xlu0
  %v1641 = vpop.trf.xlu0
  %v1642 = vpop.trf.xlu0
  %v1643 = vpop.trf.xlu0
  %v1644 = vpop.trf.xlu0
  %v1645 = vpop.trf.xlu0
  %1646 = vxpose.xlu0.b32.start [1/16] %v675, 128
  %1647 = vxpose.xlu0.b32.cont [2/16] %v676, 128
  %1648 = vxpose.xlu0.b32.cont [3/16] %v679, 128
  %1649 = vxpose.xlu0.b32.cont [4/16] %v680, 128
  %1650 = vxpose.xlu0.b32.cont [5/16] %v683, 128
  %1651 = vxpose.xlu0.b32.cont [6/16] %v684, 128
  %1652 = vxpose.xlu0.b32.cont [7/16] %v687, 128
  %1653 = vxpose.xlu0.b32.cont [8/16] %v688, 128
  %1654 = vxpose.xlu0.b32.cont [9/16] %v691, 128
  %1655 = vxpose.xlu0.b32.cont [10/16] %v692, 128
  %1656 = vxpose.xlu0.b32.cont [11/16] %v695, 128
  %1657 = vxpose.xlu0.b32.cont [12/16] %v696, 128
  %1658 = vxpose.xlu0.b32.cont [13/16] %v699, 128
  %1659 = vxpose.xlu0.b32.cont [14/16] %v700, 128
  %1660 = vxpose.xlu0.b32.cont [15/16] %v703, 128
  %1661 = vxpose.xlu0.b32.end [16/16] %v704, 128
  %v1662 = vpop.trf.xlu0
  %v1663 = vpop.trf.xlu0
  %v1664 = vpop.trf.xlu0
  %v1665 = vpop.trf.xlu0
  %v1666 = vpop.trf.xlu0
  %v1667 = vpop.trf.xlu0
  %v1668 = vpop.trf.xlu0
  %v1669 = vpop.trf.xlu0
  %v1670 = vpop.trf.xlu0
  %v1671 = vpop.trf.xlu0
  %v1672 = vpop.trf.xlu0
  %v1673 = vpop.trf.xlu0
  %v1674 = vpop.trf.xlu0
  %v1675 = vpop.trf.xlu0
  %v1676 = vpop.trf.xlu0
  %v1677 = vpop.trf.xlu0
  %1678 = vxpose.xlu0.b32.start [1/16] %v707, 128
  %1679 = vxpose.xlu0.b32.cont [2/16] %v708, 128
  %1680 = vxpose.xlu0.b32.cont [3/16] %v711, 128
  %1681 = vxpose.xlu0.b32.cont [4/16] %v712, 128
  %1682 = vxpose.xlu0.b32.cont [5/16] %v715, 128
  %1683 = vxpose.xlu0.b32.cont [6/16] %v716, 128
  %1684 = vxpose.xlu0.b32.cont [7/16] %v719, 128
  %1685 = vxpose.xlu0.b32.cont [8/16] %v720, 128
  %1686 = vxpose.xlu0.b32.cont [9/16] %v723, 128
  %1687 = vxpose.xlu0.b32.cont [10/16] %v724, 128
  %1688 = vxpose.xlu0.b32.cont [11/16] %v727, 128
  %1689 = vxpose.xlu0.b32.cont [12/16] %v728, 128
  %1690 = vxpose.xlu0.b32.cont [13/16] %v1252, 128
  %1691 = vxpose.xlu0.b32.cont [14/16] %v1253, 128
  %1692 = vxpose.xlu0.b32.cont [15/16] %v668, 128
  %1693 = vxpose.xlu0.b32.end [16/16] %v668, 128
  %v1694 = vpop.trf.xlu0
  %v1695 = vpop.trf.xlu0
  %v1696 = vpop.trf.xlu0
  %v1697 = vpop.trf.xlu0
  %v1698 = vpop.trf.xlu0
  %v1699 = vpop.trf.xlu0
  %v1700 = vpop.trf.xlu0
  %v1701 = vpop.trf.xlu0
  %v1702 = vpop.trf.xlu0
  %v1703 = vpop.trf.xlu0
  %v1704 = vpop.trf.xlu0
  %v1705 = vpop.trf.xlu0
  %v1706 = vpop.trf.xlu0
  %v1707 = vpop.trf.xlu0
  %v1708 = vpop.trf.xlu0
  %v1709 = vpop.trf.xlu0
  %1710 = vxpose.xlu0.b32.start [1/16] %v735, 128
  %1711 = vxpose.xlu0.b32.cont [2/16] %v736, 128
  %1712 = vxpose.xlu0.b32.cont [3/16] %v739, 128
  %1713 = vxpose.xlu0.b32.cont [4/16] %v740, 128
  %1714 = vxpose.xlu0.b32.cont [5/16] %v743, 128
  %1715 = vxpose.xlu0.b32.cont [6/16] %v744, 128
  %1716 = vxpose.xlu0.b32.cont [7/16] %v747, 128
  %1717 = vxpose.xlu0.b32.cont [8/16] %v748, 128
  %1718 = vxpose.xlu0.b32.cont [9/16] %v751, 128
  %1719 = vxpose.xlu0.b32.cont [10/16] %v752, 128
  %1720 = vxpose.xlu0.b32.cont [11/16] %v755, 128
  %1721 = vxpose.xlu0.b32.cont [12/16] %v756, 128
  %1722 = vxpose.xlu0.b32.cont [13/16] %v759, 128
  %1723 = vxpose.xlu0.b32.cont [14/16] %v760, 128
  %1724 = vxpose.xlu0.b32.cont [15/16] %v763, 128
  %1725 = vxpose.xlu0.b32.end [16/16] %v764, 128
  %v1726 = vpop.trf.xlu0
  %v1727 = vpop.trf.xlu0
  %v1728 = vpop.trf.xlu0
  %v1729 = vpop.trf.xlu0
  %v1730 = vpop.trf.xlu0
  %v1731 = vpop.trf.xlu0
  %v1732 = vpop.trf.xlu0
  %v1733 = vpop.trf.xlu0
  %v1734 = vpop.trf.xlu0
  %v1735 = vpop.trf.xlu0
  %v1736 = vpop.trf.xlu0
  %v1737 = vpop.trf.xlu0
  %v1738 = vpop.trf.xlu0
  %v1739 = vpop.trf.xlu0
  %v1740 = vpop.trf.xlu0
  %v1741 = vpop.trf.xlu0
  %1742 = vxpose.xlu0.b32.start [1/16] %v767, 128
  %1743 = vxpose.xlu0.b32.cont [2/16] %v768, 128
  %1744 = vxpose.xlu0.b32.cont [3/16] %v771, 128
  %1745 = vxpose.xlu0.b32.cont [4/16] %v772, 128
  %1746 = vxpose.xlu0.b32.cont [5/16] %v775, 128
  %1747 = vxpose.xlu0.b32.cont [6/16] %v776, 128
  %1748 = vxpose.xlu0.b32.cont [7/16] %v779, 128
  %1749 = vxpose.xlu0.b32.cont [8/16] %v780, 128
  %1750 = vxpose.xlu0.b32.cont [9/16] %v783, 128
  %1751 = vxpose.xlu0.b32.cont [10/16] %v784, 128
  %1752 = vxpose.xlu0.b32.cont [11/16] %v787, 128
  %1753 = vxpose.xlu0.b32.cont [12/16] %v788, 128
  %1754 = vxpose.xlu0.b32.cont [13/16] %v1256, 128
  %1755 = vxpose.xlu0.b32.cont [14/16] %v1257, 128
  %1756 = vxpose.xlu0.b32.cont [15/16] %v668, 128
  %1757 = vxpose.xlu0.b32.end [16/16] %v668, 128
  %v1758 = vpop.trf.xlu0
  %v1759 = vpop.trf.xlu0
  %v1760 = vpop.trf.xlu0
  %v1761 = vpop.trf.xlu0
  %v1762 = vpop.trf.xlu0
  %v1763 = vpop.trf.xlu0
  %v1764 = vpop.trf.xlu0
  %v1765 = vpop.trf.xlu0
  %v1766 = vpop.trf.xlu0
  %v1767 = vpop.trf.xlu0
  %v1768 = vpop.trf.xlu0
  %v1769 = vpop.trf.xlu0
  %v1770 = vpop.trf.xlu0
  %v1771 = vpop.trf.xlu0
  %v1772 = vpop.trf.xlu0
  %v1773 = vpop.trf.xlu0
  %v1774 = vld [vmem:[%s1] sm:$0xff]
  %v1775 = vld [vmem:[%s2] sm:$0xff]
  %1777 = vset.pattern.permute.xlu0 0
  %1778 = vperm.xlu0 %1777, %v1775
  %v1779 = vpop.permute.xlu0 %1778
  %vm1781 = vcmask 588800
  %v1783 = vsel %vm1781, %v1774, 0
  %1785 = vmatprep.subr.mxu0 %v458
  %1786 = vmatpush1.msra.mxu0 %v426
  %1787 = vmatprep.subr.mxu0 %v586
  %1788 = vmatpush1.msra.mxu0 %v554
  %1789 = vmatprep.subr.mxu0 %v898
  %1790 = vmatpush1.msra.mxu0 %v866
  %1791 = vmatprep.subr.mxu0 %v1042
  %1792 = vmatpush1.msra.mxu0 %v1010
  %1793 = vmatprep.subr.mxu0 %v1170
  %1794 = vmatpush1.msra.mxu0 %v1138
  %1795 = vmatprep.subr.mxu0 %v1310
  %1796 = vmatpush1.msra.mxu0 %v1278
  %1797 = vmatprep.subr.mxu0 %v1438
  %1798 = vmatpush1.msra.mxu0 %v1406
  %1799 = vmatprep.subr.mxu0 %v1566
  %1800 = vmatpush1.msra.mxu0 %v1534
  %1801 = vmatprep.subr.mxu0 %v1694
  %1802 = vmatpush1.msra.mxu0 %v1662
  %1803 = vmatprep.subr.mxu0 0.0
  %1804 = vmatpush1.msra.mxu0 0.0
  %1805 = vmatprep.subr.mxu0 0.0
  %1806 = vmatpush1.msra.mxu0 0.0
  %1807 = vmatprep.subr.mxu0 0.0
  %1808 = vmatpush1.msra.mxu0 0.0
  %1809 = vmatprep.subr.mxu0 0.0
  %1810 = vmatpush1.msra.mxu0 0.0
  %1811 = vmatprep.subr.mxu0 0.0
  %1812 = vmatpush1.msra.mxu0 0.0
  %1813 = vmatprep.subr.mxu0 0.0
  %1814 = vmatpush1.msra.mxu0 0.0
  %1815 = vmatprep.subr.mxu0 0.0
  %1816 = vmatpush1.msra.mxu0 0.0
  %1817 = vmatprep.subr.mxu0 0.0
  %1818 = vmatpush1.msra.mxu0 0.0
  %1819 = vmatprep.subr.mxu0 0.0
  %1820 = vmatpush1.msra.mxu0 0.0
  %1821 = vmatprep.subr.mxu0 0.0
  %1822 = vmatpush1.msra.mxu0 0.0
  %1823 = vmatprep.subr.mxu0 0.0
  %1824 = vmatpush1.msra.mxu0 0.0
  %1825 = vmatprep.subr.mxu0 0.0
  %1826 = vmatpush1.msra.mxu0 0.0
  %1827 = vmatprep.subr.mxu0 0.0
  %1828 = vmatpush1.msra.mxu0 0.0
  %1829 = vmatprep.subr.mxu0 0.0
  %1830 = vmatpush1.msra.mxu0 0.0
  %1831 = vmatprep.subr.mxu0 0.0
  %1832 = vmatpush1.msra.mxu0 0.0
  %1833 = vmatprep.subr.mxu0 0.0
  %1834 = vmatpush1.msra.mxu0 0.0
  %1835 = vmatprep.subr.mxu0 0.0
  %1836 = vmatpush1.msra.mxu0 0.0
  %1837 = vmatprep.subr.mxu0 0.0
  %1838 = vmatpush1.msra.mxu0 0.0
  %1839 = vmatprep.subr.mxu0 0.0
  %1840 = vmatpush1.msra.mxu0 0.0
  %1841 = vmatprep.subr.mxu0 0.0
  %1842 = vmatpush1.msra.mxu0 0.0
  %1843 = vmatprep.subr.mxu0 0.0
  %1844 = vmatpush1.msra.mxu0 0.0
  %1845 = vmatprep.subr.mxu0 0.0
  %1846 = vmatpush1.msra.mxu0 0.0
  %1847 = vmatprep.subr.mxu0 0.0
  %1848 = vmatpush1.msra.mxu0 0.0
  %1849 = vmatprep.mubr.f32.mxu0 0.0
  %1850 = vmatmul.mubr.f32.gmra.mrb[0].mxu0 %v1783
  %v1851 = vpop.f32.mrb[0].mxu0
  %v1852 = vadd.f32 %v1779, %v1851
  %v1853 = vpop.f32.mrb[0].mxu0
  %v1854 = vadd.f32 %v1779, %v1853
  %1855 = vdwg.mxu0
  %1856 = vmatprep.subr.mxu0 %v522
  %1857 = vmatpush1.msra.mxu0 %v490
  %1858 = vmatprep.subr.mxu0 %v650
  %1859 = vmatpush1.msra.mxu0 %v618
  %1860 = vmatprep.subr.mxu0 %v962
  %1861 = vmatpush1.msra.mxu0 %v930
  %1862 = vmatprep.subr.mxu0 %v1106
  %1863 = vmatpush1.msra.mxu0 %v1074
  %1864 = vmatprep.subr.mxu0 %v1234
  %1865 = vmatpush1.msra.mxu0 %v1202
  %1866 = vmatprep.subr.mxu0 %v1374
  %1867 = vmatpush1.msra.mxu0 %v1342
  %1868 = vmatprep.subr.mxu0 %v1502
  %1869 = vmatpush1.msra.mxu0 %v1470
  %1870 = vmatprep.subr.mxu0 %v1630
  %1871 = vmatpush1.msra.mxu0 %v1598
  %1872 = vmatprep.subr.mxu0 %v1758
  %1873 = vmatpush1.msra.mxu0 %v1726
  %1874 = vmatprep.subr.mxu0 0.0
  %1875 = vmatpush1.msra.mxu0 0.0
  %1876 = vmatprep.subr.mxu0 0.0
  %1877 = vmatpush1.msra.mxu0 0.0
  %1878 = vmatprep.subr.mxu0 0.0
  %1879 = vmatpush1.msra.mxu0 0.0
  %1880 = vmatprep.subr.mxu0 0.0
  %1881 = vmatpush1.msra.mxu0 0.0
  %1882 = vmatprep.subr.mxu0 0.0
  %1883 = vmatpush1.msra.mxu0 0.0
  %1884 = vmatprep.subr.mxu0 0.0
  %1885 = vmatpush1.msra.mxu0 0.0
  %1886 = vmatprep.subr.mxu0 0.0
  %1887 = vmatpush1.msra.mxu0 0.0
  %1888 = vmatprep.subr.mxu0 0.0
  %1889 = vmatpush1.msra.mxu0 0.0
  %1890 = vmatprep.subr.mxu0 0.0
  %1891 = vmatpush1.msra.mxu0 0.0
  %1892 = vmatprep.subr.mxu0 0.0
  %1893 = vmatpush1.msra.mxu0 0.0
  %1894 = vmatprep.subr.mxu0 0.0
  %1895 = vmatpush1.msra.mxu0 0.0
  %1896 = vmatprep.subr.mxu0 0.0
  %1897 = vmatpush1.msra.mxu0 0.0
  %1898 = vmatprep.subr.mxu0 0.0
  %1899 = vmatpush1.msra.mxu0 0.0
  %1900 = vmatprep.subr.mxu0 0.0
  %1901 = vmatpush1.msra.mxu0 0.0
  %1902 = vmatprep.subr.mxu0 0.0
  %1903 = vmatpush1.msra.mxu0 0.0
  %1904 = vmatprep.subr.mxu0 0.0
  %1905 = vmatpush1.msra.mxu0 0.0
  %1906 = vmatprep.subr.mxu0 0.0
  %1907 = vmatpush1.msra.mxu0 0.0
  %1908 = vmatprep.subr.mxu0 0.0
  %1909 = vmatpush1.msra.mxu0 0.0
  %1910 = vmatprep.subr.mxu0 0.0
  %1911 = vmatpush1.msra.mxu0 0.0
  %1912 = vmatprep.subr.mxu0 0.0
  %1913 = vmatpush1.msra.mxu0 0.0
  %1914 = vmatprep.subr.mxu0 0.0
  %1915 = vmatpush1.msra.mxu0 0.0
  %1916 = vmatprep.subr.mxu0 0.0
  %1917 = vmatpush1.msra.mxu0 0.0
  %1918 = vmatprep.subr.mxu0 0.0
  %1919 = vmatpush1.msra.mxu0 0.0
  %1920 = vmatprep.mubr.f32.mxu0 0.0
  %1921 = vmatmul.mubr.f32.gmra.mrb[0].mxu0 %v1783
  %v1922 = vpop.f32.mrb[0].mxu0
  %v1923 = vadd.f32 %v1779, %v1922
  %v1924 = vpop.f32.mrb[0].mxu0
  %v1925 = vadd.f32 %v1779, %v1924
  %1926 = vdwg.mxu0
  %v1927 = vadd.f32 %v1852, %v1854
  %v1928 = vadd.f32 %v1927, %v1923
  %v1929 = vadd.f32 %v1928, %v1925
  %1930 = vadd.xlane.f32.xlu0 %v1929
  %v1931 = vpop.xlane.xlu0 %1930
  %v1932 = vrcp.pop 512.0
  %v1933 = vmul.f32 %v1931, %v1932
  %v1934 = vsub.f32 %v1852, %v1933
  %v1935 = vsub.f32 %v1854, %v1933
  %v1936 = vsub.f32 %v1923, %v1933
  %v1937 = vsub.f32 %v1925, %v1933
  %v1938 = vmul.f32 %v1934, %v1934
  %v1939 = vmul.f32 %v1935, %v1935
  %v1940 = vmul.f32 %v1936, %v1936
  %v1941 = vmul.f32 %v1937, %v1937
  %v1942 = vadd.f32 %v1938, %v1939
  %v1943 = vadd.f32 %v1942, %v1940
  %v1944 = vadd.f32 %v1943, %v1941
  %1945 = vadd.xlane.f32.xlu0 %v1944
  %v1946 = vpop.xlane.xlu0 %1945
  %v1947 = vmul.f32 %v1946, %v1932
  %v1948 = vadd.f32 %v1947, 1e-05
  %v1949 = vrsqrt.pop %v1948
  %v1950 = vmul.f32 %v1934, %v1949
  %v1951 = vmul.f32 %v1935, %v1949
  %v1952 = vmul.f32 %v1936, %v1949
  %v1953 = vmul.f32 %v1937, %v1949
  %v1954 = vld [vmem:[%s3] sm:$0xff]
  %1956 = vset.pattern.permute.xlu0 0
  %1957 = vperm.xlu0 %1956, %v1954
  %v1958 = vpop.permute.xlu0 %1957
  %v1960 = vmul.f32 %v1950, %v1958
  %v1961 = vmul.f32 %v1951, %v1958
  %v1962 = vmul.f32 %v1952, %v1958
  %v1963 = vmul.f32 %v1953, %v1958
  %v1964 = vld [vmem:[%s4] sm:$0xff]
  %1966 = vset.pattern.permute.xlu0 0
  %1967 = vperm.xlu0 %1966, %v1964
  %v1968 = vpop.permute.xlu0 %1967
  %v1970 = vadd.f32 %v1960, %v1968
  %v1971 = vadd.f32 %v1961, %v1968
  %v1972 = vadd.f32 %v1962, %v1968
  %v1973 = vadd.f32 %v1963, %v1968
  %v1974 = vmax.f32 %v1970, 0.0
  %v1975 = vmax.f32 %v1971, 0.0
  %v1976 = vmax.f32 %v1972, 0.0
  %v1977 = vmax.f32 %v1973, 0.0
  %1978 = vxpose.xlu0.b32.start [1/16] %v1974, 128
  %1979 = vxpose.xlu0.b32.cont [2/16] 0.0, 128
  %1980 = vxpose.xlu0.b32.cont [3/16] 0.0, 128
  %1981 = vxpose.xlu0.b32.cont [4/16] 0.0, 128
  %1982 = vxpose.xlu0.b32.cont [5/16] 0.0, 128
  %1983 = vxpose.xlu0.b32.cont [6/16] 0.0, 128
  %1984 = vxpose.xlu0.b32.cont [7/16] 0.0, 128
  %1985 = vxpose.xlu0.b32.cont [8/16] 0.0, 128
  %1986 = vxpose.xlu0.b32.cont [9/16] 0.0, 128
  %1987 = vxpose.xlu0.b32.cont [10/16] 0.0, 128
  %1988 = vxpose.xlu0.b32.cont [11/16] 0.0, 128
  %1989 = vxpose.xlu0.b32.cont [12/16] 0.0, 128
  %1990 = vxpose.xlu0.b32.cont [13/16] 0.0, 128
  %1991 = vxpose.xlu0.b32.cont [14/16] 0.0, 128
  %1992 = vxpose.xlu0.b32.cont [15/16] 0.0, 128
  %1993 = vxpose.xlu0.b32.end [16/16] 0.0, 128
  %v1994 = vpop.trf.xlu0
  %v1995 = vpop.trf.xlu0
  %v1996 = vpop.trf.xlu0
  %v1997 = vpop.trf.xlu0
  %v1998 = vpop.trf.xlu0
  %v1999 = vpop.trf.xlu0
  %v2000 = vpop.trf.xlu0
  %v2001 = vpop.trf.xlu0
  %v2002 = vpop.trf.xlu0
  %v2003 = vpop.trf.xlu0
  %v2004 = vpop.trf.xlu0
  %v2005 = vpop.trf.xlu0
  %v2006 = vpop.trf.xlu0
  %v2007 = vpop.trf.xlu0
  %v2008 = vpop.trf.xlu0
  %v2009 = vpop.trf.xlu0
  %2010 = vxpose.xlu0.b32.start [1/16] %v1975, 128
  %2011 = vxpose.xlu0.b32.cont [2/16] 0.0, 128
  %2012 = vxpose.xlu0.b32.cont [3/16] 0.0, 128
  %2013 = vxpose.xlu0.b32.cont [4/16] 0.0, 128
  %2014 = vxpose.xlu0.b32.cont [5/16] 0.0, 128
  %2015 = vxpose.xlu0.b32.cont [6/16] 0.0, 128
  %2016 = vxpose.xlu0.b32.cont [7/16] 0.0, 128
  %2017 = vxpose.xlu0.b32.cont [8/16] 0.0, 128
  %2018 = vxpose.xlu0.b32.cont [9/16] 0.0, 128
  %2019 = vxpose.xlu0.b32.cont [10/16] 0.0, 128
  %2020 = vxpose.xlu0.b32.cont [11/16] 0.0, 128
  %2021 = vxpose.xlu0.b32.cont [12/16] 0.0, 128
  %2022 = vxpose.xlu0.b32.cont [13/16] 0.0, 128
  %2023 = vxpose.xlu0.b32.cont [14/16] 0.0, 128
  %2024 = vxpose.xlu0.b32.cont [15/16] 0.0, 128
  %2025 = vxpose.xlu0.b32.end [16/16] 0.0, 128
  %v2026 = vpop.trf.xlu0
  %v2027 = vpop.trf.xlu0
  %v2028 = vpop.trf.xlu0
  %v2029 = vpop.trf.xlu0
  %v2030 = vpop.trf.xlu0
  %v2031 = vpop.trf.xlu0
  %v2032 = vpop.trf.xlu0
  %v2033 = vpop.trf.xlu0
  %v2034 = vpop.trf.xlu0
  %v2035 = vpop.trf.xlu0
  %v2036 = vpop.trf.xlu0
  %v2037 = vpop.trf.xlu0
  %v2038 = vpop.trf.xlu0
  %v2039 = vpop.trf.xlu0
  %v2040 = vpop.trf.xlu0
  %v2041 = vpop.trf.xlu0
  %2042 = vxpose.xlu0.b32.start [1/16] %v1976, 128
  %2043 = vxpose.xlu0.b32.cont [2/16] 0.0, 128
  %2044 = vxpose.xlu0.b32.cont [3/16] 0.0, 128
  %2045 = vxpose.xlu0.b32.cont [4/16] 0.0, 128
  %2046 = vxpose.xlu0.b32.cont [5/16] 0.0, 128
  %2047 = vxpose.xlu0.b32.cont [6/16] 0.0, 128
  %2048 = vxpose.xlu0.b32.cont [7/16] 0.0, 128
  %2049 = vxpose.xlu0.b32.cont [8/16] 0.0, 128
  %2050 = vxpose.xlu0.b32.cont [9/16] 0.0, 128
  %2051 = vxpose.xlu0.b32.cont [10/16] 0.0, 128
  %2052 = vxpose.xlu0.b32.cont [11/16] 0.0, 128
  %2053 = vxpose.xlu0.b32.cont [12/16] 0.0, 128
  %2054 = vxpose.xlu0.b32.cont [13/16] 0.0, 128
  %2055 = vxpose.xlu0.b32.cont [14/16] 0.0, 128
  %2056 = vxpose.xlu0.b32.cont [15/16] 0.0, 128
  %2057 = vxpose.xlu0.b32.end [16/16] 0.0, 128
  %v2058 = vpop.trf.xlu0
  %v2059 = vpop.trf.xlu0
  %v2060 = vpop.trf.xlu0
  %v2061 = vpop.trf.xlu0
  %v2062 = vpop.trf.xlu0
  %v2063 = vpop.trf.xlu0
  %v2064 = vpop.trf.xlu0
  %v2065 = vpop.trf.xlu0
  %v2066 = vpop.trf.xlu0
  %v2067 = vpop.trf.xlu0
  %v2068 = vpop.trf.xlu0
  %v2069 = vpop.trf.xlu0
  %v2070 = vpop.trf.xlu0
  %v2071 = vpop.trf.xlu0
  %v2072 = vpop.trf.xlu0
  %v2073 = vpop.trf.xlu0
  %2074 = vxpose.xlu0.b32.start [1/16] %v1977, 128
  %2075 = vxpose.xlu0.b32.cont [2/16] 0.0, 128
  %2076 = vxpose.xlu0.b32.cont [3/16] 0.0, 128
  %2077 = vxpose.xlu0.b32.cont [4/16] 0.0, 128
  %2078 = vxpose.xlu0.b32.cont [5/16] 0.0, 128
  %2079 = vxpose.xlu0.b32.cont [6/16] 0.0, 128
  %2080 = vxpose.xlu0.b32.cont [7/16] 0.0, 128
  %2081 = vxpose.xlu0.b32.cont [8/16] 0.0, 128
  %2082 = vxpose.xlu0.b32.cont [9/16] 0.0, 128
  %2083 = vxpose.xlu0.b32.cont [10/16] 0.0, 128
  %2084 = vxpose.xlu0.b32.cont [11/16] 0.0, 128
  %2085 = vxpose.xlu0.b32.cont [12/16] 0.0, 128
  %2086 = vxpose.xlu0.b32.cont [13/16] 0.0, 128
  %2087 = vxpose.xlu0.b32.cont [14/16] 0.0, 128
  %2088 = vxpose.xlu0.b32.cont [15/16] 0.0, 128
  %2089 = vxpose.xlu0.b32.end [16/16] 0.0, 128
  %v2090 = vpop.trf.xlu0
  %v2091 = vpop.trf.xlu0
  %v2092 = vpop.trf.xlu0
  %v2093 = vpop.trf.xlu0
  %v2094 = vpop.trf.xlu0
  %v2095 = vpop.trf.xlu0
  %v2096 = vpop.trf.xlu0
  %v2097 = vpop.trf.xlu0
  %v2098 = vpop.trf.xlu0
  %v2099 = vpop.trf.xlu0
  %v2100 = vpop.trf.xlu0
  %v2101 = vpop.trf.xlu0
  %v2102 = vpop.trf.xlu0
  %v2103 = vpop.trf.xlu0
  %v2104 = vpop.trf.xlu0
  %v2105 = vpop.trf.xlu0
  %v2166 = vrot.slane %v1994, 7
  %v2167 = vsel %vm226, %v227, %v2166
  %v2168 = vrot.slane %v1995, 7
  %v2169 = vsel %vm226, %v2166, %v2168
  %v2170 = vrot.slane %v1996, 7
  %v2171 = vsel %vm226, %v227, %v2170
  %v2172 = vrot.slane %v1997, 7
  %v2173 = vsel %vm226, %v2170, %v2172
  %v2174 = vrot.slane %v1998, 7
  %v2175 = vsel %vm226, %v227, %v2174
  %v2176 = vrot.slane %v1999, 7
  %v2177 = vsel %vm226, %v2174, %v2176
  %v2178 = vrot.slane %v2000, 7
  %v2179 = vsel %vm226, %v227, %v2178
  %v2180 = vrot.slane %v2001, 7
  %v2181 = vsel %vm226, %v2178, %v2180
  %v2182 = vrot.slane %v2002, 7
  %v2183 = vsel %vm226, %v227, %v2182
  %v2184 = vrot.slane %v2003, 7
  %v2185 = vsel %vm226, %v2182, %v2184
  %v2186 = vrot.slane %v2004, 7
  %v2187 = vsel %vm226, %v227, %v2186
  %v2188 = vrot.slane %v2005, 7
  %v2189 = vsel %vm226, %v2186, %v2188
  %v2190 = vrot.slane %v2006, 7
  %v2191 = vsel %vm226, %v227, %v2190
  %v2192 = vrot.slane %v2007, 7
  %v2193 = vsel %vm226, %v2190, %v2192
  %v2194 = vrot.slane %v2008, 7
  %v2195 = vsel %vm226, %v227, %v2194
  %v2196 = vrot.slane %v2009, 7
  %v2197 = vsel %vm226, %v2194, %v2196
  %v2198 = vrot.slane %v2026, 7
  %v2199 = vsel %vm226, %v227, %v2198
  %v2200 = vrot.slane %v2027, 7
  %v2201 = vsel %vm226, %v2198, %v2200
  %v2202 = vrot.slane %v2028, 7
  %v2203 = vsel %vm226, %v227, %v2202
  %v2204 = vrot.slane %v2029, 7
  %v2205 = vsel %vm226, %v2202, %v2204
  %v2206 = vrot.slane %v2030, 7
  %v2207 = vsel %vm226, %v227, %v2206
  %v2208 = vrot.slane %v2031, 7
  %v2209 = vsel %vm226, %v2206, %v2208
  %v2210 = vrot.slane %v2032, 7
  %v2211 = vsel %vm226, %v227, %v2210
  %v2212 = vrot.slane %v2033, 7
  %v2213 = vsel %vm226, %v2210, %v2212
  %v2214 = vrot.slane %v2034, 7
  %v2215 = vsel %vm226, %v227, %v2214
  %v2216 = vrot.slane %v2035, 7
  %v2217 = vsel %vm226, %v2214, %v2216
  %v2218 = vrot.slane %v2036, 7
  %v2219 = vsel %vm226, %v227, %v2218
  %v2220 = vrot.slane %v2037, 7
  %v2221 = vsel %vm226, %v2218, %v2220
  %v2222 = vrot.slane %v2038, 7
  %v2223 = vsel %vm226, %v227, %v2222
  %v2224 = vrot.slane %v2039, 7
  %v2225 = vsel %vm226, %v2222, %v2224
  %v2226 = vrot.slane %v2058, 7
  %v2227 = vsel %vm226, %v227, %v2226
  %v2228 = vrot.slane %v2059, 7
  %v2229 = vsel %vm226, %v2226, %v2228
  %v2230 = vrot.slane %v2060, 7
  %v2231 = vsel %vm226, %v227, %v2230
  %v2232 = vrot.slane %v2061, 7
  %v2233 = vsel %vm226, %v2230, %v2232
  %v2234 = vrot.slane %v2062, 7
  %v2235 = vsel %vm226, %v227, %v2234
  %v2236 = vrot.slane %v2063, 7
  %v2237 = vsel %vm226, %v2234, %v2236
  %v2238 = vrot.slane %v2064, 7
  %v2239 = vsel %vm226, %v227, %v2238
  %v2240 = vrot.slane %v2065, 7
  %v2241 = vsel %vm226, %v2238, %v2240
  %v2242 = vrot.slane %v2066, 7
  %v2243 = vsel %vm226, %v227, %v2242
  %v2244 = vrot.slane %v2067, 7
  %v2245 = vsel %vm226, %v2242, %v2244
  %v2246 = vrot.slane %v2068, 7
  %v2247 = vsel %vm226, %v227, %v2246
  %v2248 = vrot.slane %v2069, 7
  %v2249 = vsel %vm226, %v2246, %v2248
  %v2250 = vrot.slane %v2070, 7
  %v2251 = vsel %vm226, %v227, %v2250
  %v2252 = vrot.slane %v2071, 7
  %v2253 = vsel %vm226, %v2250, %v2252
  %v2254 = vrot.slane %v2072, 7
  %v2255 = vsel %vm226, %v227, %v2254
  %v2256 = vrot.slane %v2073, 7
  %v2257 = vsel %vm226, %v2254, %v2256
  %v2258 = vrot.slane %v2090, 7
  %v2259 = vsel %vm226, %v227, %v2258
  %v2260 = vrot.slane %v2091, 7
  %v2261 = vsel %vm226, %v2258, %v2260
  %v2262 = vrot.slane %v2092, 7
  %v2263 = vsel %vm226, %v227, %v2262
  %v2264 = vrot.slane %v2093, 7
  %v2265 = vsel %vm226, %v2262, %v2264
  %v2266 = vrot.slane %v2094, 7
  %v2267 = vsel %vm226, %v227, %v2266
  %v2268 = vrot.slane %v2095, 7
  %v2269 = vsel %vm226, %v2266, %v2268
  %v2270 = vrot.slane %v2096, 7
  %v2271 = vsel %vm226, %v227, %v2270
  %v2272 = vrot.slane %v2097, 7
  %v2273 = vsel %vm226, %v2270, %v2272
  %v2274 = vrot.slane %v2098, 7
  %v2275 = vsel %vm226, %v227, %v2274
  %v2276 = vrot.slane %v2099, 7
  %v2277 = vsel %vm226, %v2274, %v2276
  %v2278 = vrot.slane %v2100, 7
  %v2279 = vsel %vm226, %v227, %v2278
  %v2280 = vrot.slane %v2101, 7
  %v2281 = vsel %vm226, %v2278, %v2280
  %v2282 = vrot.slane %v2102, 7
  %v2283 = vsel %vm226, %v227, %v2282
  %v2284 = vrot.slane %v2103, 7
  %v2285 = vsel %vm226, %v2282, %v2284
  %2346 = vxpose.xlu0.b32.start [1/16] %v228, 128
  %2347 = vxpose.xlu0.b32.cont [2/16] %v228, 128
  %2348 = vxpose.xlu0.b32.cont [3/16] %v2167, 128
  %2349 = vxpose.xlu0.b32.cont [4/16] %v2169, 128
  %2350 = vxpose.xlu0.b32.cont [5/16] %v2171, 128
  %2351 = vxpose.xlu0.b32.cont [6/16] %v2173, 128
  %2352 = vxpose.xlu0.b32.cont [7/16] %v2175, 128
  %2353 = vxpose.xlu0.b32.cont [8/16] %v2177, 128
  %2354 = vxpose.xlu0.b32.cont [9/16] %v2179, 128
  %2355 = vxpose.xlu0.b32.cont [10/16] %v2181, 128
  %2356 = vxpose.xlu0.b32.cont [11/16] %v2183, 128
  %2357 = vxpose.xlu0.b32.cont [12/16] %v2185, 128
  %2358 = vxpose.xlu0.b32.cont [13/16] %v2187, 128
  %2359 = vxpose.xlu0.b32.cont [14/16] %v2189, 128
  %2360 = vxpose.xlu0.b32.cont [15/16] %v2191, 128
  %2361 = vxpose.xlu0.b32.end [16/16] %v2193, 128
  %v2362 = vpop.trf.xlu0
  %v2363 = vpop.trf.xlu0
  %v2364 = vpop.trf.xlu0
  %v2365 = vpop.trf.xlu0
  %v2366 = vpop.trf.xlu0
  %v2367 = vpop.trf.xlu0
  %v2368 = vpop.trf.xlu0
  %v2369 = vpop.trf.xlu0
  %v2370 = vpop.trf.xlu0
  %v2371 = vpop.trf.xlu0
  %v2372 = vpop.trf.xlu0
  %v2373 = vpop.trf.xlu0
  %v2374 = vpop.trf.xlu0
  %v2375 = vpop.trf.xlu0
  %v2376 = vpop.trf.xlu0
  %v2377 = vpop.trf.xlu0
  %2378 = vxpose.xlu0.b32.start [1/16] %v2195, 128
  %2379 = vxpose.xlu0.b32.cont [2/16] %v2197, 128
  %2380 = vxpose.xlu0.b32.cont [3/16] %v2199, 128
  %2381 = vxpose.xlu0.b32.cont [4/16] %v2201, 128
  %2382 = vxpose.xlu0.b32.cont [5/16] %v2203, 128
  %2383 = vxpose.xlu0.b32.cont [6/16] %v2205, 128
  %2384 = vxpose.xlu0.b32.cont [7/16] %v2207, 128
  %2385 = vxpose.xlu0.b32.cont [8/16] %v2209, 128
  %2386 = vxpose.xlu0.b32.cont [9/16] %v2211, 128
  %2387 = vxpose.xlu0.b32.cont [10/16] %v2213, 128
  %2388 = vxpose.xlu0.b32.cont [11/16] %v2215, 128
  %2389 = vxpose.xlu0.b32.cont [12/16] %v2217, 128
  %2390 = vxpose.xlu0.b32.cont [13/16] %v2219, 128
  %2391 = vxpose.xlu0.b32.cont [14/16] %v2221, 128
  %2392 = vxpose.xlu0.b32.cont [15/16] %v2223, 128
  %2393 = vxpose.xlu0.b32.end [16/16] %v2225, 128
  %v2394 = vpop.trf.xlu0
  %v2395 = vpop.trf.xlu0
  %v2396 = vpop.trf.xlu0
  %v2397 = vpop.trf.xlu0
  %v2398 = vpop.trf.xlu0
  %v2399 = vpop.trf.xlu0
  %v2400 = vpop.trf.xlu0
  %v2401 = vpop.trf.xlu0
  %v2402 = vpop.trf.xlu0
  %v2403 = vpop.trf.xlu0
  %v2404 = vpop.trf.xlu0
  %v2405 = vpop.trf.xlu0
  %v2406 = vpop.trf.xlu0
  %v2407 = vpop.trf.xlu0
  %v2408 = vpop.trf.xlu0
  %v2409 = vpop.trf.xlu0
  %2410 = vxpose.xlu0.b32.start [1/16] %v228, 128
  %2411 = vxpose.xlu0.b32.cont [2/16] %v228, 128
  %2412 = vxpose.xlu0.b32.cont [3/16] %v2227, 128
  %2413 = vxpose.xlu0.b32.cont [4/16] %v2229, 128
  %2414 = vxpose.xlu0.b32.cont [5/16] %v2231, 128
  %2415 = vxpose.xlu0.b32.cont [6/16] %v2233, 128
  %2416 = vxpose.xlu0.b32.cont [7/16] %v2235, 128
  %2417 = vxpose.xlu0.b32.cont [8/16] %v2237, 128
  %2418 = vxpose.xlu0.b32.cont [9/16] %v2239, 128
  %2419 = vxpose.xlu0.b32.cont [10/16] %v2241, 128
  %2420 = vxpose.xlu0.b32.cont [11/16] %v2243, 128
  %2421 = vxpose.xlu0.b32.cont [12/16] %v2245, 128
  %2422 = vxpose.xlu0.b32.cont [13/16] %v2247, 128
  %2423 = vxpose.xlu0.b32.cont [14/16] %v2249, 128
  %2424 = vxpose.xlu0.b32.cont [15/16] %v2251, 128
  %2425 = vxpose.xlu0.b32.end [16/16] %v2253, 128
  %v2426 = vpop.trf.xlu0
  %v2427 = vpop.trf.xlu0
  %v2428 = vpop.trf.xlu0
  %v2429 = vpop.trf.xlu0
  %v2430 = vpop.trf.xlu0
  %v2431 = vpop.trf.xlu0
  %v2432 = vpop.trf.xlu0
  %v2433 = vpop.trf.xlu0
  %v2434 = vpop.trf.xlu0
  %v2435 = vpop.trf.xlu0
  %v2436 = vpop.trf.xlu0
  %v2437 = vpop.trf.xlu0
  %v2438 = vpop.trf.xlu0
  %v2439 = vpop.trf.xlu0
  %v2440 = vpop.trf.xlu0
  %v2441 = vpop.trf.xlu0
  %2442 = vxpose.xlu0.b32.start [1/16] %v2255, 128
  %2443 = vxpose.xlu0.b32.cont [2/16] %v2257, 128
  %2444 = vxpose.xlu0.b32.cont [3/16] %v2259, 128
  %2445 = vxpose.xlu0.b32.cont [4/16] %v2261, 128
  %2446 = vxpose.xlu0.b32.cont [5/16] %v2263, 128
  %2447 = vxpose.xlu0.b32.cont [6/16] %v2265, 128
  %2448 = vxpose.xlu0.b32.cont [7/16] %v2267, 128
  %2449 = vxpose.xlu0.b32.cont [8/16] %v2269, 128
  %2450 = vxpose.xlu0.b32.cont [9/16] %v2271, 128
  %2451 = vxpose.xlu0.b32.cont [10/16] %v2273, 128
  %2452 = vxpose.xlu0.b32.cont [11/16] %v2275, 128
  %2453 = vxpose.xlu0.b32.cont [12/16] %v2277, 128
  %2454 = vxpose.xlu0.b32.cont [13/16] %v2279, 128
  %2455 = vxpose.xlu0.b32.cont [14/16] %v2281, 128
  %2456 = vxpose.xlu0.b32.cont [15/16] %v2283, 128
  %2457 = vxpose.xlu0.b32.end [16/16] %v2285, 128
  %v2458 = vpop.trf.xlu0
  %v2459 = vpop.trf.xlu0
  %v2460 = vpop.trf.xlu0
  %v2461 = vpop.trf.xlu0
  %v2462 = vpop.trf.xlu0
  %v2463 = vpop.trf.xlu0
  %v2464 = vpop.trf.xlu0
  %v2465 = vpop.trf.xlu0
  %v2466 = vpop.trf.xlu0
  %v2467 = vpop.trf.xlu0
  %v2468 = vpop.trf.xlu0
  %v2469 = vpop.trf.xlu0
  %v2470 = vpop.trf.xlu0
  %v2471 = vpop.trf.xlu0
  %v2472 = vpop.trf.xlu0
  %v2473 = vpop.trf.xlu0
  %2474 = vxpose.xlu0.b32.start [1/16] 0.0, 128
  %2475 = vxpose.xlu0.b32.cont [2/16] 0.0, 128
  %2476 = vxpose.xlu0.b32.cont [3/16] %v1994, 128
  %2477 = vxpose.xlu0.b32.cont [4/16] %v1995, 128
  %2478 = vxpose.xlu0.b32.cont [5/16] %v1996, 128
  %2479 = vxpose.xlu0.b32.cont [6/16] %v1997, 128
  %2480 = vxpose.xlu0.b32.cont [7/16] %v1998, 128
  %2481 = vxpose.xlu0.b32.cont [8/16] %v1999, 128
  %2482 = vxpose.xlu0.b32.cont [9/16] %v2000, 128
  %2483 = vxpose.xlu0.b32.cont [10/16] %v2001, 128
  %2484 = vxpose.xlu0.b32.cont [11/16] %v2002, 128
  %2485 = vxpose.xlu0.b32.cont [12/16] %v2003, 128
  %2486 = vxpose.xlu0.b32.cont [13/16] %v2004, 128
  %2487 = vxpose.xlu0.b32.cont [14/16] %v2005, 128
  %2488 = vxpose.xlu0.b32.cont [15/16] %v2006, 128
  %2489 = vxpose.xlu0.b32.end [16/16] %v2007, 128
  %v2490 = vpop.trf.xlu0
  %v2491 = vpop.trf.xlu0
  %v2492 = vpop.trf.xlu0
  %v2493 = vpop.trf.xlu0
  %v2494 = vpop.trf.xlu0
  %v2495 = vpop.trf.xlu0
  %v2496 = vpop.trf.xlu0
  %v2497 = vpop.trf.xlu0
  %v2498 = vpop.trf.xlu0
  %v2499 = vpop.trf.xlu0
  %v2500 = vpop.trf.xlu0
  %v2501 = vpop.trf.xlu0
  %v2502 = vpop.trf.xlu0
  %v2503 = vpop.trf.xlu0
  %v2504 = vpop.trf.xlu0
  %v2505 = vpop.trf.xlu0
  %2506 = vxpose.xlu0.b32.start [1/16] %v2008, 128
  %2507 = vxpose.xlu0.b32.cont [2/16] %v2009, 128
  %2508 = vxpose.xlu0.b32.cont [3/16] %v2026, 128
  %2509 = vxpose.xlu0.b32.cont [4/16] %v2027, 128
  %2510 = vxpose.xlu0.b32.cont [5/16] %v2028, 128
  %2511 = vxpose.xlu0.b32.cont [6/16] %v2029, 128
  %2512 = vxpose.xlu0.b32.cont [7/16] %v2030, 128
  %2513 = vxpose.xlu0.b32.cont [8/16] %v2031, 128
  %2514 = vxpose.xlu0.b32.cont [9/16] %v2032, 128
  %2515 = vxpose.xlu0.b32.cont [10/16] %v2033, 128
  %2516 = vxpose.xlu0.b32.cont [11/16] %v2034, 128
  %2517 = vxpose.xlu0.b32.cont [12/16] %v2035, 128
  %2518 = vxpose.xlu0.b32.cont [13/16] %v2036, 128
  %2519 = vxpose.xlu0.b32.cont [14/16] %v2037, 128
  %2520 = vxpose.xlu0.b32.cont [15/16] %v2038, 128
  %2521 = vxpose.xlu0.b32.end [16/16] %v2039, 128
  %v2522 = vpop.trf.xlu0
  %v2523 = vpop.trf.xlu0
  %v2524 = vpop.trf.xlu0
  %v2525 = vpop.trf.xlu0
  %v2526 = vpop.trf.xlu0
  %v2527 = vpop.trf.xlu0
  %v2528 = vpop.trf.xlu0
  %v2529 = vpop.trf.xlu0
  %v2530 = vpop.trf.xlu0
  %v2531 = vpop.trf.xlu0
  %v2532 = vpop.trf.xlu0
  %v2533 = vpop.trf.xlu0
  %v2534 = vpop.trf.xlu0
  %v2535 = vpop.trf.xlu0
  %v2536 = vpop.trf.xlu0
  %v2537 = vpop.trf.xlu0
  %2538 = vxpose.xlu0.b32.start [1/16] 0.0, 128
  %2539 = vxpose.xlu0.b32.cont [2/16] 0.0, 128
  %2540 = vxpose.xlu0.b32.cont [3/16] %v2058, 128
  %2541 = vxpose.xlu0.b32.cont [4/16] %v2059, 128
  %2542 = vxpose.xlu0.b32.cont [5/16] %v2060, 128
  %2543 = vxpose.xlu0.b32.cont [6/16] %v2061, 128
  %2544 = vxpose.xlu0.b32.cont [7/16] %v2062, 128
  %2545 = vxpose.xlu0.b32.cont [8/16] %v2063, 128
  %2546 = vxpose.xlu0.b32.cont [9/16] %v2064, 128
  %2547 = vxpose.xlu0.b32.cont [10/16] %v2065, 128
  %2548 = vxpose.xlu0.b32.cont [11/16] %v2066, 128
  %2549 = vxpose.xlu0.b32.cont [12/16] %v2067, 128
  %2550 = vxpose.xlu0.b32.cont [13/16] %v2068, 128
  %2551 = vxpose.xlu0.b32.cont [14/16] %v2069, 128
  %2552 = vxpose.xlu0.b32.cont [15/16] %v2070, 128
  %2553 = vxpose.xlu0.b32.end [16/16] %v2071, 128
  %v2554 = vpop.trf.xlu0
  %v2555 = vpop.trf.xlu0
  %v2556 = vpop.trf.xlu0
  %v2557 = vpop.trf.xlu0
  %v2558 = vpop.trf.xlu0
  %v2559 = vpop.trf.xlu0
  %v2560 = vpop.trf.xlu0
  %v2561 = vpop.trf.xlu0
  %v2562 = vpop.trf.xlu0
  %v2563 = vpop.trf.xlu0
  %v2564 = vpop.trf.xlu0
  %v2565 = vpop.trf.xlu0
  %v2566 = vpop.trf.xlu0
  %v2567 = vpop.trf.xlu0
  %v2568 = vpop.trf.xlu0
  %v2569 = vpop.trf.xlu0
  %2570 = vxpose.xlu0.b32.start [1/16] %v2072, 128
  %2571 = vxpose.xlu0.b32.cont [2/16] %v2073, 128
  %2572 = vxpose.xlu0.b32.cont [3/16] %v2090, 128
  %2573 = vxpose.xlu0.b32.cont [4/16] %v2091, 128
  %2574 = vxpose.xlu0.b32.cont [5/16] %v2092, 128
  %2575 = vxpose.xlu0.b32.cont [6/16] %v2093, 128
  %2576 = vxpose.xlu0.b32.cont [7/16] %v2094, 128
  %2577 = vxpose.xlu0.b32.cont [8/16] %v2095, 128
  %2578 = vxpose.xlu0.b32.cont [9/16] %v2096, 128
  %2579 = vxpose.xlu0.b32.cont [10/16] %v2097, 128
  %2580 = vxpose.xlu0.b32.cont [11/16] %v2098, 128
  %2581 = vxpose.xlu0.b32.cont [12/16] %v2099, 128
  %2582 = vxpose.xlu0.b32.cont [13/16] %v2100, 128
  %2583 = vxpose.xlu0.b32.cont [14/16] %v2101, 128
  %2584 = vxpose.xlu0.b32.cont [15/16] %v2102, 128
  %2585 = vxpose.xlu0.b32.end [16/16] %v2103, 128
  %v2586 = vpop.trf.xlu0
  %v2587 = vpop.trf.xlu0
  %v2588 = vpop.trf.xlu0
  %v2589 = vpop.trf.xlu0
  %v2590 = vpop.trf.xlu0
  %v2591 = vpop.trf.xlu0
  %v2592 = vpop.trf.xlu0
  %v2593 = vpop.trf.xlu0
  %v2594 = vpop.trf.xlu0
  %v2595 = vpop.trf.xlu0
  %v2596 = vpop.trf.xlu0
  %v2597 = vpop.trf.xlu0
  %v2598 = vpop.trf.xlu0
  %v2599 = vpop.trf.xlu0
  %v2600 = vpop.trf.xlu0
  %v2601 = vpop.trf.xlu0
  %v2602 = vrot.slane %v1994, 1
  %v2603 = vrot.slane %v1995, 1
  %v2604 = vsel %vm666, %v2602, %v2603
  %v2605 = vsel %vm666, %v2603, %v667
  %v2606 = vrot.slane %v1996, 1
  %v2607 = vrot.slane %v1997, 1
  %v2608 = vsel %vm666, %v2606, %v2607
  %v2609 = vsel %vm666, %v2607, %v667
  %v2610 = vrot.slane %v1998, 1
  %v2611 = vrot.slane %v1999, 1
  %v2612 = vsel %vm666, %v2610, %v2611
  %v2613 = vsel %vm666, %v2611, %v667
  %v2614 = vrot.slane %v2000, 1
  %v2615 = vrot.slane %v2001, 1
  %v2616 = vsel %vm666, %v2614, %v2615
  %v2617 = vsel %vm666, %v2615, %v667
  %v2618 = vrot.slane %v2002, 1
  %v2619 = vrot.slane %v2003, 1
  %v2620 = vsel %vm666, %v2618, %v2619
  %v2621 = vsel %vm666, %v2619, %v667
  %v2622 = vrot.slane %v2004, 1
  %v2623 = vrot.slane %v2005, 1
  %v2624 = vsel %vm666, %v2622, %v2623
  %v2625 = vsel %vm666, %v2623, %v667
  %v2626 = vrot.slane %v2006, 1
  %v2627 = vrot.slane %v2007, 1
  %v2628 = vsel %vm666, %v2626, %v2627
  %v2629 = vsel %vm666, %v2627, %v667
  %v2630 = vrot.slane %v2008, 1
  %v2631 = vrot.slane %v2009, 1
  %v2632 = vsel %vm666, %v2630, %v2631
  %v2633 = vsel %vm666, %v2631, %v667
  %v2634 = vrot.slane %v2026, 1
  %v2635 = vrot.slane %v2027, 1
  %v2636 = vsel %vm666, %v2634, %v2635
  %v2637 = vsel %vm666, %v2635, %v667
  %v2638 = vrot.slane %v2028, 1
  %v2639 = vrot.slane %v2029, 1
  %v2640 = vsel %vm666, %v2638, %v2639
  %v2641 = vsel %vm666, %v2639, %v667
  %v2642 = vrot.slane %v2030, 1
  %v2643 = vrot.slane %v2031, 1
  %v2644 = vsel %vm666, %v2642, %v2643
  %v2645 = vsel %vm666, %v2643, %v667
  %v2646 = vrot.slane %v2032, 1
  %v2647 = vrot.slane %v2033, 1
  %v2648 = vsel %vm666, %v2646, %v2647
  %v2649 = vsel %vm666, %v2647, %v667
  %v2650 = vrot.slane %v2034, 1
  %v2651 = vrot.slane %v2035, 1
  %v2652 = vsel %vm666, %v2650, %v2651
  %v2653 = vsel %vm666, %v2651, %v667
  %v2654 = vrot.slane %v2036, 1
  %v2655 = vrot.slane %v2037, 1
  %v2656 = vsel %vm666, %v2654, %v2655
  %v2657 = vsel %vm666, %v2655, %v667
  %v2658 = vrot.slane %v2038, 1
  %v2659 = vrot.slane %v2039, 1
  %v2660 = vsel %vm666, %v2658, %v2659
  %v2661 = vsel %vm666, %v2659, %v667
  %v2662 = vrot.slane %v2058, 1
  %v2663 = vrot.slane %v2059, 1
  %v2664 = vsel %vm666, %v2662, %v2663
  %v2665 = vsel %vm666, %v2663, %v667
  %v2666 = vrot.slane %v2060, 1
  %v2667 = vrot.slane %v2061, 1
  %v2668 = vsel %vm666, %v2666, %v2667
  %v2669 = vsel %vm666, %v2667, %v667
  %v2670 = vrot.slane %v2062, 1
  %v2671 = vrot.slane %v2063, 1
  %v2672 = vsel %vm666, %v2670, %v2671
  %v2673 = vsel %vm666, %v2671, %v667
  %v2674 = vrot.slane %v2064, 1
  %v2675 = vrot.slane %v2065, 1
  %v2676 = vsel %vm666, %v2674, %v2675
  %v2677 = vsel %vm666, %v2675, %v667
  %v2678 = vrot.slane %v2066, 1
  %v2679 = vrot.slane %v2067, 1
  %v2680 = vsel %vm666, %v2678, %v2679
  %v2681 = vsel %vm666, %v2679, %v667
  %v2682 = vrot.slane %v2068, 1
  %v2683 = vrot.slane %v2069, 1
  %v2684 = vsel %vm666, %v2682, %v2683
  %v2685 = vsel %vm666, %v2683, %v667
  %v2686 = vrot.slane %v2070, 1
  %v2687 = vrot.slane %v2071, 1
  %v2688 = vsel %vm666, %v2686, %v2687
  %v2689 = vsel %vm666, %v2687, %v667
  %v2690 = vrot.slane %v2072, 1
  %v2691 = vrot.slane %v2073, 1
  %v2692 = vsel %vm666, %v2690, %v2691
  %v2693 = vsel %vm666, %v2691, %v667
  %v2694 = vrot.slane %v2090, 1
  %v2695 = vrot.slane %v2091, 1
  %v2696 = vsel %vm666, %v2694, %v2695
  %v2697 = vsel %vm666, %v2695, %v667
  %v2698 = vrot.slane %v2092, 1
  %v2699 = vrot.slane %v2093, 1
  %v2700 = vsel %vm666, %v2698, %v2699
  %v2701 = vsel %vm666, %v2699, %v667
  %v2702 = vrot.slane %v2094, 1
  %v2703 = vrot.slane %v2095, 1
  %v2704 = vsel %vm666, %v2702, %v2703
  %v2705 = vsel %vm666, %v2703, %v667
  %v2706 = vrot.slane %v2096, 1
  %v2707 = vrot.slane %v2097, 1
  %v2708 = vsel %vm666, %v2706, %v2707
  %v2709 = vsel %vm666, %v2707, %v667
  %v2710 = vrot.slane %v2098, 1
  %v2711 = vrot.slane %v2099, 1
  %v2712 = vsel %vm666, %v2710, %v2711
  %v2713 = vsel %vm666, %v2711, %v667
  %v2714 = vrot.slane %v2100, 1
  %v2715 = vrot.slane %v2101, 1
  %v2716 = vsel %vm666, %v2714, %v2715
  %v2717 = vsel %vm666, %v2715, %v667
  %v2718 = vrot.slane %v2102, 1
  %v2719 = vrot.slane %v2103, 1
  %v2720 = vsel %vm666, %v2718, %v2719
  %v2721 = vsel %vm666, %v2719, %v667
  %2782 = vxpose.xlu0.b32.start [1/16] %v668, 128
  %2783 = vxpose.xlu0.b32.cont [2/16] %v668, 128
  %2784 = vxpose.xlu0.b32.cont [3/16] %v2604, 128
  %2785 = vxpose.xlu0.b32.cont [4/16] %v2605, 128
  %2786 = vxpose.xlu0.b32.cont [5/16] %v2608, 128
  %2787 = vxpose.xlu0.b32.cont [6/16] %v2609, 128
  %2788 = vxpose.xlu0.b32.cont [7/16] %v2612, 128
  %2789 = vxpose.xlu0.b32.cont [8/16] %v2613, 128
  %2790 = vxpose.xlu0.b32.cont [9/16] %v2616, 128
  %2791 = vxpose.xlu0.b32.cont [10/16] %v2617, 128
  %2792 = vxpose.xlu0.b32.cont [11/16] %v2620, 128
  %2793 = vxpose.xlu0.b32.cont [12/16] %v2621, 128
  %2794 = vxpose.xlu0.b32.cont [13/16] %v2624, 128
  %2795 = vxpose.xlu0.b32.cont [14/16] %v2625, 128
  %2796 = vxpose.xlu0.b32.cont [15/16] %v2628, 128
  %2797 = vxpose.xlu0.b32.end [16/16] %v2629, 128
  %v2798 = vpop.trf.xlu0
  %v2799 = vpop.trf.xlu0
  %v2800 = vpop.trf.xlu0
  %v2801 = vpop.trf.xlu0
  %v2802 = vpop.trf.xlu0
  %v2803 = vpop.trf.xlu0
  %v2804 = vpop.trf.xlu0
  %v2805 = vpop.trf.xlu0
  %v2806 = vpop.trf.xlu0
  %v2807 = vpop.trf.xlu0
  %v2808 = vpop.trf.xlu0
  %v2809 = vpop.trf.xlu0
  %v2810 = vpop.trf.xlu0
  %v2811 = vpop.trf.xlu0
  %v2812 = vpop.trf.xlu0
  %v2813 = vpop.trf.xlu0
  %2814 = vxpose.xlu0.b32.start [1/16] %v2632, 128
  %2815 = vxpose.xlu0.b32.cont [2/16] %v2633, 128
  %2816 = vxpose.xlu0.b32.cont [3/16] %v2636, 128
  %2817 = vxpose.xlu0.b32.cont [4/16] %v2637, 128
  %2818 = vxpose.xlu0.b32.cont [5/16] %v2640, 128
  %2819 = vxpose.xlu0.b32.cont [6/16] %v2641, 128
  %2820 = vxpose.xlu0.b32.cont [7/16] %v2644, 128
  %2821 = vxpose.xlu0.b32.cont [8/16] %v2645, 128
  %2822 = vxpose.xlu0.b32.cont [9/16] %v2648, 128
  %2823 = vxpose.xlu0.b32.cont [10/16] %v2649, 128
  %2824 = vxpose.xlu0.b32.cont [11/16] %v2652, 128
  %2825 = vxpose.xlu0.b32.cont [12/16] %v2653, 128
  %2826 = vxpose.xlu0.b32.cont [13/16] %v2656, 128
  %2827 = vxpose.xlu0.b32.cont [14/16] %v2657, 128
  %2828 = vxpose.xlu0.b32.cont [15/16] %v2660, 128
  %2829 = vxpose.xlu0.b32.end [16/16] %v2661, 128
  %v2830 = vpop.trf.xlu0
  %v2831 = vpop.trf.xlu0
  %v2832 = vpop.trf.xlu0
  %v2833 = vpop.trf.xlu0
  %v2834 = vpop.trf.xlu0
  %v2835 = vpop.trf.xlu0
  %v2836 = vpop.trf.xlu0
  %v2837 = vpop.trf.xlu0
  %v2838 = vpop.trf.xlu0
  %v2839 = vpop.trf.xlu0
  %v2840 = vpop.trf.xlu0
  %v2841 = vpop.trf.xlu0
  %v2842 = vpop.trf.xlu0
  %v2843 = vpop.trf.xlu0
  %v2844 = vpop.trf.xlu0
  %v2845 = vpop.trf.xlu0
  %2846 = vxpose.xlu0.b32.start [1/16] %v668, 128
  %2847 = vxpose.xlu0.b32.cont [2/16] %v668, 128
  %2848 = vxpose.xlu0.b32.cont [3/16] %v2664, 128
  %2849 = vxpose.xlu0.b32.cont [4/16] %v2665, 128
  %2850 = vxpose.xlu0.b32.cont [5/16] %v2668, 128
  %2851 = vxpose.xlu0.b32.cont [6/16] %v2669, 128
  %2852 = vxpose.xlu0.b32.cont [7/16] %v2672, 128
  %2853 = vxpose.xlu0.b32.cont [8/16] %v2673, 128
  %2854 = vxpose.xlu0.b32.cont [9/16] %v2676, 128
  %2855 = vxpose.xlu0.b32.cont [10/16] %v2677, 128
  %2856 = vxpose.xlu0.b32.cont [11/16] %v2680, 128
  %2857 = vxpose.xlu0.b32.cont [12/16] %v2681, 128
  %2858 = vxpose.xlu0.b32.cont [13/16] %v2684, 128
  %2859 = vxpose.xlu0.b32.cont [14/16] %v2685, 128
  %2860 = vxpose.xlu0.b32.cont [15/16] %v2688, 128
  %2861 = vxpose.xlu0.b32.end [16/16] %v2689, 128
  %v2862 = vpop.trf.xlu0
  %v2863 = vpop.trf.xlu0
  %v2864 = vpop.trf.xlu0
  %v2865 = vpop.trf.xlu0
  %v2866 = vpop.trf.xlu0
  %v2867 = vpop.trf.xlu0
  %v2868 = vpop.trf.xlu0
  %v2869 = vpop.trf.xlu0
  %v2870 = vpop.trf.xlu0
  %v2871 = vpop.trf.xlu0
  %v2872 = vpop.trf.xlu0
  %v2873 = vpop.trf.xlu0
  %v2874 = vpop.trf.xlu0
  %v2875 = vpop.trf.xlu0
  %v2876 = vpop.trf.xlu0
  %v2877 = vpop.trf.xlu0
  %2878 = vxpose.xlu0.b32.start [1/16] %v2692, 128
  %2879 = vxpose.xlu0.b32.cont [2/16] %v2693, 128
  %2880 = vxpose.xlu0.b32.cont [3/16] %v2696, 128
  %2881 = vxpose.xlu0.b32.cont [4/16] %v2697, 128
  %2882 = vxpose.xlu0.b32.cont [5/16] %v2700, 128
  %2883 = vxpose.xlu0.b32.cont [6/16] %v2701, 128
  %2884 = vxpose.xlu0.b32.cont [7/16] %v2704, 128
  %2885 = vxpose.xlu0.b32.cont [8/16] %v2705, 128
  %2886 = vxpose.xlu0.b32.cont [9/16] %v2708, 128
  %2887 = vxpose.xlu0.b32.cont [10/16] %v2709, 128
  %2888 = vxpose.xlu0.b32.cont [11/16] %v2712, 128
  %2889 = vxpose.xlu0.b32.cont [12/16] %v2713, 128
  %2890 = vxpose.xlu0.b32.cont [13/16] %v2716, 128
  %2891 = vxpose.xlu0.b32.cont [14/16] %v2717, 128
  %2892 = vxpose.xlu0.b32.cont [15/16] %v2720, 128
  %2893 = vxpose.xlu0.b32.end [16/16] %v2721, 128
  %v2894 = vpop.trf.xlu0
  %v2895 = vpop.trf.xlu0
  %v2896 = vpop.trf.xlu0
  %v2897 = vpop.trf.xlu0
  %v2898 = vpop.trf.xlu0
  %v2899 = vpop.trf.xlu0
  %v2900 = vpop.trf.xlu0
  %v2901 = vpop.trf.xlu0
  %v2902 = vpop.trf.xlu0
  %v2903 = vpop.trf.xlu0
  %v2904 = vpop.trf.xlu0
  %v2905 = vpop.trf.xlu0
  %v2906 = vpop.trf.xlu0
  %v2907 = vpop.trf.xlu0
  %v2908 = vpop.trf.xlu0
  %v2909 = vpop.trf.xlu0
  %v2914 = vrot.slane %v2040, 7
  %v2915 = vsel %vm226, %v227, %v2914
  %v2916 = vrot.slane %v2041, 7
  %v2917 = vsel %vm226, %v2914, %v2916
  %v2918 = vrot.slane %v2104, 7
  %v2919 = vsel %vm226, %v227, %v2918
  %v2920 = vrot.slane %v2105, 7
  %v2921 = vsel %vm226, %v2918, %v2920
  %2926 = vxpose.xlu0.b32.start [1/16] %v2167, 128
  %2927 = vxpose.xlu0.b32.cont [2/16] %v2169, 128
  %2928 = vxpose.xlu0.b32.cont [3/16] %v2171, 128
  %2929 = vxpose.xlu0.b32.cont [4/16] %v2173, 128
  %2930 = vxpose.xlu0.b32.cont [5/16] %v2175, 128
  %2931 = vxpose.xlu0.b32.cont [6/16] %v2177, 128
  %2932 = vxpose.xlu0.b32.cont [7/16] %v2179, 128
  %2933 = vxpose.xlu0.b32.cont [8/16] %v2181, 128
  %2934 = vxpose.xlu0.b32.cont [9/16] %v2183, 128
  %2935 = vxpose.xlu0.b32.cont [10/16] %v2185, 128
  %2936 = vxpose.xlu0.b32.cont [11/16] %v2187, 128
  %2937 = vxpose.xlu0.b32.cont [12/16] %v2189, 128
  %2938 = vxpose.xlu0.b32.cont [13/16] %v2191, 128
  %2939 = vxpose.xlu0.b32.cont [14/16] %v2193, 128
  %2940 = vxpose.xlu0.b32.cont [15/16] %v2195, 128
  %2941 = vxpose.xlu0.b32.end [16/16] %v2197, 128
  %v2942 = vpop.trf.xlu0
  %v2943 = vpop.trf.xlu0
  %v2944 = vpop.trf.xlu0
  %v2945 = vpop.trf.xlu0
  %v2946 = vpop.trf.xlu0
  %v2947 = vpop.trf.xlu0
  %v2948 = vpop.trf.xlu0
  %v2949 = vpop.trf.xlu0
  %v2950 = vpop.trf.xlu0
  %v2951 = vpop.trf.xlu0
  %v2952 = vpop.trf.xlu0
  %v2953 = vpop.trf.xlu0
  %v2954 = vpop.trf.xlu0
  %v2955 = vpop.trf.xlu0
  %v2956 = vpop.trf.xlu0
  %v2957 = vpop.trf.xlu0
  %2958 = vxpose.xlu0.b32.start [1/16] %v2199, 128
  %2959 = vxpose.xlu0.b32.cont [2/16] %v2201, 128
  %2960 = vxpose.xlu0.b32.cont [3/16] %v2203, 128
  %2961 = vxpose.xlu0.b32.cont [4/16] %v2205, 128
  %2962 = vxpose.xlu0.b32.cont [5/16] %v2207, 128
  %2963 = vxpose.xlu0.b32.cont [6/16] %v2209, 128
  %2964 = vxpose.xlu0.b32.cont [7/16] %v2211, 128
  %2965 = vxpose.xlu0.b32.cont [8/16] %v2213, 128
  %2966 = vxpose.xlu0.b32.cont [9/16] %v2215, 128
  %2967 = vxpose.xlu0.b32.cont [10/16] %v2217, 128
  %2968 = vxpose.xlu0.b32.cont [11/16] %v2219, 128
  %2969 = vxpose.xlu0.b32.cont [12/16] %v2221, 128
  %2970 = vxpose.xlu0.b32.cont [13/16] %v2223, 128
  %2971 = vxpose.xlu0.b32.cont [14/16] %v2225, 128
  %2972 = vxpose.xlu0.b32.cont [15/16] %v2915, 128
  %2973 = vxpose.xlu0.b32.end [16/16] %v2917, 128
  %v2974 = vpop.trf.xlu0
  %v2975 = vpop.trf.xlu0
  %v2976 = vpop.trf.xlu0
  %v2977 = vpop.trf.xlu0
  %v2978 = vpop.trf.xlu0
  %v2979 = vpop.trf.xlu0
  %v2980 = vpop.trf.xlu0
  %v2981 = vpop.trf.xlu0
  %v2982 = vpop.trf.xlu0
  %v2983 = vpop.trf.xlu0
  %v2984 = vpop.trf.xlu0
  %v2985 = vpop.trf.xlu0
  %v2986 = vpop.trf.xlu0
  %v2987 = vpop.trf.xlu0
  %v2988 = vpop.trf.xlu0
  %v2989 = vpop.trf.xlu0
  %2990 = vxpose.xlu0.b32.start [1/16] %v2227, 128
  %2991 = vxpose.xlu0.b32.cont [2/16] %v2229, 128
  %2992 = vxpose.xlu0.b32.cont [3/16] %v2231, 128
  %2993 = vxpose.xlu0.b32.cont [4/16] %v2233, 128
  %2994 = vxpose.xlu0.b32.cont [5/16] %v2235, 128
  %2995 = vxpose.xlu0.b32.cont [6/16] %v2237, 128
  %2996 = vxpose.xlu0.b32.cont [7/16] %v2239, 128
  %2997 = vxpose.xlu0.b32.cont [8/16] %v2241, 128
  %2998 = vxpose.xlu0.b32.cont [9/16] %v2243, 128
  %2999 = vxpose.xlu0.b32.cont [10/16] %v2245, 128
  %3000 = vxpose.xlu0.b32.cont [11/16] %v2247, 128
  %3001 = vxpose.xlu0.b32.cont [12/16] %v2249, 128
  %3002 = vxpose.xlu0.b32.cont [13/16] %v2251, 128
  %3003 = vxpose.xlu0.b32.cont [14/16] %v2253, 128
  %3004 = vxpose.xlu0.b32.cont [15/16] %v2255, 128
  %3005 = vxpose.xlu0.b32.end [16/16] %v2257, 128
  %v3006 = vpop.trf.xlu0
  %v3007 = vpop.trf.xlu0
  %v3008 = vpop.trf.xlu0
  %v3009 = vpop.trf.xlu0
  %v3010 = vpop.trf.xlu0
  %v3011 = vpop.trf.xlu0
  %v3012 = vpop.trf.xlu0
  %v3013 = vpop.trf.xlu0
  %v3014 = vpop.trf.xlu0
  %v3015 = vpop.trf.xlu0
  %v3016 = vpop.trf.xlu0
  %v3017 = vpop.trf.xlu0
  %v3018 = vpop.trf.xlu0
  %v3019 = vpop.trf.xlu0
  %v3020 = vpop.trf.xlu0
  %v3021 = vpop.trf.xlu0
  %3022 = vxpose.xlu0.b32.start [1/16] %v2259, 128
  %3023 = vxpose.xlu0.b32.cont [2/16] %v2261, 128
  %3024 = vxpose.xlu0.b32.cont [3/16] %v2263, 128
  %3025 = vxpose.xlu0.b32.cont [4/16] %v2265, 128
  %3026 = vxpose.xlu0.b32.cont [5/16] %v2267, 128
  %3027 = vxpose.xlu0.b32.cont [6/16] %v2269, 128
  %3028 = vxpose.xlu0.b32.cont [7/16] %v2271, 128
  %3029 = vxpose.xlu0.b32.cont [8/16] %v2273, 128
  %3030 = vxpose.xlu0.b32.cont [9/16] %v2275, 128
  %3031 = vxpose.xlu0.b32.cont [10/16] %v2277, 128
  %3032 = vxpose.xlu0.b32.cont [11/16] %v2279, 128
  %3033 = vxpose.xlu0.b32.cont [12/16] %v2281, 128
  %3034 = vxpose.xlu0.b32.cont [13/16] %v2283, 128
  %3035 = vxpose.xlu0.b32.cont [14/16] %v2285, 128
  %3036 = vxpose.xlu0.b32.cont [15/16] %v2919, 128
  %3037 = vxpose.xlu0.b32.end [16/16] %v2921, 128
  %v3038 = vpop.trf.xlu0
  %v3039 = vpop.trf.xlu0
  %v3040 = vpop.trf.xlu0
  %v3041 = vpop.trf.xlu0
  %v3042 = vpop.trf.xlu0
  %v3043 = vpop.trf.xlu0
  %v3044 = vpop.trf.xlu0
  %v3045 = vpop.trf.xlu0
  %v3046 = vpop.trf.xlu0
  %v3047 = vpop.trf.xlu0
  %v3048 = vpop.trf.xlu0
  %v3049 = vpop.trf.xlu0
  %v3050 = vpop.trf.xlu0
  %v3051 = vpop.trf.xlu0
  %v3052 = vpop.trf.xlu0
  %v3053 = vpop.trf.xlu0
  %3054 = vxpose.xlu0.b32.start [1/16] %v1994, 128
  %3055 = vxpose.xlu0.b32.cont [2/16] %v1995, 128
  %3056 = vxpose.xlu0.b32.cont [3/16] %v1996, 128
  %3057 = vxpose.xlu0.b32.cont [4/16] %v1997, 128
  %3058 = vxpose.xlu0.b32.cont [5/16] %v1998, 128
  %3059 = vxpose.xlu0.b32.cont [6/16] %v1999, 128
  %3060 = vxpose.xlu0.b32.cont [7/16] %v2000, 128
  %3061 = vxpose.xlu0.b32.cont [8/16] %v2001, 128
  %3062 = vxpose.xlu0.b32.cont [9/16] %v2002, 128
  %3063 = vxpose.xlu0.b32.cont [10/16] %v2003, 128
  %3064 = vxpose.xlu0.b32.cont [11/16] %v2004, 128
  %3065 = vxpose.xlu0.b32.cont [12/16] %v2005, 128
  %3066 = vxpose.xlu0.b32.cont [13/16] %v2006, 128
  %3067 = vxpose.xlu0.b32.cont [14/16] %v2007, 128
  %3068 = vxpose.xlu0.b32.cont [15/16] %v2008, 128
  %3069 = vxpose.xlu0.b32.end [16/16] %v2009, 128
  %v3070 = vpop.trf.xlu0
  %v3071 = vpop.trf.xlu0
  %v3072 = vpop.trf.xlu0
  %v3073 = vpop.trf.xlu0
  %v3074 = vpop.trf.xlu0
  %v3075 = vpop.trf.xlu0
  %v3076 = vpop.trf.xlu0
  %v3077 = vpop.trf.xlu0
  %v3078 = vpop.trf.xlu0
  %v3079 = vpop.trf.xlu0
  %v3080 = vpop.trf.xlu0
  %v3081 = vpop.trf.xlu0
  %v3082 = vpop.trf.xlu0
  %v3083 = vpop.trf.xlu0
  %v3084 = vpop.trf.xlu0
  %v3085 = vpop.trf.xlu0
  %3086 = vxpose.xlu0.b32.start [1/16] %v2026, 128
  %3087 = vxpose.xlu0.b32.cont [2/16] %v2027, 128
  %3088 = vxpose.xlu0.b32.cont [3/16] %v2028, 128
  %3089 = vxpose.xlu0.b32.cont [4/16] %v2029, 128
  %3090 = vxpose.xlu0.b32.cont [5/16] %v2030, 128
  %3091 = vxpose.xlu0.b32.cont [6/16] %v2031, 128
  %3092 = vxpose.xlu0.b32.cont [7/16] %v2032, 128
  %3093 = vxpose.xlu0.b32.cont [8/16] %v2033, 128
  %3094 = vxpose.xlu0.b32.cont [9/16] %v2034, 128
  %3095 = vxpose.xlu0.b32.cont [10/16] %v2035, 128
  %3096 = vxpose.xlu0.b32.cont [11/16] %v2036, 128
  %3097 = vxpose.xlu0.b32.cont [12/16] %v2037, 128
  %3098 = vxpose.xlu0.b32.cont [13/16] %v2038, 128
  %3099 = vxpose.xlu0.b32.cont [14/16] %v2039, 128
  %3100 = vxpose.xlu0.b32.cont [15/16] %v2040, 128
  %3101 = vxpose.xlu0.b32.end [16/16] %v2041, 128
  %v3102 = vpop.trf.xlu0
  %v3103 = vpop.trf.xlu0
  %v3104 = vpop.trf.xlu0
  %v3105 = vpop.trf.xlu0
  %v3106 = vpop.trf.xlu0
  %v3107 = vpop.trf.xlu0
  %v3108 = vpop.trf.xlu0
  %v3109 = vpop.trf.xlu0
  %v3110 = vpop.trf.xlu0
  %v3111 = vpop.trf.xlu0
  %v3112 = vpop.trf.xlu0
  %v3113 = vpop.trf.xlu0
  %v3114 = vpop.trf.xlu0
  %v3115 = vpop.trf.xlu0
  %v3116 = vpop.trf.xlu0
  %v3117 = vpop.trf.xlu0
  %3118 = vxpose.xlu0.b32.start [1/16] %v2058, 128
  %3119 = vxpose.xlu0.b32.cont [2/16] %v2059, 128
  %3120 = vxpose.xlu0.b32.cont [3/16] %v2060, 128
  %3121 = vxpose.xlu0.b32.cont [4/16] %v2061, 128
  %3122 = vxpose.xlu0.b32.cont [5/16] %v2062, 128
  %3123 = vxpose.xlu0.b32.cont [6/16] %v2063, 128
  %3124 = vxpose.xlu0.b32.cont [7/16] %v2064, 128
  %3125 = vxpose.xlu0.b32.cont [8/16] %v2065, 128
  %3126 = vxpose.xlu0.b32.cont [9/16] %v2066, 128
  %3127 = vxpose.xlu0.b32.cont [10/16] %v2067, 128
  %3128 = vxpose.xlu0.b32.cont [11/16] %v2068, 128
  %3129 = vxpose.xlu0.b32.cont [12/16] %v2069, 128
  %3130 = vxpose.xlu0.b32.cont [13/16] %v2070, 128
  %3131 = vxpose.xlu0.b32.cont [14/16] %v2071, 128
  %3132 = vxpose.xlu0.b32.cont [15/16] %v2072, 128
  %3133 = vxpose.xlu0.b32.end [16/16] %v2073, 128
  %v3134 = vpop.trf.xlu0
  %v3135 = vpop.trf.xlu0
  %v3136 = vpop.trf.xlu0
  %v3137 = vpop.trf.xlu0
  %v3138 = vpop.trf.xlu0
  %v3139 = vpop.trf.xlu0
  %v3140 = vpop.trf.xlu0
  %v3141 = vpop.trf.xlu0
  %v3142 = vpop.trf.xlu0
  %v3143 = vpop.trf.xlu0
  %v3144 = vpop.trf.xlu0
  %v3145 = vpop.trf.xlu0
  %v3146 = vpop.trf.xlu0
  %v3147 = vpop.trf.xlu0
  %v3148 = vpop.trf.xlu0
  %v3149 = vpop.trf.xlu0
  %3150 = vxpose.xlu0.b32.start [1/16] %v2090, 128
  %3151 = vxpose.xlu0.b32.cont [2/16] %v2091, 128
  %3152 = vxpose.xlu0.b32.cont [3/16] %v2092, 128
  %3153 = vxpose.xlu0.b32.cont [4/16] %v2093, 128
  %3154 = vxpose.xlu0.b32.cont [5/16] %v2094, 128
  %3155 = vxpose.xlu0.b32.cont [6/16] %v2095, 128
  %3156 = vxpose.xlu0.b32.cont [7/16] %v2096, 128
  %3157 = vxpose.xlu0.b32.cont [8/16] %v2097, 128
  %3158 = vxpose.xlu0.b32.cont [9/16] %v2098, 128
  %3159 = vxpose.xlu0.b32.cont [10/16] %v2099, 128
  %3160 = vxpose.xlu0.b32.cont [11/16] %v2100, 128
  %3161 = vxpose.xlu0.b32.cont [12/16] %v2101, 128
  %3162 = vxpose.xlu0.b32.cont [13/16] %v2102, 128
  %3163 = vxpose.xlu0.b32.cont [14/16] %v2103, 128
  %3164 = vxpose.xlu0.b32.cont [15/16] %v2104, 128
  %3165 = vxpose.xlu0.b32.end [16/16] %v2105, 128
  %v3166 = vpop.trf.xlu0
  %v3167 = vpop.trf.xlu0
  %v3168 = vpop.trf.xlu0
  %v3169 = vpop.trf.xlu0
  %v3170 = vpop.trf.xlu0
  %v3171 = vpop.trf.xlu0
  %v3172 = vpop.trf.xlu0
  %v3173 = vpop.trf.xlu0
  %v3174 = vpop.trf.xlu0
  %v3175 = vpop.trf.xlu0
  %v3176 = vpop.trf.xlu0
  %v3177 = vpop.trf.xlu0
  %v3178 = vpop.trf.xlu0
  %v3179 = vpop.trf.xlu0
  %v3180 = vpop.trf.xlu0
  %v3181 = vpop.trf.xlu0
  %v3182 = vrot.slane %v2040, 1
  %v3183 = vrot.slane %v2041, 1
  %v3184 = vsel %vm666, %v3182, %v3183
  %v3185 = vsel %vm666, %v3183, %v667
  %v3186 = vrot.slane %v2104, 1
  %v3187 = vrot.slane %v2105, 1
  %v3188 = vsel %vm666, %v3186, %v3187
  %v3189 = vsel %vm666, %v3187, %v667
  %3194 = vxpose.xlu0.b32.start [1/16] %v2604, 128
  %3195 = vxpose.xlu0.b32.cont [2/16] %v2605, 128
  %3196 = vxpose.xlu0.b32.cont [3/16] %v2608, 128
  %3197 = vxpose.xlu0.b32.cont [4/16] %v2609, 128
  %3198 = vxpose.xlu0.b32.cont [5/16] %v2612, 128
  %3199 = vxpose.xlu0.b32.cont [6/16] %v2613, 128
  %3200 = vxpose.xlu0.b32.cont [7/16] %v2616, 128
  %3201 = vxpose.xlu0.b32.cont [8/16] %v2617, 128
  %3202 = vxpose.xlu0.b32.cont [9/16] %v2620, 128
  %3203 = vxpose.xlu0.b32.cont [10/16] %v2621, 128
  %3204 = vxpose.xlu0.b32.cont [11/16] %v2624, 128
  %3205 = vxpose.xlu0.b32.cont [12/16] %v2625, 128
  %3206 = vxpose.xlu0.b32.cont [13/16] %v2628, 128
  %3207 = vxpose.xlu0.b32.cont [14/16] %v2629, 128
  %3208 = vxpose.xlu0.b32.cont [15/16] %v2632, 128
  %3209 = vxpose.xlu0.b32.end [16/16] %v2633, 128
  %v3210 = vpop.trf.xlu0
  %v3211 = vpop.trf.xlu0
  %v3212 = vpop.trf.xlu0
  %v3213 = vpop.trf.xlu0
  %v3214 = vpop.trf.xlu0
  %v3215 = vpop.trf.xlu0
  %v3216 = vpop.trf.xlu0
  %v3217 = vpop.trf.xlu0
  %v3218 = vpop.trf.xlu0
  %v3219 = vpop.trf.xlu0
  %v3220 = vpop.trf.xlu0
  %v3221 = vpop.trf.xlu0
  %v3222 = vpop.trf.xlu0
  %v3223 = vpop.trf.xlu0
  %v3224 = vpop.trf.xlu0
  %v3225 = vpop.trf.xlu0
  %3226 = vxpose.xlu0.b32.start [1/16] %v2636, 128
  %3227 = vxpose.xlu0.b32.cont [2/16] %v2637, 128
  %3228 = vxpose.xlu0.b32.cont [3/16] %v2640, 128
  %3229 = vxpose.xlu0.b32.cont [4/16] %v2641, 128
  %3230 = vxpose.xlu0.b32.cont [5/16] %v2644, 128
  %3231 = vxpose.xlu0.b32.cont [6/16] %v2645, 128
  %3232 = vxpose.xlu0.b32.cont [7/16] %v2648, 128
  %3233 = vxpose.xlu0.b32.cont [8/16] %v2649, 128
  %3234 = vxpose.xlu0.b32.cont [9/16] %v2652, 128
  %3235 = vxpose.xlu0.b32.cont [10/16] %v2653, 128
  %3236 = vxpose.xlu0.b32.cont [11/16] %v2656, 128
  %3237 = vxpose.xlu0.b32.cont [12/16] %v2657, 128
  %3238 = vxpose.xlu0.b32.cont [13/16] %v2660, 128
  %3239 = vxpose.xlu0.b32.cont [14/16] %v2661, 128
  %3240 = vxpose.xlu0.b32.cont [15/16] %v3184, 128
  %3241 = vxpose.xlu0.b32.end [16/16] %v3185, 128
  %v3242 = vpop.trf.xlu0
  %v3243 = vpop.trf.xlu0
  %v3244 = vpop.trf.xlu0
  %v3245 = vpop.trf.xlu0
  %v3246 = vpop.trf.xlu0
  %v3247 = vpop.trf.xlu0
  %v3248 = vpop.trf.xlu0
  %v3249 = vpop.trf.xlu0
  %v3250 = vpop.trf.xlu0
  %v3251 = vpop.trf.xlu0
  %v3252 = vpop.trf.xlu0
  %v3253 = vpop.trf.xlu0
  %v3254 = vpop.trf.xlu0
  %v3255 = vpop.trf.xlu0
  %v3256 = vpop.trf.xlu0
  %v3257 = vpop.trf.xlu0
  %3258 = vxpose.xlu0.b32.start [1/16] %v2664, 128
  %3259 = vxpose.xlu0.b32.cont [2/16] %v2665, 128
  %3260 = vxpose.xlu0.b32.cont [3/16] %v2668, 128
  %3261 = vxpose.xlu0.b32.cont [4/16] %v2669, 128
  %3262 = vxpose.xlu0.b32.cont [5/16] %v2672, 128
  %3263 = vxpose.xlu0.b32.cont [6/16] %v2673, 128
  %3264 = vxpose.xlu0.b32.cont [7/16] %v2676, 128
  %3265 = vxpose.xlu0.b32.cont [8/16] %v2677, 128
  %3266 = vxpose.xlu0.b32.cont [9/16] %v2680, 128
  %3267 = vxpose.xlu0.b32.cont [10/16] %v2681, 128
  %3268 = vxpose.xlu0.b32.cont [11/16] %v2684, 128
  %3269 = vxpose.xlu0.b32.cont [12/16] %v2685, 128
  %3270 = vxpose.xlu0.b32.cont [13/16] %v2688, 128
  %3271 = vxpose.xlu0.b32.cont [14/16] %v2689, 128
  %3272 = vxpose.xlu0.b32.cont [15/16] %v2692, 128
  %3273 = vxpose.xlu0.b32.end [16/16] %v2693, 128
  %v3274 = vpop.trf.xlu0
  %v3275 = vpop.trf.xlu0
  %v3276 = vpop.trf.xlu0
  %v3277 = vpop.trf.xlu0
  %v3278 = vpop.trf.xlu0
  %v3279 = vpop.trf.xlu0
  %v3280 = vpop.trf.xlu0
  %v3281 = vpop.trf.xlu0
  %v3282 = vpop.trf.xlu0
  %v3283 = vpop.trf.xlu0
  %v3284 = vpop.trf.xlu0
  %v3285 = vpop.trf.xlu0
  %v3286 = vpop.trf.xlu0
  %v3287 = vpop.trf.xlu0
  %v3288 = vpop.trf.xlu0
  %v3289 = vpop.trf.xlu0
  %3290 = vxpose.xlu0.b32.start [1/16] %v2696, 128
  %3291 = vxpose.xlu0.b32.cont [2/16] %v2697, 128
  %3292 = vxpose.xlu0.b32.cont [3/16] %v2700, 128
  %3293 = vxpose.xlu0.b32.cont [4/16] %v2701, 128
  %3294 = vxpose.xlu0.b32.cont [5/16] %v2704, 128
  %3295 = vxpose.xlu0.b32.cont [6/16] %v2705, 128
  %3296 = vxpose.xlu0.b32.cont [7/16] %v2708, 128
  %3297 = vxpose.xlu0.b32.cont [8/16] %v2709, 128
  %3298 = vxpose.xlu0.b32.cont [9/16] %v2712, 128
  %3299 = vxpose.xlu0.b32.cont [10/16] %v2713, 128
  %3300 = vxpose.xlu0.b32.cont [11/16] %v2716, 128
  %3301 = vxpose.xlu0.b32.cont [12/16] %v2717, 128
  %3302 = vxpose.xlu0.b32.cont [13/16] %v2720, 128
  %3303 = vxpose.xlu0.b32.cont [14/16] %v2721, 128
  %3304 = vxpose.xlu0.b32.cont [15/16] %v3188, 128
  %3305 = vxpose.xlu0.b32.end [16/16] %v3189, 128
  %v3306 = vpop.trf.xlu0
  %v3307 = vpop.trf.xlu0
  %v3308 = vpop.trf.xlu0
  %v3309 = vpop.trf.xlu0
  %v3310 = vpop.trf.xlu0
  %v3311 = vpop.trf.xlu0
  %v3312 = vpop.trf.xlu0
  %v3313 = vpop.trf.xlu0
  %v3314 = vpop.trf.xlu0
  %v3315 = vpop.trf.xlu0
  %v3316 = vpop.trf.xlu0
  %v3317 = vpop.trf.xlu0
  %v3318 = vpop.trf.xlu0
  %v3319 = vpop.trf.xlu0
  %v3320 = vpop.trf.xlu0
  %v3321 = vpop.trf.xlu0
  %3322 = vxpose.xlu0.b32.start [1/16] %v2171, 128
  %3323 = vxpose.xlu0.b32.cont [2/16] %v2173, 128
  %3324 = vxpose.xlu0.b32.cont [3/16] %v2175, 128
  %3325 = vxpose.xlu0.b32.cont [4/16] %v2177, 128
  %3326 = vxpose.xlu0.b32.cont [5/16] %v2179, 128
  %3327 = vxpose.xlu0.b32.cont [6/16] %v2181, 128
  %3328 = vxpose.xlu0.b32.cont [7/16] %v2183, 128
  %3329 = vxpose.xlu0.b32.cont [8/16] %v2185, 128
  %3330 = vxpose.xlu0.b32.cont [9/16] %v2187, 128
  %3331 = vxpose.xlu0.b32.cont [10/16] %v2189, 128
  %3332 = vxpose.xlu0.b32.cont [11/16] %v2191, 128
  %3333 = vxpose.xlu0.b32.cont [12/16] %v2193, 128
  %3334 = vxpose.xlu0.b32.cont [13/16] %v2195, 128
  %3335 = vxpose.xlu0.b32.cont [14/16] %v2197, 128
  %3336 = vxpose.xlu0.b32.cont [15/16] %v2199, 128
  %3337 = vxpose.xlu0.b32.end [16/16] %v2201, 128
  %v3338 = vpop.trf.xlu0
  %v3339 = vpop.trf.xlu0
  %v3340 = vpop.trf.xlu0
  %v3341 = vpop.trf.xlu0
  %v3342 = vpop.trf.xlu0
  %v3343 = vpop.trf.xlu0
  %v3344 = vpop.trf.xlu0
  %v3345 = vpop.trf.xlu0
  %v3346 = vpop.trf.xlu0
  %v3347 = vpop.trf.xlu0
  %v3348 = vpop.trf.xlu0
  %v3349 = vpop.trf.xlu0
  %v3350 = vpop.trf.xlu0
  %v3351 = vpop.trf.xlu0
  %v3352 = vpop.trf.xlu0
  %v3353 = vpop.trf.xlu0
  %3354 = vxpose.xlu0.b32.start [1/16] %v2203, 128
  %3355 = vxpose.xlu0.b32.cont [2/16] %v2205, 128
  %3356 = vxpose.xlu0.b32.cont [3/16] %v2207, 128
  %3357 = vxpose.xlu0.b32.cont [4/16] %v2209, 128
  %3358 = vxpose.xlu0.b32.cont [5/16] %v2211, 128
  %3359 = vxpose.xlu0.b32.cont [6/16] %v2213, 128
  %3360 = vxpose.xlu0.b32.cont [7/16] %v2215, 128
  %3361 = vxpose.xlu0.b32.cont [8/16] %v2217, 128
  %3362 = vxpose.xlu0.b32.cont [9/16] %v2219, 128
  %3363 = vxpose.xlu0.b32.cont [10/16] %v2221, 128
  %3364 = vxpose.xlu0.b32.cont [11/16] %v2223, 128
  %3365 = vxpose.xlu0.b32.cont [12/16] %v2225, 128
  %3366 = vxpose.xlu0.b32.cont [13/16] %v2915, 128
  %3367 = vxpose.xlu0.b32.cont [14/16] %v2917, 128
  %3368 = vxpose.xlu0.b32.cont [15/16] %v228, 128
  %3369 = vxpose.xlu0.b32.end [16/16] %v228, 128
  %v3370 = vpop.trf.xlu0
  %v3371 = vpop.trf.xlu0
  %v3372 = vpop.trf.xlu0
  %v3373 = vpop.trf.xlu0
  %v3374 = vpop.trf.xlu0
  %v3375 = vpop.trf.xlu0
  %v3376 = vpop.trf.xlu0
  %v3377 = vpop.trf.xlu0
  %v3378 = vpop.trf.xlu0
  %v3379 = vpop.trf.xlu0
  %v3380 = vpop.trf.xlu0
  %v3381 = vpop.trf.xlu0
  %v3382 = vpop.trf.xlu0
  %v3383 = vpop.trf.xlu0
  %v3384 = vpop.trf.xlu0
  %v3385 = vpop.trf.xlu0
  %3386 = vxpose.xlu0.b32.start [1/16] %v2231, 128
  %3387 = vxpose.xlu0.b32.cont [2/16] %v2233, 128
  %3388 = vxpose.xlu0.b32.cont [3/16] %v2235, 128
  %3389 = vxpose.xlu0.b32.cont [4/16] %v2237, 128
  %3390 = vxpose.xlu0.b32.cont [5/16] %v2239, 128
  %3391 = vxpose.xlu0.b32.cont [6/16] %v2241, 128
  %3392 = vxpose.xlu0.b32.cont [7/16] %v2243, 128
  %3393 = vxpose.xlu0.b32.cont [8/16] %v2245, 128
  %3394 = vxpose.xlu0.b32.cont [9/16] %v2247, 128
  %3395 = vxpose.xlu0.b32.cont [10/16] %v2249, 128
  %3396 = vxpose.xlu0.b32.cont [11/16] %v2251, 128
  %3397 = vxpose.xlu0.b32.cont [12/16] %v2253, 128
  %3398 = vxpose.xlu0.b32.cont [13/16] %v2255, 128
  %3399 = vxpose.xlu0.b32.cont [14/16] %v2257, 128
  %3400 = vxpose.xlu0.b32.cont [15/16] %v2259, 128
  %3401 = vxpose.xlu0.b32.end [16/16] %v2261, 128
  %v3402 = vpop.trf.xlu0
  %v3403 = vpop.trf.xlu0
  %v3404 = vpop.trf.xlu0
  %v3405 = vpop.trf.xlu0
  %v3406 = vpop.trf.xlu0
  %v3407 = vpop.trf.xlu0
  %v3408 = vpop.trf.xlu0
  %v3409 = vpop.trf.xlu0
  %v3410 = vpop.trf.xlu0
  %v3411 = vpop.trf.xlu0
  %v3412 = vpop.trf.xlu0
  %v3413 = vpop.trf.xlu0
  %v3414 = vpop.trf.xlu0
  %v3415 = vpop.trf.xlu0
  %v3416 = vpop.trf.xlu0
  %v3417 = vpop.trf.xlu0
  %3418 = vxpose.xlu0.b32.start [1/16] %v2263, 128
  %3419 = vxpose.xlu0.b32.cont [2/16] %v2265, 128
  %3420 = vxpose.xlu0.b32.cont [3/16] %v2267, 128
  %3421 = vxpose.xlu0.b32.cont [4/16] %v2269, 128
  %3422 = vxpose.xlu0.b32.cont [5/16] %v2271, 128
  %3423 = vxpose.xlu0.b32.cont [6/16] %v2273, 128
  %3424 = vxpose.xlu0.b32.cont [7/16] %v2275, 128
  %3425 = vxpose.xlu0.b32.cont [8/16] %v2277, 128
  %3426 = vxpose.xlu0.b32.cont [9/16] %v2279, 128
  %3427 = vxpose.xlu0.b32.cont [10/16] %v2281, 128
  %3428 = vxpose.xlu0.b32.cont [11/16] %v2283, 128
  %3429 = vxpose.xlu0.b32.cont [12/16] %v2285, 128
  %3430 = vxpose.xlu0.b32.cont [13/16] %v2919, 128
  %3431 = vxpose.xlu0.b32.cont [14/16] %v2921, 128
  %3432 = vxpose.xlu0.b32.cont [15/16] %v228, 128
  %3433 = vxpose.xlu0.b32.end [16/16] %v228, 128
  %v3434 = vpop.trf.xlu0
  %v3435 = vpop.trf.xlu0
  %v3436 = vpop.trf.xlu0
  %v3437 = vpop.trf.xlu0
  %v3438 = vpop.trf.xlu0
  %v3439 = vpop.trf.xlu0
  %v3440 = vpop.trf.xlu0
  %v3441 = vpop.trf.xlu0
  %v3442 = vpop.trf.xlu0
  %v3443 = vpop.trf.xlu0
  %v3444 = vpop.trf.xlu0
  %v3445 = vpop.trf.xlu0
  %v3446 = vpop.trf.xlu0
  %v3447 = vpop.trf.xlu0
  %v3448 = vpop.trf.xlu0
  %v3449 = vpop.trf.xlu0
  %3450 = vxpose.xlu0.b32.start [1/16] %v1996, 128
  %3451 = vxpose.xlu0.b32.cont [2/16] %v1997, 128
  %3452 = vxpose.xlu0.b32.cont [3/16] %v1998, 128
  %3453 = vxpose.xlu0.b32.cont [4/16] %v1999, 128
  %3454 = vxpose.xlu0.b32.cont [5/16] %v2000, 128
  %3455 = vxpose.xlu0.b32.cont [6/16] %v2001, 128
  %3456 = vxpose.xlu0.b32.cont [7/16] %v2002, 128
  %3457 = vxpose.xlu0.b32.cont [8/16] %v2003, 128
  %3458 = vxpose.xlu0.b32.cont [9/16] %v2004, 128
  %3459 = vxpose.xlu0.b32.cont [10/16] %v2005, 128
  %3460 = vxpose.xlu0.b32.cont [11/16] %v2006, 128
  %3461 = vxpose.xlu0.b32.cont [12/16] %v2007, 128
  %3462 = vxpose.xlu0.b32.cont [13/16] %v2008, 128
  %3463 = vxpose.xlu0.b32.cont [14/16] %v2009, 128
  %3464 = vxpose.xlu0.b32.cont [15/16] %v2026, 128
  %3465 = vxpose.xlu0.b32.end [16/16] %v2027, 128
  %v3466 = vpop.trf.xlu0
  %v3467 = vpop.trf.xlu0
  %v3468 = vpop.trf.xlu0
  %v3469 = vpop.trf.xlu0
  %v3470 = vpop.trf.xlu0
  %v3471 = vpop.trf.xlu0
  %v3472 = vpop.trf.xlu0
  %v3473 = vpop.trf.xlu0
  %v3474 = vpop.trf.xlu0
  %v3475 = vpop.trf.xlu0
  %v3476 = vpop.trf.xlu0
  %v3477 = vpop.trf.xlu0
  %v3478 = vpop.trf.xlu0
  %v3479 = vpop.trf.xlu0
  %v3480 = vpop.trf.xlu0
  %v3481 = vpop.trf.xlu0
  %3482 = vxpose.xlu0.b32.start [1/16] %v2028, 128
  %3483 = vxpose.xlu0.b32.cont [2/16] %v2029, 128
  %3484 = vxpose.xlu0.b32.cont [3/16] %v2030, 128
  %3485 = vxpose.xlu0.b32.cont [4/16] %v2031, 128
  %3486 = vxpose.xlu0.b32.cont [5/16] %v2032, 128
  %3487 = vxpose.xlu0.b32.cont [6/16] %v2033, 128
  %3488 = vxpose.xlu0.b32.cont [7/16] %v2034, 128
  %3489 = vxpose.xlu0.b32.cont [8/16] %v2035, 128
  %3490 = vxpose.xlu0.b32.cont [9/16] %v2036, 128
  %3491 = vxpose.xlu0.b32.cont [10/16] %v2037, 128
  %3492 = vxpose.xlu0.b32.cont [11/16] %v2038, 128
  %3493 = vxpose.xlu0.b32.cont [12/16] %v2039, 128
  %3494 = vxpose.xlu0.b32.cont [13/16] %v2040, 128
  %3495 = vxpose.xlu0.b32.cont [14/16] %v2041, 128
  %3496 = vxpose.xlu0.b32.cont [15/16] 0.0, 128
  %3497 = vxpose.xlu0.b32.end [16/16] 0.0, 128
  %v3498 = vpop.trf.xlu0
  %v3499 = vpop.trf.xlu0
  %v3500 = vpop.trf.xlu0
  %v3501 = vpop.trf.xlu0
  %v3502 = vpop.trf.xlu0
  %v3503 = vpop.trf.xlu0
  %v3504 = vpop.trf.xlu0
  %v3505 = vpop.trf.xlu0
  %v3506 = vpop.trf.xlu0
  %v3507 = vpop.trf.xlu0
  %v3508 = vpop.trf.xlu0
  %v3509 = vpop.trf.xlu0
  %v3510 = vpop.trf.xlu0
  %v3511 = vpop.trf.xlu0
  %v3512 = vpop.trf.xlu0
  %v3513 = vpop.trf.xlu0
  %3514 = vxpose.xlu0.b32.start [1/16] %v2060, 128
  %3515 = vxpose.xlu0.b32.cont [2/16] %v2061, 128
  %3516 = vxpose.xlu0.b32.cont [3/16] %v2062, 128
  %3517 = vxpose.xlu0.b32.cont [4/16] %v2063, 128
  %3518 = vxpose.xlu0.b32.cont [5/16] %v2064, 128
  %3519 = vxpose.xlu0.b32.cont [6/16] %v2065, 128
  %3520 = vxpose.xlu0.b32.cont [7/16] %v2066, 128
  %3521 = vxpose.xlu0.b32.cont [8/16] %v2067, 128
  %3522 = vxpose.xlu0.b32.cont [9/16] %v2068, 128
  %3523 = vxpose.xlu0.b32.cont [10/16] %v2069, 128
  %3524 = vxpose.xlu0.b32.cont [11/16] %v2070, 128
  %3525 = vxpose.xlu0.b32.cont [12/16] %v2071, 128
  %3526 = vxpose.xlu0.b32.cont [13/16] %v2072, 128
  %3527 = vxpose.xlu0.b32.cont [14/16] %v2073, 128
  %3528 = vxpose.xlu0.b32.cont [15/16] %v2090, 128
  %3529 = vxpose.xlu0.b32.end [16/16] %v2091, 128
  %v3530 = vpop.trf.xlu0
  %v3531 = vpop.trf.xlu0
  %v3532 = vpop.trf.xlu0
  %v3533 = vpop.trf.xlu0
  %v3534 = vpop.trf.xlu0
  %v3535 = vpop.trf.xlu0
  %v3536 = vpop.trf.xlu0
  %v3537 = vpop.trf.xlu0
  %v3538 = vpop.trf.xlu0
  %v3539 = vpop.trf.xlu0
  %v3540 = vpop.trf.xlu0
  %v3541 = vpop.trf.xlu0
  %v3542 = vpop.trf.xlu0
  %v3543 = vpop.trf.xlu0
  %v3544 = vpop.trf.xlu0
  %v3545 = vpop.trf.xlu0
  %3546 = vxpose.xlu0.b32.start [1/16] %v2092, 128
  %3547 = vxpose.xlu0.b32.cont [2/16] %v2093, 128
  %3548 = vxpose.xlu0.b32.cont [3/16] %v2094, 128
  %3549 = vxpose.xlu0.b32.cont [4/16] %v2095, 128
  %3550 = vxpose.xlu0.b32.cont [5/16] %v2096, 128
  %3551 = vxpose.xlu0.b32.cont [6/16] %v2097, 128
  %3552 = vxpose.xlu0.b32.cont [7/16] %v2098, 128
  %3553 = vxpose.xlu0.b32.cont [8/16] %v2099, 128
  %3554 = vxpose.xlu0.b32.cont [9/16] %v2100, 128
  %3555 = vxpose.xlu0.b32.cont [10/16] %v2101, 128
  %3556 = vxpose.xlu0.b32.cont [11/16] %v2102, 128
  %3557 = vxpose.xlu0.b32.cont [12/16] %v2103, 128
  %3558 = vxpose.xlu0.b32.cont [13/16] %v2104, 128
  %3559 = vxpose.xlu0.b32.cont [14/16] %v2105, 128
  %3560 = vxpose.xlu0.b32.cont [15/16] 0.0, 128
  %3561 = vxpose.xlu0.b32.end [16/16] 0.0, 128
  %v3562 = vpop.trf.xlu0
  %v3563 = vpop.trf.xlu0
  %v3564 = vpop.trf.xlu0
  %v3565 = vpop.trf.xlu0
  %v3566 = vpop.trf.xlu0
  %v3567 = vpop.trf.xlu0
  %v3568 = vpop.trf.xlu0
  %v3569 = vpop.trf.xlu0
  %v3570 = vpop.trf.xlu0
  %v3571 = vpop.trf.xlu0
  %v3572 = vpop.trf.xlu0
  %v3573 = vpop.trf.xlu0
  %v3574 = vpop.trf.xlu0
  %v3575 = vpop.trf.xlu0
  %v3576 = vpop.trf.xlu0
  %v3577 = vpop.trf.xlu0
  %3578 = vxpose.xlu0.b32.start [1/16] %v2608, 128
  %3579 = vxpose.xlu0.b32.cont [2/16] %v2609, 128
  %3580 = vxpose.xlu0.b32.cont [3/16] %v2612, 128
  %3581 = vxpose.xlu0.b32.cont [4/16] %v2613, 128
  %3582 = vxpose.xlu0.b32.cont [5/16] %v2616, 128
  %3583 = vxpose.xlu0.b32.cont [6/16] %v2617, 128
  %3584 = vxpose.xlu0.b32.cont [7/16] %v2620, 128
  %3585 = vxpose.xlu0.b32.cont [8/16] %v2621, 128
  %3586 = vxpose.xlu0.b32.cont [9/16] %v2624, 128
  %3587 = vxpose.xlu0.b32.cont [10/16] %v2625, 128
  %3588 = vxpose.xlu0.b32.cont [11/16] %v2628, 128
  %3589 = vxpose.xlu0.b32.cont [12/16] %v2629, 128
  %3590 = vxpose.xlu0.b32.cont [13/16] %v2632, 128
  %3591 = vxpose.xlu0.b32.cont [14/16] %v2633, 128
  %3592 = vxpose.xlu0.b32.cont [15/16] %v2636, 128
  %3593 = vxpose.xlu0.b32.end [16/16] %v2637, 128
  %v3594 = vpop.trf.xlu0
  %v3595 = vpop.trf.xlu0
  %v3596 = vpop.trf.xlu0
  %v3597 = vpop.trf.xlu0
  %v3598 = vpop.trf.xlu0
  %v3599 = vpop.trf.xlu0
  %v3600 = vpop.trf.xlu0
  %v3601 = vpop.trf.xlu0
  %v3602 = vpop.trf.xlu0
  %v3603 = vpop.trf.xlu0
  %v3604 = vpop.trf.xlu0
  %v3605 = vpop.trf.xlu0
  %v3606 = vpop.trf.xlu0
  %v3607 = vpop.trf.xlu0
  %v3608 = vpop.trf.xlu0
  %v3609 = vpop.trf.xlu0
  %3610 = vxpose.xlu0.b32.start [1/16] %v2640, 128
  %3611 = vxpose.xlu0.b32.cont [2/16] %v2641, 128
  %3612 = vxpose.xlu0.b32.cont [3/16] %v2644, 128
  %3613 = vxpose.xlu0.b32.cont [4/16] %v2645, 128
  %3614 = vxpose.xlu0.b32.cont [5/16] %v2648, 128
  %3615 = vxpose.xlu0.b32.cont [6/16] %v2649, 128
  %3616 = vxpose.xlu0.b32.cont [7/16] %v2652, 128
  %3617 = vxpose.xlu0.b32.cont [8/16] %v2653, 128
  %3618 = vxpose.xlu0.b32.cont [9/16] %v2656, 128
  %3619 = vxpose.xlu0.b32.cont [10/16] %v2657, 128
  %3620 = vxpose.xlu0.b32.cont [11/16] %v2660, 128
  %3621 = vxpose.xlu0.b32.cont [12/16] %v2661, 128
  %3622 = vxpose.xlu0.b32.cont [13/16] %v3184, 128
  %3623 = vxpose.xlu0.b32.cont [14/16] %v3185, 128
  %3624 = vxpose.xlu0.b32.cont [15/16] %v668, 128
  %3625 = vxpose.xlu0.b32.end [16/16] %v668, 128
  %v3626 = vpop.trf.xlu0
  %v3627 = vpop.trf.xlu0
  %v3628 = vpop.trf.xlu0
  %v3629 = vpop.trf.xlu0
  %v3630 = vpop.trf.xlu0
  %v3631 = vpop.trf.xlu0
  %v3632 = vpop.trf.xlu0
  %v3633 = vpop.trf.xlu0
  %v3634 = vpop.trf.xlu0
  %v3635 = vpop.trf.xlu0
  %v3636 = vpop.trf.xlu0
  %v3637 = vpop.trf.xlu0
  %v3638 = vpop.trf.xlu0
  %v3639 = vpop.trf.xlu0
  %v3640 = vpop.trf.xlu0
  %v3641 = vpop.trf.xlu0
  %3642 = vxpose.xlu0.b32.start [1/16] %v2668, 128
  %3643 = vxpose.xlu0.b32.cont [2/16] %v2669, 128
  %3644 = vxpose.xlu0.b32.cont [3/16] %v2672, 128
  %3645 = vxpose.xlu0.b32.cont [4/16] %v2673, 128
  %3646 = vxpose.xlu0.b32.cont [5/16] %v2676, 128
  %3647 = vxpose.xlu0.b32.cont [6/16] %v2677, 128
  %3648 = vxpose.xlu0.b32.cont [7/16] %v2680, 128
  %3649 = vxpose.xlu0.b32.cont [8/16] %v2681, 128
  %3650 = vxpose.xlu0.b32.cont [9/16] %v2684, 128
  %3651 = vxpose.xlu0.b32.cont [10/16] %v2685, 128
  %3652 = vxpose.xlu0.b32.cont [11/16] %v2688, 128
  %3653 = vxpose.xlu0.b32.cont [12/16] %v2689, 128
  %3654 = vxpose.xlu0.b32.cont [13/16] %v2692, 128
  %3655 = vxpose.xlu0.b32.cont [14/16] %v2693, 128
  %3656 = vxpose.xlu0.b32.cont [15/16] %v2696, 128
  %3657 = vxpose.xlu0.b32.end [16/16] %v2697, 128
  %v3658 = vpop.trf.xlu0
  %v3659 = vpop.trf.xlu0
  %v3660 = vpop.trf.xlu0
  %v3661 = vpop.trf.xlu0
  %v3662 = vpop.trf.xlu0
  %v3663 = vpop.trf.xlu0
  %v3664 = vpop.trf.xlu0
  %v3665 = vpop.trf.xlu0
  %v3666 = vpop.trf.xlu0
  %v3667 = vpop.trf.xlu0
  %v3668 = vpop.trf.xlu0
  %v3669 = vpop.trf.xlu0
  %v3670 = vpop.trf.xlu0
  %v3671 = vpop.trf.xlu0
  %v3672 = vpop.trf.xlu0
  %v3673 = vpop.trf.xlu0
  %3674 = vxpose.xlu0.b32.start [1/16] %v2700, 128
  %3675 = vxpose.xlu0.b32.cont [2/16] %v2701, 128
  %3676 = vxpose.xlu0.b32.cont [3/16] %v2704, 128
  %3677 = vxpose.xlu0.b32.cont [4/16] %v2705, 128
  %3678 = vxpose.xlu0.b32.cont [5/16] %v2708, 128
  %3679 = vxpose.xlu0.b32.cont [6/16] %v2709, 128
  %3680 = vxpose.xlu0.b32.cont [7/16] %v2712, 128
  %3681 = vxpose.xlu0.b32.cont [8/16] %v2713, 128
  %3682 = vxpose.xlu0.b32.cont [9/16] %v2716, 128
  %3683 = vxpose.xlu0.b32.cont [10/16] %v2717, 128
  %3684 = vxpose.xlu0.b32.cont [11/16] %v2720, 128
  %3685 = vxpose.xlu0.b32.cont [12/16] %v2721, 128
  %3686 = vxpose.xlu0.b32.cont [13/16] %v3188, 128
  %3687 = vxpose.xlu0.b32.cont [14/16] %v3189, 128
  %3688 = vxpose.xlu0.b32.cont [15/16] %v668, 128
  %3689 = vxpose.xlu0.b32.end [16/16] %v668, 128
  %v3690 = vpop.trf.xlu0
  %v3691 = vpop.trf.xlu0
  %v3692 = vpop.trf.xlu0
  %v3693 = vpop.trf.xlu0
  %v3694 = vpop.trf.xlu0
  %v3695 = vpop.trf.xlu0
  %v3696 = vpop.trf.xlu0
  %v3697 = vpop.trf.xlu0
  %v3698 = vpop.trf.xlu0
  %v3699 = vpop.trf.xlu0
  %v3700 = vpop.trf.xlu0
  %v3701 = vpop.trf.xlu0
  %v3702 = vpop.trf.xlu0
  %v3703 = vpop.trf.xlu0
  %v3704 = vpop.trf.xlu0
  %v3705 = vpop.trf.xlu0
  %v3706 = vld [vmem:[%s5] sm:$0xff]
  %v3707 = vld [vmem:[%s6] sm:$0xff]
  %3709 = vset.pattern.permute.xlu0 0
  %3710 = vperm.xlu0 %3709, %v3707
  %v3711 = vpop.permute.xlu0 %3710
  %v3714 = vsel %vm1781, %v3706, 0
  %3716 = vmatprep.subr.mxu0 %v2394
  %3717 = vmatpush1.msra.mxu0 %v2362
  %3718 = vmatprep.subr.mxu0 %v2522
  %3719 = vmatpush1.msra.mxu0 %v2490
  %3720 = vmatprep.subr.mxu0 %v2830
  %3721 = vmatpush1.msra.mxu0 %v2798
  %3722 = vmatprep.subr.mxu0 %v2974
  %3723 = vmatpush1.msra.mxu0 %v2942
  %3724 = vmatprep.subr.mxu0 %v3102
  %3725 = vmatpush1.msra.mxu0 %v3070
  %3726 = vmatprep.subr.mxu0 %v3242
  %3727 = vmatpush1.msra.mxu0 %v3210
  %3728 = vmatprep.subr.mxu0 %v3370
  %3729 = vmatpush1.msra.mxu0 %v3338
  %3730 = vmatprep.subr.mxu0 %v3498
  %3731 = vmatpush1.msra.mxu0 %v3466
  %3732 = vmatprep.subr.mxu0 %v3626
  %3733 = vmatpush1.msra.mxu0 %v3594
  %3734 = vmatprep.subr.mxu0 0.0
  %3735 = vmatpush1.msra.mxu0 0.0
  %3736 = vmatprep.subr.mxu0 0.0
  %3737 = vmatpush1.msra.mxu0 0.0
  %3738 = vmatprep.subr.mxu0 0.0
  %3739 = vmatpush1.msra.mxu0 0.0
  %3740 = vmatprep.subr.mxu0 0.0
  %3741 = vmatpush1.msra.mxu0 0.0
  %3742 = vmatprep.subr.mxu0 0.0
  %3743 = vmatpush1.msra.mxu0 0.0
  %3744 = vmatprep.subr.mxu0 0.0
  %3745 = vmatpush1.msra.mxu0 0.0
  %3746 = vmatprep.subr.mxu0 0.0
  %3747 = vmatpush1.msra.mxu0 0.0
  %3748 = vmatprep.subr.mxu0 0.0
  %3749 = vmatpush1.msra.mxu0 0.0
  %3750 = vmatprep.subr.mxu0 0.0
  %3751 = vmatpush1.msra.mxu0 0.0
  %3752 = vmatprep.subr.mxu0 0.0
  %3753 = vmatpush1.msra.mxu0 0.0
  %3754 = vmatprep.subr.mxu0 0.0
  %3755 = vmatpush1.msra.mxu0 0.0
  %3756 = vmatprep.subr.mxu0 0.0
  %3757 = vmatpush1.msra.mxu0 0.0
  %3758 = vmatprep.subr.mxu0 0.0
  %3759 = vmatpush1.msra.mxu0 0.0
  %3760 = vmatprep.subr.mxu0 0.0
  %3761 = vmatpush1.msra.mxu0 0.0
  %3762 = vmatprep.subr.mxu0 0.0
  %3763 = vmatpush1.msra.mxu0 0.0
  %3764 = vmatprep.subr.mxu0 0.0
  %3765 = vmatpush1.msra.mxu0 0.0
  %3766 = vmatprep.subr.mxu0 0.0
  %3767 = vmatpush1.msra.mxu0 0.0
  %3768 = vmatprep.subr.mxu0 0.0
  %3769 = vmatpush1.msra.mxu0 0.0
  %3770 = vmatprep.subr.mxu0 0.0
  %3771 = vmatpush1.msra.mxu0 0.0
  %3772 = vmatprep.subr.mxu0 0.0
  %3773 = vmatpush1.msra.mxu0 0.0
  %3774 = vmatprep.subr.mxu0 0.0
  %3775 = vmatpush1.msra.mxu0 0.0
  %3776 = vmatprep.subr.mxu0 0.0
  %3777 = vmatpush1.msra.mxu0 0.0
  %3778 = vmatprep.subr.mxu0 0.0
  %3779 = vmatpush1.msra.mxu0 0.0
  %3780 = vmatprep.mubr.f32.mxu0 0.0
  %3781 = vmatmul.mubr.f32.gmra.mrb[0].mxu0 %v3714
  %v3782 = vpop.f32.mrb[0].mxu0
  %v3783 = vadd.f32 %v3711, %v3782
  %v3784 = vpop.f32.mrb[0].mxu0
  %v3785 = vadd.f32 %v3711, %v3784
  %3786 = vdwg.mxu0
  %3787 = vmatprep.subr.mxu0 %v2458
  %3788 = vmatpush1.msra.mxu0 %v2426
  %3789 = vmatprep.subr.mxu0 %v2586
  %3790 = vmatpush1.msra.mxu0 %v2554
  %3791 = vmatprep.subr.mxu0 %v2894
  %3792 = vmatpush1.msra.mxu0 %v2862
  %3793 = vmatprep.subr.mxu0 %v3038
  %3794 = vmatpush1.msra.mxu0 %v3006
  %3795 = vmatprep.subr.mxu0 %v3166
  %3796 = vmatpush1.msra.mxu0 %v3134
  %3797 = vmatprep.subr.mxu0 %v3306
  %3798 = vmatpush1.msra.mxu0 %v3274
  %3799 = vmatprep.subr.mxu0 %v3434
  %3800 = vmatpush1.msra.mxu0 %v3402
  %3801 = vmatprep.subr.mxu0 %v3562
  %3802 = vmatpush1.msra.mxu0 %v3530
  %3803 = vmatprep.subr.mxu0 %v3690
  %3804 = vmatpush1.msra.mxu0 %v3658
  %3805 = vmatprep.subr.mxu0 0.0
  %3806 = vmatpush1.msra.mxu0 0.0
  %3807 = vmatprep.subr.mxu0 0.0
  %3808 = vmatpush1.msra.mxu0 0.0
  %3809 = vmatprep.subr.mxu0 0.0
  %3810 = vmatpush1.msra.mxu0 0.0
  %3811 = vmatprep.subr.mxu0 0.0
  %3812 = vmatpush1.msra.mxu0 0.0
  %3813 = vmatprep.subr.mxu0 0.0
  %3814 = vmatpush1.msra.mxu0 0.0
  %3815 = vmatprep.subr.mxu0 0.0
  %3816 = vmatpush1.msra.mxu0 0.0
  %3817 = vmatprep.subr.mxu0 0.0
  %3818 = vmatpush1.msra.mxu0 0.0
  %3819 = vmatprep.subr.mxu0 0.0
  %3820 = vmatpush1.msra.mxu0 0.0
  %3821 = vmatprep.subr.mxu0 0.0
  %3822 = vmatpush1.msra.mxu0 0.0
  %3823 = vmatprep.subr.mxu0 0.0
  %3824 = vmatpush1.msra.mxu0 0.0
  %3825 = vmatprep.subr.mxu0 0.0
  %3826 = vmatpush1.msra.mxu0 0.0
  %3827 = vmatprep.subr.mxu0 0.0
  %3828 = vmatpush1.msra.mxu0 0.0
  %3829 = vmatprep.subr.mxu0 0.0
  %3830 = vmatpush1.msra.mxu0 0.0
  %3831 = vmatprep.subr.mxu0 0.0
  %3832 = vmatpush1.msra.mxu0 0.0
  %3833 = vmatprep.subr.mxu0 0.0
  %3834 = vmatpush1.msra.mxu0 0.0
  %3835 = vmatprep.subr.mxu0 0.0
  %3836 = vmatpush1.msra.mxu0 0.0
  %3837 = vmatprep.subr.mxu0 0.0
  %3838 = vmatpush1.msra.mxu0 0.0
  %3839 = vmatprep.subr.mxu0 0.0
  %3840 = vmatpush1.msra.mxu0 0.0
  %3841 = vmatprep.subr.mxu0 0.0
  %3842 = vmatpush1.msra.mxu0 0.0
  %3843 = vmatprep.subr.mxu0 0.0
  %3844 = vmatpush1.msra.mxu0 0.0
  %3845 = vmatprep.subr.mxu0 0.0
  %3846 = vmatpush1.msra.mxu0 0.0
  %3847 = vmatprep.subr.mxu0 0.0
  %3848 = vmatpush1.msra.mxu0 0.0
  %3849 = vmatprep.subr.mxu0 0.0
  %3850 = vmatpush1.msra.mxu0 0.0
  %3851 = vmatprep.mubr.f32.mxu0 0.0
  %3852 = vmatmul.mubr.f32.gmra.mrb[0].mxu0 %v3714
  %v3853 = vpop.f32.mrb[0].mxu0
  %v3854 = vadd.f32 %v3711, %v3853
  %v3855 = vpop.f32.mrb[0].mxu0
  %v3856 = vadd.f32 %v3711, %v3855
  %3857 = vdwg.mxu0
  %v3858 = vadd.f32 %v3783, %v3785
  %v3859 = vadd.f32 %v3858, %v3854
  %v3860 = vadd.f32 %v3859, %v3856
  %3861 = vadd.xlane.f32.xlu0 %v3860
  %v3862 = vpop.xlane.xlu0 %3861
  %v3863 = vmul.f32 %v3862, %v1932
  %v3864 = vsub.f32 %v3783, %v3863
  %v3865 = vsub.f32 %v3785, %v3863
  %v3866 = vsub.f32 %v3854, %v3863
  %v3867 = vsub.f32 %v3856, %v3863
  %v3868 = vmul.f32 %v3864, %v3864
  %v3869 = vmul.f32 %v3865, %v3865
  %v3870 = vmul.f32 %v3866, %v3866
  %v3871 = vmul.f32 %v3867, %v3867
  %v3872 = vadd.f32 %v3868, %v3869
  %v3873 = vadd.f32 %v3872, %v3870
  %v3874 = vadd.f32 %v3873, %v3871
  %3875 = vadd.xlane.f32.xlu0 %v3874
  %v3876 = vpop.xlane.xlu0 %3875
  %v3877 = vmul.f32 %v3876, %v1932
  %v3878 = vadd.f32 %v3877, 1e-05
  %v3879 = vrsqrt.pop %v3878
  %v3880 = vmul.f32 %v3864, %v3879
  %v3881 = vmul.f32 %v3865, %v3879
  %v3882 = vmul.f32 %v3866, %v3879
  %v3883 = vmul.f32 %v3867, %v3879
  %v3884 = vld [vmem:[%s7] sm:$0xff]
  %3886 = vset.pattern.permute.xlu0 0
  %3887 = vperm.xlu0 %3886, %v3884
  %v3888 = vpop.permute.xlu0 %3887
  %v3890 = vmul.f32 %v3880, %v3888
  %v3891 = vmul.f32 %v3881, %v3888
  %v3892 = vmul.f32 %v3882, %v3888
  %v3893 = vmul.f32 %v3883, %v3888
  %v3894 = vld [vmem:[%s8] sm:$0xff]
  %3896 = vset.pattern.permute.xlu0 0
  %3897 = vperm.xlu0 %3896, %v3894
  %v3898 = vpop.permute.xlu0 %3897
  %v3900 = vadd.f32 %v3890, %v3898
  %v3901 = vadd.f32 %v3891, %v3898
  %v3902 = vadd.f32 %v3892, %v3898
  %v3903 = vadd.f32 %v3893, %v3898
  %v3904 = vadd.f32 %v3900, %v32
  %v3905 = vadd.f32 %v3901, %v33
  %v3906 = vadd.f32 %v3902, %v35
  %v3907 = vadd.f32 %v3903, %v36
  %v3908 = vmax.f32 %v3904, 0.0
  %v3909 = vmax.f32 %v3905, 0.0
  %v3910 = vmax.f32 %v3906, 0.0
  %v3911 = vmax.f32 %v3907, 0.0
  %3912 = vst [vmem:[%s9] sm:$0xff] %v3908
  %3913 = vst [vmem:[%s9 + $0x8] sm:$0xff] %v3909
  %s3914 = scalar_lea.vmem %s9, 16
  %3915 = vst [vmem:[%s3914] sm:$0xff] %v3910
  %3916 = vst [vmem:[%s3914 + $0x8] sm:$0xff] %v3911
  // Predicated region
  $region38: #{residual_block.1} parent=0 // pred_check
    _
  $region39: #{residual_block.1} parent=0 // pred_check_branch
    %3918 = sbr.rel (0) target = $region41
  $region40: #{residual_block.1} parent=0 // pred_region
    _
  $region41: #{residual_block.1} parent=0 // pred_fallthru
    _
  // Predicated region
  $region42: #{residual_block.1} parent=0 // pred_check
    _
  $region43: #{residual_block.1} parent=0 // pred_check_branch
    %3920 = sbr.rel (0) target = $region45
  $region44: #{residual_block.1} parent=0 // pred_region
    _
  $region45: #{residual_block.1} parent=0 // pred_fallthru
    _

</llo_original>
